<compile_context>
chip_gen: v7x
topology: tpu7x:2x2x1
jax: 0.10.0
libtpu: 0.0.40
codegen_flags: <defaults>
</compile_context>

<pallas_src>
import functools

import jax
import jax.numpy as jnp
from jax import lax
from jax.experimental import pallas as pl
from jax.experimental.pallas import tpu as pltpu

_LANE = 128
_SUBLANE = 8


def _round_up(x, m):
    return (x + m - 1) // m * m


# ---------------------------------------------------------------------------
# Single fused kernel.
#   x_ref   : (T, Bp, F)   zero-padded, time-major input
#   pre_ref : (6,) SMEM    [conv1_w, conv1_b, bn_gamma, bn_beta, conv2_w, conv2_b]
#   wih_ref : (L, F, 4F)   per-layer input->gates weights (gate-blocked, zero padded)
#   whh_ref : (L, F, 4F)   per-layer hidden->gates weights
#   b_ref   : (L, 1, 4F)   combined b_ih + b_hh
#   lw_ref  : (F, Vp)      final linear weight (transposed, zero padded)
#   lb_ref  : (1, Vp)      final linear bias
# outputs: logits (T, Bp, Vp), h_n (L, Bp, F), c_n (L, Bp, F)
# scratch: two ping-pong sequence buffers (T, Bp, F) and a gates buffer (T, Bp, 4F)
# ---------------------------------------------------------------------------
def _encoder_kernel(x_ref, pre_ref, wih_ref, whh_ref, b_ref, lw_ref, lb_ref,
                    out_ref, hN_ref, cN_ref,
                    buf0, buf1, gx_scr, *, n_valid):
    T, Bp, F = x_ref.shape
    L = wih_ref.shape[0]
    Vp = lw_ref.shape[1]

    # ---- Stage 1: conv_1 (1x1, scalar affine) -> BatchNorm2d (training-mode
    # batch statistics, single pass) -> conv_2 (1x1).  All collapse into one
    # per-element affine y = a*x + c once the batch stats are known.
    xp = x_ref[...]
    w1, b1 = pre_ref[0], pre_ref[1]
    gamma, beta = pre_ref[2], pre_ref[3]
    w2, b2 = pre_ref[4], pre_ref[5]

    n = jnp.float32(n_valid)                       # number of *real* elements
    sx = jnp.sum(xp)                               # padded entries are exactly 0
    sxx = jnp.sum(xp * xp)
    s1 = w1 * sx + b1 * n                          # sum of z = conv_1(x)
    s2 = w1 * w1 * sxx + 2.0 * w1 * b1 * sx + b1 * b1 * n  # sum of z^2
    mean = s1 / n
    var = jnp.maximum(s2 / n - mean * mean, 0.0)   # biased variance (BN norm)
    r = lax.rsqrt(var + 1e-5)
    scale = gamma * r * w2
    shift = (beta - gamma * mean * r) * w2 + b2
    aff_a = scale * w1
    aff_c = scale * b1 + shift
    # Garbage only lands in padded rows/lanes, which are killed downstream by
    # zero-padded weight rows / discarded output rows.
    buf0[...] = aff_a * xp + aff_c
    # TODO(synk): BatchNorm2d running_mean/running_var updates (stateful side
    # effect) are not reproduced; forward output matches training-mode stats.

    # ---- Stage 2: stacked LSTM layers, weights + h/c resident in VMEM/vregs.
    bufs = [buf0, buf1]
    for l in range(L):
        src = bufs[l % 2]
        dst = bufs[(l + 1) % 2]
        w_ih = wih_ref[l]                          # (F, 4F)
        w_hh = whh_ref[l]                          # (F, 4F)
        bias = b_ref[l]                            # (1, 4F)

        # Hoisted input projection: one big MXU matmul over all timesteps.
        xin = src[...].reshape(T * Bp, F)
        gx = jnp.dot(xin, w_ih, preferred_element_type=jnp.float32) + bias
        gx_scr[...] = gx.reshape(T, Bp, 4 * F)

        def step(t, carry, _w_hh=w_hh, _dst=dst):
            h, c = carry
            g = jnp.dot(h, _w_hh, preferred_element_type=jnp.float32) + gx_scr[t]
            i_g = jax.nn.sigmoid(g[:, 0 * F:1 * F])     # 128-lane aligned slices
            f_g = jax.nn.sigmoid(g[:, 1 * F:2 * F])
            g_g = jnp.tanh(g[:, 2 * F:3 * F])
            o_g = jax.nn.sigmoid(g[:, 3 * F:4 * F])
            c = f_g * c + i_g * g_g
            h = o_g * jnp.tanh(c)
            _dst[t] = h
            return (h, c)

        h0 = jnp.zeros((Bp, F), jnp.float32)       # hid=None -> zero initial state
        c0 = jnp.zeros((Bp, F), jnp.float32)
        hT, cT = lax.fori_loop(0, T, step, (h0, c0), unroll=True)
        hN_ref[l] = hT
        cN_ref[l] = cT
        # TODO(synk): training-mode inter-layer LSTM dropout (p=0.2) is
        # stochastic; omitted (matches eval-mode / p=0 forward).

    # ---- Stage 3: final Linear on the whole sequence (one MXU matmul,
    # lane-dense Vp=128 output stores).
    hs = bufs[L % 2][...].reshape(T * Bp, F)
    logits = jnp.dot(hs, lw_ref[...], preferred_element_type=jnp.float32) + lb_ref[...]
    out_ref[...] = logits.reshape(T, Bp, Vp)


# ---------------------------------------------------------------------------
# Parameter setup: PyTorch-style init, then pad/stack into MXU-friendly layout.
# ---------------------------------------------------------------------------
def init_params(key, input_size, vocab_size, hidden_size, num_layers):
    H = hidden_size
    F = _round_up(max(input_size, hidden_size), _LANE)
    Vp = _round_up(vocab_size, _LANE)

    keys = list(jax.random.split(key, 4 * num_layers + 8))
    ki = iter(keys)
    bound = 1.0 / jnp.sqrt(jnp.float32(hidden_size))

    def pad_gate_mat(w_t, in_dim):
        # w_t: (in_dim, 4H), PyTorch gate order i,f,g,o along the 4H axis.
        # Pad each gate block to (F, F) so gate slices are 128-lane aligned.
        blocks = []
        for g in range(4):
            blk = w_t[:, g * H:(g + 1) * H]
            blocks.append(jnp.pad(blk, ((0, F - in_dim), (0, F - H))))
        return jnp.concatenate(blocks, axis=1)                 # (F, 4F)

    def pad_gate_vec(v):
        blocks = [jnp.pad(v[g * H:(g + 1) * H], (0, F - H)) for g in range(4)]
        return jnp.concatenate(blocks).reshape(1, 4 * F)       # (1, 4F)

    wih_l, whh_l, b_l = [], [], []
    in_l = input_size
    for _ in range(num_layers):
        w_ih = jax.random.uniform(next(ki), (4 * H, in_l), jnp.float32, -bound, bound)
        w_hh = jax.random.uniform(next(ki), (4 * H, H), jnp.float32, -bound, bound)
        b_ih = jax.random.uniform(next(ki), (4 * H,), jnp.float32, -bound, bound)
        b_hh = jax.random.uniform(next(ki), (4 * H,), jnp.float32, -bound, bound)
        wih_l.append(pad_gate_mat(w_ih.T, in_l))
        whh_l.append(pad_gate_mat(w_hh.T, H))
        b_l.append(pad_gate_vec(b_ih + b_hh))
        in_l = H

    lin_w = jax.random.uniform(next(ki), (vocab_size, H), jnp.float32, -bound, bound)
    lin_b = jax.random.uniform(next(ki), (vocab_size,), jnp.float32, -bound, bound)

    w1 = jax.random.uniform(next(ki), (), jnp.float32, -1.0, 1.0)  # conv_1 (1,1,1,1)
    b1 = jax.random.uniform(next(ki), (), jnp.float32, -1.0, 1.0)
    w2 = jax.random.uniform(next(ki), (), jnp.float32, -1.0, 1.0)  # conv_2
    b2 = jax.random.uniform(next(ki), (), jnp.float32, -1.0, 1.0)
    gamma, beta = jnp.float32(1.0), jnp.float32(0.0)               # BN affine defaults

    return {
        "wih": jnp.stack(wih_l),                                    # (L, F, 4F)
        "whh": jnp.stack(whh_l),                                    # (L, F, 4F)
        "b": jnp.stack(b_l),                                        # (L, 1, 4F)
        "lin_w": jnp.pad(lin_w.T, ((0, F - H), (0, Vp - vocab_size))),  # (F, Vp)
        "lin_b": jnp.pad(lin_b, (0, Vp - vocab_size)).reshape(1, Vp),   # (1, Vp)
        "pre": jnp.stack([w1, b1, gamma, beta, w2, b2]).astype(jnp.float32),
        "hidden_size": H,
        "vocab_size": vocab_size,
    }


# ---------------------------------------------------------------------------
# Forward wrapper: fold the module's mandatory transpose(2,3)+squeeze together
# with the time-major + lane/sublane zero-padding, run ONE fused pallas_call,
# then slice the padding off the outputs.
# ---------------------------------------------------------------------------
def encoder_forward(params, xs):
    B, C, In, T = xs.shape                              # NCHW, C == 1
    F = params["wih"].shape[1]
    Vp = params["lin_w"].shape[1]
    L = params["wih"].shape[0]
    Bp = _round_up(B, _SUBLANE)
    H = params["hidden_size"]
    V = params["vocab_size"]

    x_tbi = jnp.transpose(xs[:, 0], (2, 0, 1)).astype(jnp.float32)   # (T, B, In)
    x_pad = jnp.zeros((T, Bp, F), jnp.float32).at[:, :B, :In].set(x_tbi)

    kernel = functools.partial(_encoder_kernel, n_valid=float(B * T * In))
    vmem = pltpu.MemorySpace.VMEM
    smem = pltpu.MemorySpace.SMEM

    logits_tm, h_n, c_n = pl.pallas_call(
        kernel,
        out_shape=(jax.ShapeDtypeStruct((T, Bp, Vp), jnp.float32),
                   jax.ShapeDtypeStruct((L, Bp, F), jnp.float32),
                   jax.ShapeDtypeStruct((L, Bp, F), jnp.float32)),
        in_specs=[pl.BlockSpec(memory_space=vmem),   # x (padded, time-major)
                  pl.BlockSpec(memory_space=smem),   # conv/BN scalars
                  pl.BlockSpec(memory_space=vmem),   # W_ih stacked
                  pl.BlockSpec(memory_space=vmem),   # W_hh stacked
                  pl.BlockSpec(memory_space=vmem),   # biases stacked
                  pl.BlockSpec(memory_space=vmem),   # linear W
                  pl.BlockSpec(memory_space=vmem)],  # linear b
        out_specs=(pl.BlockSpec(memory_space=vmem),
                   pl.BlockSpec(memory_space=vmem),
                   pl.BlockSpec(memory_space=vmem)),
        scratch_shapes=[pltpu.VMEM((T, Bp, F), jnp.float32),       # seq buffer A
                        pltpu.VMEM((T, Bp, F), jnp.float32),       # seq buffer B
                        pltpu.VMEM((T, Bp, 4 * F), jnp.float32)],  # hoisted gates
    )(x_pad, params["pre"], params["wih"], params["whh"], params["b"],
      params["lin_w"], params["lin_b"])

    logits = jnp.transpose(logits_tm, (1, 0, 2))[:B, :, :V]         # (B, T, vocab)
    return logits, (h_n[:, :B, :H], c_n[:, :B, :H])


if __name__ == "__main__":
    B, input_size, T = 2, 16, 8
    hidden_size, vocab_size, num_layers = 32, 20, 2

    key = jax.random.PRNGKey(0)
    k_x, k_p = jax.random.split(key)
    xs = jax.random.normal(k_x, (B, 1, input_size, T), jnp.float32)
    params = init_params(k_p, input_size, vocab_size, hidden_size, num_layers)

    logits, (h_n, c_n) = encoder_forward(params, xs)
    jax.block_until_ready((logits, h_n, c_n))

    assert logits.shape == (B, T, vocab_size)
    assert h_n.shape == (num_layers, B, hidden_size)
    assert c_n.shape == (num_layers, B, hidden_size)
    print("KERNEL_OK")
</pallas_src>

<mosaic_0001>
module attributes {stable_mosaic.version = 11 : i64} {
  func.func @_encoder_kernel(%arg0: memref<8x8x128xf32, #tpu.memory_space<vmem>>, %arg1: memref<6xf32, #tpu.memory_space<smem>>, %arg2: memref<2x128x512xf32, #tpu.memory_space<vmem>>, %arg3: memref<2x128x512xf32, #tpu.memory_space<vmem>>, %arg4: memref<2x1x512xf32, #tpu.memory_space<vmem>>, %arg5: memref<128x128xf32, #tpu.memory_space<vmem>>, %arg6: memref<1x128xf32, #tpu.memory_space<vmem>>, %arg7: memref<8x8x128xf32, #tpu.memory_space<vmem>>, %arg8: memref<2x8x128xf32, #tpu.memory_space<vmem>>, %arg9: memref<2x8x128xf32, #tpu.memory_space<vmem>>, %arg10: memref<8x8x128xf32, #tpu.memory_space<vmem>>, %arg11: memref<8x8x128xf32, #tpu.memory_space<vmem>>, %arg12: memref<8x8x512xf32, #tpu.memory_space<vmem>>) attributes {dimension_semantics = [], scalar_prefetch = 0 : i64, scratch_operands = 3 : i64, tpu.core_type = #tpu.core_type<tc>} {
    %c0 = arith.constant 0 : index
    %c0_0 = arith.constant 0 : index
    %c0_1 = arith.constant 0 : index
    %0 = vector.load %arg0[%c0, %c0_0, %c0_1] : memref<8x8x128xf32, #tpu.memory_space<vmem>>, vector<8x8x128xf32>
    %c0_2 = arith.constant 0 : index
    %1 = memref.load %arg1[%c0_2] : memref<6xf32, #tpu.memory_space<smem>>
    %c1 = arith.constant 1 : index
    %2 = memref.load %arg1[%c1] : memref<6xf32, #tpu.memory_space<smem>>
    %c2 = arith.constant 2 : index
    %3 = memref.load %arg1[%c2] : memref<6xf32, #tpu.memory_space<smem>>
    %c3 = arith.constant 3 : index
    %4 = memref.load %arg1[%c3] : memref<6xf32, #tpu.memory_space<smem>>
    %c4 = arith.constant 4 : index
    %5 = memref.load %arg1[%c4] : memref<6xf32, #tpu.memory_space<smem>>
    %c5 = arith.constant 5 : index
    %6 = memref.load %arg1[%c5] : memref<6xf32, #tpu.memory_space<smem>>
    %7 = vector.shape_cast %0 : vector<8x8x128xf32> to vector<1x8x8x128xf32>
    %cst = arith.constant dense<0.000000e+00> : vector<1xf32>
    %8 = vector.multi_reduction <add>, %7, %cst [1, 2, 3] : vector<1x8x8x128xf32> to vector<1xf32>
    %9 = vector.shape_cast %8 : vector<1xf32> to vector<1x1x1x1xf32>
    %10 = vector.extract %9[0, 0, 0, 0] : f32 from vector<1x1x1x1xf32>
    %11 = arith.mulf %0, %0 : vector<8x8x128xf32>
    %12 = vector.shape_cast %11 : vector<8x8x128xf32> to vector<1x8x8x128xf32>
    %cst_3 = arith.constant dense<0.000000e+00> : vector<1xf32>
    %13 = vector.multi_reduction <add>, %12, %cst_3 [1, 2, 3] : vector<1x8x8x128xf32> to vector<1xf32>
    %14 = vector.shape_cast %13 : vector<1xf32> to vector<1x1x1x1xf32>
    %15 = vector.extract %14[0, 0, 0, 0] : f32 from vector<1x1x1x1xf32>
    %16 = arith.mulf %1, %10 : f32
    %cst_4 = arith.constant 2.560000e+02 : f32
    %17 = arith.mulf %2, %cst_4 : f32
    %18 = arith.addf %16, %17 : f32
    %19 = arith.mulf %1, %1 : f32
    %20 = arith.mulf %19, %15 : f32
    %cst_5 = arith.constant 2.000000e+00 : f32
    %21 = arith.mulf %cst_5, %1 : f32
    %22 = arith.mulf %21, %2 : f32
    %23 = arith.mulf %22, %10 : f32
    %24 = arith.addf %20, %23 : f32
    %25 = arith.mulf %2, %2 : f32
    %cst_6 = arith.constant 2.560000e+02 : f32
    %26 = arith.mulf %25, %cst_6 : f32
    %27 = arith.addf %24, %26 : f32
    %cst_7 = arith.constant 2.560000e+02 : f32
    %28 = arith.divf %18, %cst_7 : f32
    %cst_8 = arith.constant 2.560000e+02 : f32
    %29 = arith.divf %27, %cst_8 : f32
    %30 = arith.mulf %28, %28 : f32
    %31 = arith.subf %29, %30 : f32
    %cst_9 = arith.constant 0.000000e+00 : f32
    %32 = arith.maximumf %31, %cst_9 : f32
    %cst_10 = arith.constant 9.99999974E-6 : f32
    %33 = arith.addf %32, %cst_10 : f32
    %34 = math.rsqrt %33 : f32
    %35 = arith.mulf %3, %34 : f32
    %36 = arith.mulf %35, %5 : f32
    %37 = arith.mulf %3, %28 : f32
    %38 = arith.mulf %37, %34 : f32
    %39 = arith.subf %4, %38 : f32
    %40 = arith.mulf %39, %5 : f32
    %41 = arith.addf %40, %6 : f32
    %42 = arith.mulf %36, %1 : f32
    %43 = arith.mulf %36, %2 : f32
    %44 = arith.addf %43, %41 : f32
    %45 = vector.broadcast %42 : f32 to vector<8x8x128xf32>
    %46 = arith.mulf %45, %0 : vector<8x8x128xf32>
    %47 = vector.broadcast %44 : f32 to vector<8x8x128xf32>
    %48 = arith.addf %46, %47 : vector<8x8x128xf32>
    %c0_11 = arith.constant 0 : index
    %c0_12 = arith.constant 0 : index
    %c0_13 = arith.constant 0 : index
    %49 = vector.load %arg10[%c0_11, %c0_12, %c0_13] : memref<8x8x128xf32, #tpu.memory_space<vmem>>, vector<8x8x128xf32>
    tpu.vector_store %arg10[%c0_11, %c0_12, %c0_13], %48 {strides = array<i32>} : memref<8x8x128xf32, #tpu.memory_space<vmem>>, vector<8x8x128xf32>,
    %c0_14 = arith.constant 0 : index
    %c0_15 = arith.constant 0 : index
    %c0_16 = arith.constant 0 : index
    %50 = vector.load %arg2[%c0_14, %c0_15, %c0_16] : memref<2x128x512xf32, #tpu.memory_space<vmem>>, vector<1x128x512xf32>
    %51 = vector.shape_cast %50 : vector<1x128x512xf32> to vector<128x512xf32>
    %c0_17 = arith.constant 0 : index
    %c0_18 = arith.constant 0 : index
    %c0_19 = arith.constant 0 : index
    %52 = vector.load %arg3[%c0_17, %c0_18, %c0_19] : memref<2x128x512xf32, #tpu.memory_space<vmem>>, vector<1x128x512xf32>
    %53 = vector.shape_cast %52 : vector<1x128x512xf32> to vector<128x512xf32>
    %c0_20 = arith.constant 0 : index
    %c0_21 = arith.constant 0 : index
    %c0_22 = arith.constant 0 : index
    %54 = vector.load %arg4[%c0_20, %c0_21, %c0_22] : memref<2x1x512xf32, #tpu.memory_space<vmem>>, vector<1x1x512xf32>
    %55 = vector.shape_cast %54 : vector<1x1x512xf32> to vector<1x512xf32>
    %c0_23 = arith.constant 0 : index
    %c0_24 = arith.constant 0 : index
    %c0_25 = arith.constant 0 : index
    %56 = vector.load %arg10[%c0_23, %c0_24, %c0_25] : memref<8x8x128xf32, #tpu.memory_space<vmem>>, vector<8x8x128xf32>
    %57 = vector.shape_cast %56 : vector<8x8x128xf32> to vector<64x128xf32>
    %cst_26 = arith.constant dense<0.000000e+00> : vector<64x512xf32>
    %58 = tpu.matmul %57, %51, %cst_26 {dimension_numbers = #tpu.dot_dimension_numbers<[1], [0], [0], [1], [0, 0, 1, 1], [], []>} : vector<64x128xf32>, vector<128x512xf32>, vector<64x512xf32> -> vector<64x512xf32>
    %59 = vector.broadcast %55 : vector<1x512xf32> to vector<64x512xf32>
    %60 = arith.addf %58, %59 : vector<64x512xf32>
    %61 = vector.shape_cast %60 : vector<64x512xf32> to vector<8x8x512xf32>
    %c0_27 = arith.constant 0 : index
    %c0_28 = arith.constant 0 : index
    %c0_29 = arith.constant 0 : index
    %62 = vector.load %arg12[%c0_27, %c0_28, %c0_29] : memref<8x8x512xf32, #tpu.memory_space<vmem>>, vector<8x8x512xf32>
    tpu.vector_store %arg12[%c0_27, %c0_28, %c0_29], %61 {strides = array<i32>} : memref<8x8x512xf32, #tpu.memory_space<vmem>>, vector<8x8x512xf32>,
    %cst_30 = arith.constant 0.000000e+00 : f32
    %63 = vector.broadcast %cst_30 : f32 to vector<8x128xf32>
    %cst_31 = arith.constant 0.000000e+00 : f32
    %64 = vector.broadcast %cst_31 : f32 to vector<8x128xf32>
    %c0_i32 = arith.constant 0 : i32
    %cst_32 = arith.constant dense<0.000000e+00> : vector<8x512xf32>
    %65 = tpu.matmul %63, %53, %cst_32 {dimension_numbers = #tpu.dot_dimension_numbers<[1], [0], [0], [1], [0, 0, 1, 1], [], []>} : vector<8x128xf32>, vector<128x512xf32>, vector<8x512xf32> -> vector<8x512xf32>
    %66 = arith.index_cast %c0_i32 : i32 to index
    %c0_33 = arith.constant 0 : index
    %c0_34 = arith.constant 0 : index
    %67 = vector.load %arg12[%66, %c0_33, %c0_34] : memref<8x8x512xf32, #tpu.memory_space<vmem>>, vector<1x8x512xf32>
    %68 = vector.shape_cast %67 : vector<1x8x512xf32> to vector<8x512xf32>
    %69 = arith.addf %65, %68 : vector<8x512xf32>
    %70 = vector.extract_strided_slice %69 {offsets = [0, 0], sizes = [8, 128], strides = [1, 1]} : vector<8x512xf32> to vector<8x128xf32>
    %71 = arith.negf %70 : vector<8x128xf32>
    %72 = math.exp %71 : vector<8x128xf32>
    %cst_35 = arith.constant 1.000000e+00 : f32
    %73 = vector.broadcast %cst_35 : f32 to vector<8x128xf32>
    %74 = arith.addf %73, %72 : vector<8x128xf32>
    %75 = arith.divf %73, %74 : vector<8x128xf32>
    %76 = vector.extract_strided_slice %69 {offsets = [0, 128], sizes = [8, 128], strides = [1, 1]} : vector<8x512xf32> to vector<8x128xf32>
    %77 = arith.negf %76 : vector<8x128xf32>
    %78 = math.exp %77 : vector<8x128xf32>
    %cst_36 = arith.constant 1.000000e+00 : f32
    %79 = vector.broadcast %cst_36 : f32 to vector<8x128xf32>
    %80 = arith.addf %79, %78 : vector<8x128xf32>
    %81 = arith.divf %79, %80 : vector<8x128xf32>
    %82 = vector.extract_strided_slice %69 {offsets = [0, 256], sizes = [8, 128], strides = [1, 1]} : vector<8x512xf32> to vector<8x128xf32>
    %83 = math.tanh %82 : vector<8x128xf32>
    %84 = vector.extract_strided_slice %69 {offsets = [0, 384], sizes = [8, 128], strides = [1, 1]} : vector<8x512xf32> to vector<8x128xf32>
    %85 = arith.negf %84 : vector<8x128xf32>
    %86 = math.exp %85 : vector<8x128xf32>
    %cst_37 = arith.constant 1.000000e+00 : f32
    %87 = vector.broadcast %cst_37 : f32 to vector<8x128xf32>
    %88 = arith.addf %87, %86 : vector<8x128xf32>
    %89 = arith.divf %87, %88 : vector<8x128xf32>
    %90 = arith.mulf %81, %64 : vector<8x128xf32>
    %91 = arith.mulf %75, %83 : vector<8x128xf32>
    %92 = arith.addf %90, %91 : vector<8x128xf32>
    %93 = math.tanh %92 : vector<8x128xf32>
    %94 = arith.mulf %89, %93 : vector<8x128xf32>
    %95 = arith.index_cast %c0_i32 : i32 to index
    %c0_38 = arith.constant 0 : index
    %c0_39 = arith.constant 0 : index
    %96 = vector.load %arg11[%95, %c0_38, %c0_39] : memref<8x8x128xf32, #tpu.memory_space<vmem>>, vector<1x8x128xf32>
    %97 = vector.shape_cast %96 : vector<1x8x128xf32> to vector<8x128xf32>
    %98 = vector.shape_cast %94 : vector<8x128xf32> to vector<1x8x128xf32>
    tpu.vector_store %arg11[%95, %c0_38, %c0_39], %98 {strides = array<i32>} : memref<8x8x128xf32, #tpu.memory_space<vmem>>, vector<1x8x128xf32>,
    %c1_i32 = arith.constant 1 : i32
    %cst_40 = arith.constant dense<0.000000e+00> : vector<8x512xf32>
    %99 = tpu.matmul %94, %53, %cst_40 {dimension_numbers = #tpu.dot_dimension_numbers<[1], [0], [0], [1], [0, 0, 1, 1], [], []>} : vector<8x128xf32>, vector<128x512xf32>, vector<8x512xf32> -> vector<8x512xf32>
    %100 = arith.index_cast %c1_i32 : i32 to index
    %c0_41 = arith.constant 0 : index
    %c0_42 = arith.constant 0 : index
    %101 = vector.load %arg12[%100, %c0_41, %c0_42] : memref<8x8x512xf32, #tpu.memory_space<vmem>>, vector<1x8x512xf32>
    %102 = vector.shape_cast %101 : vector<1x8x512xf32> to vector<8x512xf32>
    %103 = arith.addf %99, %102 : vector<8x512xf32>
    %104 = vector.extract_strided_slice %103 {offsets = [0, 0], sizes = [8, 128], strides = [1, 1]} : vector<8x512xf32> to vector<8x128xf32>
    %105 = arith.negf %104 : vector<8x128xf32>
    %106 = math.exp %105 : vector<8x128xf32>
    %cst_43 = arith.constant 1.000000e+00 : f32
    %107 = vector.broadcast %cst_43 : f32 to vector<8x128xf32>
    %108 = arith.addf %107, %106 : vector<8x128xf32>
    %109 = arith.divf %107, %108 : vector<8x128xf32>
    %110 = vector.extract_strided_slice %103 {offsets = [0, 128], sizes = [8, 128], strides = [1, 1]} : vector<8x512xf32> to vector<8x128xf32>
    %111 = arith.negf %110 : vector<8x128xf32>
    %112 = math.exp %111 : vector<8x128xf32>
    %cst_44 = arith.constant 1.000000e+00 : f32
    %113 = vector.broadcast %cst_44 : f32 to vector<8x128xf32>
    %114 = arith.addf %113, %112 : vector<8x128xf32>
    %115 = arith.divf %113, %114 : vector<8x128xf32>
    %116 = vector.extract_strided_slice %103 {offsets = [0, 256], sizes = [8, 128], strides = [1, 1]} : vector<8x512xf32> to vector<8x128xf32>
    %117 = math.tanh %116 : vector<8x128xf32>
    %118 = vector.extract_strided_slice %103 {offsets = [0, 384], sizes = [8, 128], strides = [1, 1]} : vector<8x512xf32> to vector<8x128xf32>
    %119 = arith.negf %118 : vector<8x128xf32>
    %120 = math.exp %119 : vector<8x128xf32>
    %cst_45 = arith.constant 1.000000e+00 : f32
    %121 = vector.broadcast %cst_45 : f32 to vector<8x128xf32>
    %122 = arith.addf %121, %120 : vector<8x128xf32>
    %123 = arith.divf %121, %122 : vector<8x128xf32>
    %124 = arith.mulf %115, %92 : vector<8x128xf32>
    %125 = arith.mulf %109, %117 : vector<8x128xf32>
    %126 = arith.addf %124, %125 : vector<8x128xf32>
    %127 = math.tanh %126 : vector<8x128xf32>
    %128 = arith.mulf %123, %127 : vector<8x128xf32>
    %129 = arith.index_cast %c1_i32 : i32 to index
    %c0_46 = arith.constant 0 : index
    %c0_47 = arith.constant 0 : index
    %130 = vector.load %arg11[%129, %c0_46, %c0_47] : memref<8x8x128xf32, #tpu.memory_space<vmem>>, vector<1x8x128xf32>
    %131 = vector.shape_cast %130 : vector<1x8x128xf32> to vector<8x128xf32>
    %132 = vector.shape_cast %128 : vector<8x128xf32> to vector<1x8x128xf32>
    tpu.vector_store %arg11[%129, %c0_46, %c0_47], %132 {strides = array<i32>} : memref<8x8x128xf32, #tpu.memory_space<vmem>>, vector<1x8x128xf32>,
    %c2_i32 = arith.constant 2 : i32
    %cst_48 = arith.constant dense<0.000000e+00> : vector<8x512xf32>
    %133 = tpu.matmul %128, %53, %cst_48 {dimension_numbers = #tpu.dot_dimension_numbers<[1], [0], [0], [1], [0, 0, 1, 1], [], []>} : vector<8x128xf32>, vector<128x512xf32>, vector<8x512xf32> -> vector<8x512xf32>
    %134 = arith.index_cast %c2_i32 : i32 to index
    %c0_49 = arith.constant 0 : index
    %c0_50 = arith.constant 0 : index
    %135 = vector.load %arg12[%134, %c0_49, %c0_50] : memref<8x8x512xf32, #tpu.memory_space<vmem>>, vector<1x8x512xf32>
    %136 = vector.shape_cast %135 : vector<1x8x512xf32> to vector<8x512xf32>
    %137 = arith.addf %133, %136 : vector<8x512xf32>
    %138 = vector.extract_strided_slice %137 {offsets = [0, 0], sizes = [8, 128], strides = [1, 1]} : vector<8x512xf32> to vector<8x128xf32>
    %139 = arith.negf %138 : vector<8x128xf32>
    %140 = math.exp %139 : vector<8x128xf32>
    %cst_51 = arith.constant 1.000000e+00 : f32
    %141 = vector.broadcast %cst_51 : f32 to vector<8x128xf32>
    %142 = arith.addf %141, %140 : vector<8x128xf32>
    %143 = arith.divf %141, %142 : vector<8x128xf32>
    %144 = vector.extract_strided_slice %137 {offsets = [0, 128], sizes = [8, 128], strides = [1, 1]} : vector<8x512xf32> to vector<8x128xf32>
    %145 = arith.negf %144 : vector<8x128xf32>
    %146 = math.exp %145 : vector<8x128xf32>
    %cst_52 = arith.constant 1.000000e+00 : f32
    %147 = vector.broadcast %cst_52 : f32 to vector<8x128xf32>
    %148 = arith.addf %147, %146 : vector<8x128xf32>
    %149 = arith.divf %147, %148 : vector<8x128xf32>
    %150 = vector.extract_strided_slice %137 {offsets = [0, 256], sizes = [8, 128], strides = [1, 1]} : vector<8x512xf32> to vector<8x128xf32>
    %151 = math.tanh %150 : vector<8x128xf32>
    %152 = vector.extract_strided_slice %137 {offsets = [0, 384], sizes = [8, 128], strides = [1, 1]} : vector<8x512xf32> to vector<8x128xf32>
    %153 = arith.negf %152 : vector<8x128xf32>
    %154 = math.exp %153 : vector<8x128xf32>
    %cst_53 = arith.constant 1.000000e+00 : f32
    %155 = vector.broadcast %cst_53 : f32 to vector<8x128xf32>
    %156 = arith.addf %155, %154 : vector<8x128xf32>
    %157 = arith.divf %155, %156 : vector<8x128xf32>
    %158 = arith.mulf %149, %126 : vector<8x128xf32>
    %159 = arith.mulf %143, %151 : vector<8x128xf32>
    %160 = arith.addf %158, %159 : vector<8x128xf32>
    %161 = math.tanh %160 : vector<8x128xf32>
    %162 = arith.mulf %157, %161 : vector<8x128xf32>
    %163 = arith.index_cast %c2_i32 : i32 to index
    %c0_54 = arith.constant 0 : index
    %c0_55 = arith.constant 0 : index
    %164 = vector.load %arg11[%163, %c0_54, %c0_55] : memref<8x8x128xf32, #tpu.memory_space<vmem>>, vector<1x8x128xf32>
    %165 = vector.shape_cast %164 : vector<1x8x128xf32> to vector<8x128xf32>
    %166 = vector.shape_cast %162 : vector<8x128xf32> to vector<1x8x128xf32>
    tpu.vector_store %arg11[%163, %c0_54, %c0_55], %166 {strides = array<i32>} : memref<8x8x128xf32, #tpu.memory_space<vmem>>, vector<1x8x128xf32>,
    %c3_i32 = arith.constant 3 : i32
    %cst_56 = arith.constant dense<0.000000e+00> : vector<8x512xf32>
    %167 = tpu.matmul %162, %53, %cst_56 {dimension_numbers = #tpu.dot_dimension_numbers<[1], [0], [0], [1], [0, 0, 1, 1], [], []>} : vector<8x128xf32>, vector<128x512xf32>, vector<8x512xf32> -> vector<8x512xf32>
    %168 = arith.index_cast %c3_i32 : i32 to index
    %c0_57 = arith.constant 0 : index
    %c0_58 = arith.constant 0 : index
    %169 = vector.load %arg12[%168, %c0_57, %c0_58] : memref<8x8x512xf32, #tpu.memory_space<vmem>>, vector<1x8x512xf32>
    %170 = vector.shape_cast %169 : vector<1x8x512xf32> to vector<8x512xf32>
    %171 = arith.addf %167, %170 : vector<8x512xf32>
    %172 = vector.extract_strided_slice %171 {offsets = [0, 0], sizes = [8, 128], strides = [1, 1]} : vector<8x512xf32> to vector<8x128xf32>
    %173 = arith.negf %172 : vector<8x128xf32>
    %174 = math.exp %173 : vector<8x128xf32>
    %cst_59 = arith.constant 1.000000e+00 : f32
    %175 = vector.broadcast %cst_59 : f32 to vector<8x128xf32>
    %176 = arith.addf %175, %174 : vector<8x128xf32>
    %177 = arith.divf %175, %176 : vector<8x128xf32>
    %178 = vector.extract_strided_slice %171 {offsets = [0, 128], sizes = [8, 128], strides = [1, 1]} : vector<8x512xf32> to vector<8x128xf32>
    %179 = arith.negf %178 : vector<8x128xf32>
    %180 = math.exp %179 : vector<8x128xf32>
    %cst_60 = arith.constant 1.000000e+00 : f32
    %181 = vector.broadcast %cst_60 : f32 to vector<8x128xf32>
    %182 = arith.addf %181, %180 : vector<8x128xf32>
    %183 = arith.divf %181, %182 : vector<8x128xf32>
    %184 = vector.extract_strided_slice %171 {offsets = [0, 256], sizes = [8, 128], strides = [1, 1]} : vector<8x512xf32> to vector<8x128xf32>
    %185 = math.tanh %184 : vector<8x128xf32>
    %186 = vector.extract_strided_slice %171 {offsets = [0, 384], sizes = [8, 128], strides = [1, 1]} : vector<8x512xf32> to vector<8x128xf32>
    %187 = arith.negf %186 : vector<8x128xf32>
    %188 = math.exp %187 : vector<8x128xf32>
    %cst_61 = arith.constant 1.000000e+00 : f32
    %189 = vector.broadcast %cst_61 : f32 to vector<8x128xf32>
    %190 = arith.addf %189, %188 : vector<8x128xf32>
    %191 = arith.divf %189, %190 : vector<8x128xf32>
    %192 = arith.mulf %183, %160 : vector<8x128xf32>
    %193 = arith.mulf %177, %185 : vector<8x128xf32>
    %194 = arith.addf %192, %193 : vector<8x128xf32>
    %195 = math.tanh %194 : vector<8x128xf32>
    %196 = arith.mulf %191, %195 : vector<8x128xf32>
    %197 = arith.index_cast %c3_i32 : i32 to index
    %c0_62 = arith.constant 0 : index
    %c0_63 = arith.constant 0 : index
    %198 = vector.load %arg11[%197, %c0_62, %c0_63] : memref<8x8x128xf32, #tpu.memory_space<vmem>>, vector<1x8x128xf32>
    %199 = vector.shape_cast %198 : vector<1x8x128xf32> to vector<8x128xf32>
    %200 = vector.shape_cast %196 : vector<8x128xf32> to vector<1x8x128xf32>
    tpu.vector_store %arg11[%197, %c0_62, %c0_63], %200 {strides = array<i32>} : memref<8x8x128xf32, #tpu.memory_space<vmem>>, vector<1x8x128xf32>,
    %c4_i32 = arith.constant 4 : i32
    %cst_64 = arith.constant dense<0.000000e+00> : vector<8x512xf32>
    %201 = tpu.matmul %196, %53, %cst_64 {dimension_numbers = #tpu.dot_dimension_numbers<[1], [0], [0], [1], [0, 0, 1, 1], [], []>} : vector<8x128xf32>, vector<128x512xf32>, vector<8x512xf32> -> vector<8x512xf32>
    %202 = arith.index_cast %c4_i32 : i32 to index
    %c0_65 = arith.constant 0 : index
    %c0_66 = arith.constant 0 : index
    %203 = vector.load %arg12[%202, %c0_65, %c0_66] : memref<8x8x512xf32, #tpu.memory_space<vmem>>, vector<1x8x512xf32>
    %204 = vector.shape_cast %203 : vector<1x8x512xf32> to vector<8x512xf32>
    %205 = arith.addf %201, %204 : vector<8x512xf32>
    %206 = vector.extract_strided_slice %205 {offsets = [0, 0], sizes = [8, 128], strides = [1, 1]} : vector<8x512xf32> to vector<8x128xf32>
    %207 = arith.negf %206 : vector<8x128xf32>
    %208 = math.exp %207 : vector<8x128xf32>
    %cst_67 = arith.constant 1.000000e+00 : f32
    %209 = vector.broadcast %cst_67 : f32 to vector<8x128xf32>
    %210 = arith.addf %209, %208 : vector<8x128xf32>
    %211 = arith.divf %209, %210 : vector<8x128xf32>
    %212 = vector.extract_strided_slice %205 {offsets = [0, 128], sizes = [8, 128], strides = [1, 1]} : vector<8x512xf32> to vector<8x128xf32>
    %213 = arith.negf %212 : vector<8x128xf32>
    %214 = math.exp %213 : vector<8x128xf32>
    %cst_68 = arith.constant 1.000000e+00 : f32
    %215 = vector.broadcast %cst_68 : f32 to vector<8x128xf32>
    %216 = arith.addf %215, %214 : vector<8x128xf32>
    %217 = arith.divf %215, %216 : vector<8x128xf32>
    %218 = vector.extract_strided_slice %205 {offsets = [0, 256], sizes = [8, 128], strides = [1, 1]} : vector<8x512xf32> to vector<8x128xf32>
    %219 = math.tanh %218 : vector<8x128xf32>
    %220 = vector.extract_strided_slice %205 {offsets = [0, 384], sizes = [8, 128], strides = [1, 1]} : vector<8x512xf32> to vector<8x128xf32>
    %221 = arith.negf %220 : vector<8x128xf32>
    %222 = math.exp %221 : vector<8x128xf32>
    %cst_69 = arith.constant 1.000000e+00 : f32
    %223 = vector.broadcast %cst_69 : f32 to vector<8x128xf32>
    %224 = arith.addf %223, %222 : vector<8x128xf32>
    %225 = arith.divf %223, %224 : vector<8x128xf32>
    %226 = arith.mulf %217, %194 : vector<8x128xf32>
    %227 = arith.mulf %211, %219 : vector<8x128xf32>
    %228 = arith.addf %226, %227 : vector<8x128xf32>
    %229 = math.tanh %228 : vector<8x128xf32>
    %230 = arith.mulf %225, %229 : vector<8x128xf32>
    %231 = arith.index_cast %c4_i32 : i32 to index
    %c0_70 = arith.constant 0 : index
    %c0_71 = arith.constant 0 : index
    %232 = vector.load %arg11[%231, %c0_70, %c0_71] : memref<8x8x128xf32, #tpu.memory_space<vmem>>, vector<1x8x128xf32>
    %233 = vector.shape_cast %232 : vector<1x8x128xf32> to vector<8x128xf32>
    %234 = vector.shape_cast %230 : vector<8x128xf32> to vector<1x8x128xf32>
    tpu.vector_store %arg11[%231, %c0_70, %c0_71], %234 {strides = array<i32>} : memref<8x8x128xf32, #tpu.memory_space<vmem>>, vector<1x8x128xf32>,
    %c5_i32 = arith.constant 5 : i32
    %cst_72 = arith.constant dense<0.000000e+00> : vector<8x512xf32>
    %235 = tpu.matmul %230, %53, %cst_72 {dimension_numbers = #tpu.dot_dimension_numbers<[1], [0], [0], [1], [0, 0, 1, 1], [], []>} : vector<8x128xf32>, vector<128x512xf32>, vector<8x512xf32> -> vector<8x512xf32>
    %236 = arith.index_cast %c5_i32 : i32 to index
    %c0_73 = arith.constant 0 : index
    %c0_74 = arith.constant 0 : index
    %237 = vector.load %arg12[%236, %c0_73, %c0_74] : memref<8x8x512xf32, #tpu.memory_space<vmem>>, vector<1x8x512xf32>
    %238 = vector.shape_cast %237 : vector<1x8x512xf32> to vector<8x512xf32>
    %239 = arith.addf %235, %238 : vector<8x512xf32>
    %240 = vector.extract_strided_slice %239 {offsets = [0, 0], sizes = [8, 128], strides = [1, 1]} : vector<8x512xf32> to vector<8x128xf32>
    %241 = arith.negf %240 : vector<8x128xf32>
    %242 = math.exp %241 : vector<8x128xf32>
    %cst_75 = arith.constant 1.000000e+00 : f32
    %243 = vector.broadcast %cst_75 : f32 to vector<8x128xf32>
    %244 = arith.addf %243, %242 : vector<8x128xf32>
    %245 = arith.divf %243, %244 : vector<8x128xf32>
    %246 = vector.extract_strided_slice %239 {offsets = [0, 128], sizes = [8, 128], strides = [1, 1]} : vector<8x512xf32> to vector<8x128xf32>
    %247 = arith.negf %246 : vector<8x128xf32>
    %248 = math.exp %247 : vector<8x128xf32>
    %cst_76 = arith.constant 1.000000e+00 : f32
    %249 = vector.broadcast %cst_76 : f32 to vector<8x128xf32>
    %250 = arith.addf %249, %248 : vector<8x128xf32>
    %251 = arith.divf %249, %250 : vector<8x128xf32>
    %252 = vector.extract_strided_slice %239 {offsets = [0, 256], sizes = [8, 128], strides = [1, 1]} : vector<8x512xf32> to vector<8x128xf32>
    %253 = math.tanh %252 : vector<8x128xf32>
    %254 = vector.extract_strided_slice %239 {offsets = [0, 384], sizes = [8, 128], strides = [1, 1]} : vector<8x512xf32> to vector<8x128xf32>
    %255 = arith.negf %254 : vector<8x128xf32>
    %256 = math.exp %255 : vector<8x128xf32>
    %cst_77 = arith.constant 1.000000e+00 : f32
    %257 = vector.broadcast %cst_77 : f32 to vector<8x128xf32>
    %258 = arith.addf %257, %256 : vector<8x128xf32>
    %259 = arith.divf %257, %258 : vector<8x128xf32>
    %260 = arith.mulf %251, %228 : vector<8x128xf32>
    %261 = arith.mulf %245, %253 : vector<8x128xf32>
    %262 = arith.addf %260, %261 : vector<8x128xf32>
    %263 = math.tanh %262 : vector<8x128xf32>
    %264 = arith.mulf %259, %263 : vector<8x128xf32>
    %265 = arith.index_cast %c5_i32 : i32 to index
    %c0_78 = arith.constant 0 : index
    %c0_79 = arith.constant 0 : index
    %266 = vector.load %arg11[%265, %c0_78, %c0_79] : memref<8x8x128xf32, #tpu.memory_space<vmem>>, vector<1x8x128xf32>
    %267 = vector.shape_cast %266 : vector<1x8x128xf32> to vector<8x128xf32>
    %268 = vector.shape_cast %264 : vector<8x128xf32> to vector<1x8x128xf32>
    tpu.vector_store %arg11[%265, %c0_78, %c0_79], %268 {strides = array<i32>} : memref<8x8x128xf32, #tpu.memory_space<vmem>>, vector<1x8x128xf32>,
    %c6_i32 = arith.constant 6 : i32
    %cst_80 = arith.constant dense<0.000000e+00> : vector<8x512xf32>
    %269 = tpu.matmul %264, %53, %cst_80 {dimension_numbers = #tpu.dot_dimension_numbers<[1], [0], [0], [1], [0, 0, 1, 1], [], []>} : vector<8x128xf32>, vector<128x512xf32>, vector<8x512xf32> -> vector<8x512xf32>
    %270 = arith.index_cast %c6_i32 : i32 to index
    %c0_81 = arith.constant 0 : index
    %c0_82 = arith.constant 0 : index
    %271 = vector.load %arg12[%270, %c0_81, %c0_82] : memref<8x8x512xf32, #tpu.memory_space<vmem>>, vector<1x8x512xf32>
    %272 = vector.shape_cast %271 : vector<1x8x512xf32> to vector<8x512xf32>
    %273 = arith.addf %269, %272 : vector<8x512xf32>
    %274 = vector.extract_strided_slice %273 {offsets = [0, 0], sizes = [8, 128], strides = [1, 1]} : vector<8x512xf32> to vector<8x128xf32>
    %275 = arith.negf %274 : vector<8x128xf32>
    %276 = math.exp %275 : vector<8x128xf32>
    %cst_83 = arith.constant 1.000000e+00 : f32
    %277 = vector.broadcast %cst_83 : f32 to vector<8x128xf32>
    %278 = arith.addf %277, %276 : vector<8x128xf32>
    %279 = arith.divf %277, %278 : vector<8x128xf32>
    %280 = vector.extract_strided_slice %273 {offsets = [0, 128], sizes = [8, 128], strides = [1, 1]} : vector<8x512xf32> to vector<8x128xf32>
    %281 = arith.negf %280 : vector<8x128xf32>
    %282 = math.exp %281 : vector<8x128xf32>
    %cst_84 = arith.constant 1.000000e+00 : f32
    %283 = vector.broadcast %cst_84 : f32 to vector<8x128xf32>
    %284 = arith.addf %283, %282 : vector<8x128xf32>
    %285 = arith.divf %283, %284 : vector<8x128xf32>
    %286 = vector.extract_strided_slice %273 {offsets = [0, 256], sizes = [8, 128], strides = [1, 1]} : vector<8x512xf32> to vector<8x128xf32>
    %287 = math.tanh %286 : vector<8x128xf32>
    %288 = vector.extract_strided_slice %273 {offsets = [0, 384], sizes = [8, 128], strides = [1, 1]} : vector<8x512xf32> to vector<8x128xf32>
    %289 = arith.negf %288 : vector<8x128xf32>
    %290 = math.exp %289 : vector<8x128xf32>
    %cst_85 = arith.constant 1.000000e+00 : f32
    %291 = vector.broadcast %cst_85 : f32 to vector<8x128xf32>
    %292 = arith.addf %291, %290 : vector<8x128xf32>
    %293 = arith.divf %291, %292 : vector<8x128xf32>
    %294 = arith.mulf %285, %262 : vector<8x128xf32>
    %295 = arith.mulf %279, %287 : vector<8x128xf32>
    %296 = arith.addf %294, %295 : vector<8x128xf32>
    %297 = math.tanh %296 : vector<8x128xf32>
    %298 = arith.mulf %293, %297 : vector<8x128xf32>
    %299 = arith.index_cast %c6_i32 : i32 to index
    %c0_86 = arith.constant 0 : index
    %c0_87 = arith.constant 0 : index
    %300 = vector.load %arg11[%299, %c0_86, %c0_87] : memref<8x8x128xf32, #tpu.memory_space<vmem>>, vector<1x8x128xf32>
    %301 = vector.shape_cast %300 : vector<1x8x128xf32> to vector<8x128xf32>
    %302 = vector.shape_cast %298 : vector<8x128xf32> to vector<1x8x128xf32>
    tpu.vector_store %arg11[%299, %c0_86, %c0_87], %302 {strides = array<i32>} : memref<8x8x128xf32, #tpu.memory_space<vmem>>, vector<1x8x128xf32>,
    %c7_i32 = arith.constant 7 : i32
    %cst_88 = arith.constant dense<0.000000e+00> : vector<8x512xf32>
    %303 = tpu.matmul %298, %53, %cst_88 {dimension_numbers = #tpu.dot_dimension_numbers<[1], [0], [0], [1], [0, 0, 1, 1], [], []>} : vector<8x128xf32>, vector<128x512xf32>, vector<8x512xf32> -> vector<8x512xf32>
    %304 = arith.index_cast %c7_i32 : i32 to index
    %c0_89 = arith.constant 0 : index
    %c0_90 = arith.constant 0 : index
    %305 = vector.load %arg12[%304, %c0_89, %c0_90] : memref<8x8x512xf32, #tpu.memory_space<vmem>>, vector<1x8x512xf32>
    %306 = vector.shape_cast %305 : vector<1x8x512xf32> to vector<8x512xf32>
    %307 = arith.addf %303, %306 : vector<8x512xf32>
    %308 = vector.extract_strided_slice %307 {offsets = [0, 0], sizes = [8, 128], strides = [1, 1]} : vector<8x512xf32> to vector<8x128xf32>
    %309 = arith.negf %308 : vector<8x128xf32>
    %310 = math.exp %309 : vector<8x128xf32>
    %cst_91 = arith.constant 1.000000e+00 : f32
    %311 = vector.broadcast %cst_91 : f32 to vector<8x128xf32>
    %312 = arith.addf %311, %310 : vector<8x128xf32>
    %313 = arith.divf %311, %312 : vector<8x128xf32>
    %314 = vector.extract_strided_slice %307 {offsets = [0, 128], sizes = [8, 128], strides = [1, 1]} : vector<8x512xf32> to vector<8x128xf32>
    %315 = arith.negf %314 : vector<8x128xf32>
    %316 = math.exp %315 : vector<8x128xf32>
    %cst_92 = arith.constant 1.000000e+00 : f32
    %317 = vector.broadcast %cst_92 : f32 to vector<8x128xf32>
    %318 = arith.addf %317, %316 : vector<8x128xf32>
    %319 = arith.divf %317, %318 : vector<8x128xf32>
    %320 = vector.extract_strided_slice %307 {offsets = [0, 256], sizes = [8, 128], strides = [1, 1]} : vector<8x512xf32> to vector<8x128xf32>
    %321 = math.tanh %320 : vector<8x128xf32>
    %322 = vector.extract_strided_slice %307 {offsets = [0, 384], sizes = [8, 128], strides = [1, 1]} : vector<8x512xf32> to vector<8x128xf32>
    %323 = arith.negf %322 : vector<8x128xf32>
    %324 = math.exp %323 : vector<8x128xf32>
    %cst_93 = arith.constant 1.000000e+00 : f32
    %325 = vector.broadcast %cst_93 : f32 to vector<8x128xf32>
    %326 = arith.addf %325, %324 : vector<8x128xf32>
    %327 = arith.divf %325, %326 : vector<8x128xf32>
    %328 = arith.mulf %319, %296 : vector<8x128xf32>
    %329 = arith.mulf %313, %321 : vector<8x128xf32>
    %330 = arith.addf %328, %329 : vector<8x128xf32>
    %331 = math.tanh %330 : vector<8x128xf32>
    %332 = arith.mulf %327, %331 : vector<8x128xf32>
    %333 = arith.index_cast %c7_i32 : i32 to index
    %c0_94 = arith.constant 0 : index
    %c0_95 = arith.constant 0 : index
    %334 = vector.load %arg11[%333, %c0_94, %c0_95] : memref<8x8x128xf32, #tpu.memory_space<vmem>>, vector<1x8x128xf32>
    %335 = vector.shape_cast %334 : vector<1x8x128xf32> to vector<8x128xf32>
    %336 = vector.shape_cast %332 : vector<8x128xf32> to vector<1x8x128xf32>
    tpu.vector_store %arg11[%333, %c0_94, %c0_95], %336 {strides = array<i32>} : memref<8x8x128xf32, #tpu.memory_space<vmem>>, vector<1x8x128xf32>,
    %c8_i32 = arith.constant 8 : i32
    %c0_96 = arith.constant 0 : index
    %c0_97 = arith.constant 0 : index
    %c0_98 = arith.constant 0 : index
    %337 = vector.load %arg8[%c0_96, %c0_97, %c0_98] : memref<2x8x128xf32, #tpu.memory_space<vmem>>, vector<1x8x128xf32>
    %338 = vector.shape_cast %337 : vector<1x8x128xf32> to vector<8x128xf32>
    %339 = vector.shape_cast %332 : vector<8x128xf32> to vector<1x8x128xf32>
    tpu.vector_store %arg8[%c0_96, %c0_97, %c0_98], %339 {strides = array<i32>} : memref<2x8x128xf32, #tpu.memory_space<vmem>>, vector<1x8x128xf32>,
    %c0_99 = arith.constant 0 : index
    %c0_100 = arith.constant 0 : index
    %c0_101 = arith.constant 0 : index
    %340 = vector.load %arg9[%c0_99, %c0_100, %c0_101] : memref<2x8x128xf32, #tpu.memory_space<vmem>>, vector<1x8x128xf32>
    %341 = vector.shape_cast %340 : vector<1x8x128xf32> to vector<8x128xf32>
    %342 = vector.shape_cast %330 : vector<8x128xf32> to vector<1x8x128xf32>
    tpu.vector_store %arg9[%c0_99, %c0_100, %c0_101], %342 {strides = array<i32>} : memref<2x8x128xf32, #tpu.memory_space<vmem>>, vector<1x8x128xf32>,
    %c1_102 = arith.constant 1 : index
    %c0_103 = arith.constant 0 : index
    %c0_104 = arith.constant 0 : index
    %343 = vector.load %arg2[%c1_102, %c0_103, %c0_104] : memref<2x128x512xf32, #tpu.memory_space<vmem>>, vector<1x128x512xf32>
    %344 = vector.shape_cast %343 : vector<1x128x512xf32> to vector<128x512xf32>
    %c1_105 = arith.constant 1 : index
    %c0_106 = arith.constant 0 : index
    %c0_107 = arith.constant 0 : index
    %345 = vector.load %arg3[%c1_105, %c0_106, %c0_107] : memref<2x128x512xf32, #tpu.memory_space<vmem>>, vector<1x128x512xf32>
    %346 = vector.shape_cast %345 : vector<1x128x512xf32> to vector<128x512xf32>
    %c1_108 = arith.constant 1 : index
    %c0_109 = arith.constant 0 : index
    %c0_110 = arith.constant 0 : index
    %347 = vector.load %arg4[%c1_108, %c0_109, %c0_110] : memref<2x1x512xf32, #tpu.memory_space<vmem>>, vector<1x1x512xf32>
    %348 = vector.shape_cast %347 : vector<1x1x512xf32> to vector<1x512xf32>
    %c0_111 = arith.constant 0 : index
    %c0_112 = arith.constant 0 : index
    %c0_113 = arith.constant 0 : index
    %349 = vector.load %arg11[%c0_111, %c0_112, %c0_113] : memref<8x8x128xf32, #tpu.memory_space<vmem>>, vector<8x8x128xf32>
    %350 = vector.shape_cast %349 : vector<8x8x128xf32> to vector<64x128xf32>
    %cst_114 = arith.constant dense<0.000000e+00> : vector<64x512xf32>
    %351 = tpu.matmul %350, %344, %cst_114 {dimension_numbers = #tpu.dot_dimension_numbers<[1], [0], [0], [1], [0, 0, 1, 1], [], []>} : vector<64x128xf32>, vector<128x512xf32>, vector<64x512xf32> -> vector<64x512xf32>
    %352 = vector.broadcast %348 : vector<1x512xf32> to vector<64x512xf32>
    %353 = arith.addf %351, %352 : vector<64x512xf32>
    %354 = vector.shape_cast %353 : vector<64x512xf32> to vector<8x8x512xf32>
    %c0_115 = arith.constant 0 : index
    %c0_116 = arith.constant 0 : index
    %c0_117 = arith.constant 0 : index
    %355 = vector.load %arg12[%c0_115, %c0_116, %c0_117] : memref<8x8x512xf32, #tpu.memory_space<vmem>>, vector<8x8x512xf32>
    tpu.vector_store %arg12[%c0_115, %c0_116, %c0_117], %354 {strides = array<i32>} : memref<8x8x512xf32, #tpu.memory_space<vmem>>, vector<8x8x512xf32>,
    %cst_118 = arith.constant 0.000000e+00 : f32
    %356 = vector.broadcast %cst_118 : f32 to vector<8x128xf32>
    %cst_119 = arith.constant 0.000000e+00 : f32
    %357 = vector.broadcast %cst_119 : f32 to vector<8x128xf32>
    %c0_i32_120 = arith.constant 0 : i32
    %cst_121 = arith.constant dense<0.000000e+00> : vector<8x512xf32>
    %358 = tpu.matmul %356, %346, %cst_121 {dimension_numbers = #tpu.dot_dimension_numbers<[1], [0], [0], [1], [0, 0, 1, 1], [], []>} : vector<8x128xf32>, vector<128x512xf32>, vector<8x512xf32> -> vector<8x512xf32>
    %359 = arith.index_cast %c0_i32_120 : i32 to index
    %c0_122 = arith.constant 0 : index
    %c0_123 = arith.constant 0 : index
    %360 = vector.load %arg12[%359, %c0_122, %c0_123] : memref<8x8x512xf32, #tpu.memory_space<vmem>>, vector<1x8x512xf32>
    %361 = vector.shape_cast %360 : vector<1x8x512xf32> to vector<8x512xf32>
    %362 = arith.addf %358, %361 : vector<8x512xf32>
    %363 = vector.extract_strided_slice %362 {offsets = [0, 0], sizes = [8, 128], strides = [1, 1]} : vector<8x512xf32> to vector<8x128xf32>
    %364 = arith.negf %363 : vector<8x128xf32>
    %365 = math.exp %364 : vector<8x128xf32>
    %cst_124 = arith.constant 1.000000e+00 : f32
    %366 = vector.broadcast %cst_124 : f32 to vector<8x128xf32>
    %367 = arith.addf %366, %365 : vector<8x128xf32>
    %368 = arith.divf %366, %367 : vector<8x128xf32>
    %369 = vector.extract_strided_slice %362 {offsets = [0, 128], sizes = [8, 128], strides = [1, 1]} : vector<8x512xf32> to vector<8x128xf32>
    %370 = arith.negf %369 : vector<8x128xf32>
    %371 = math.exp %370 : vector<8x128xf32>
    %cst_125 = arith.constant 1.000000e+00 : f32
    %372 = vector.broadcast %cst_125 : f32 to vector<8x128xf32>
    %373 = arith.addf %372, %371 : vector<8x128xf32>
    %374 = arith.divf %372, %373 : vector<8x128xf32>
    %375 = vector.extract_strided_slice %362 {offsets = [0, 256], sizes = [8, 128], strides = [1, 1]} : vector<8x512xf32> to vector<8x128xf32>
    %376 = math.tanh %375 : vector<8x128xf32>
    %377 = vector.extract_strided_slice %362 {offsets = [0, 384], sizes = [8, 128], strides = [1, 1]} : vector<8x512xf32> to vector<8x128xf32>
    %378 = arith.negf %377 : vector<8x128xf32>
    %379 = math.exp %378 : vector<8x128xf32>
    %cst_126 = arith.constant 1.000000e+00 : f32
    %380 = vector.broadcast %cst_126 : f32 to vector<8x128xf32>
    %381 = arith.addf %380, %379 : vector<8x128xf32>
    %382 = arith.divf %380, %381 : vector<8x128xf32>
    %383 = arith.mulf %374, %357 : vector<8x128xf32>
    %384 = arith.mulf %368, %376 : vector<8x128xf32>
    %385 = arith.addf %383, %384 : vector<8x128xf32>
    %386 = math.tanh %385 : vector<8x128xf32>
    %387 = arith.mulf %382, %386 : vector<8x128xf32>
    %388 = arith.index_cast %c0_i32_120 : i32 to index
    %c0_127 = arith.constant 0 : index
    %c0_128 = arith.constant 0 : index
    %389 = vector.load %arg10[%388, %c0_127, %c0_128] : memref<8x8x128xf32, #tpu.memory_space<vmem>>, vector<1x8x128xf32>
    %390 = vector.shape_cast %389 : vector<1x8x128xf32> to vector<8x128xf32>
    %391 = vector.shape_cast %387 : vector<8x128xf32> to vector<1x8x128xf32>
    tpu.vector_store %arg10[%388, %c0_127, %c0_128], %391 {strides = array<i32>} : memref<8x8x128xf32, #tpu.memory_space<vmem>>, vector<1x8x128xf32>,
    %c1_i32_129 = arith.constant 1 : i32
    %cst_130 = arith.constant dense<0.000000e+00> : vector<8x512xf32>
    %392 = tpu.matmul %387, %346, %cst_130 {dimension_numbers = #tpu.dot_dimension_numbers<[1], [0], [0], [1], [0, 0, 1, 1], [], []>} : vector<8x128xf32>, vector<128x512xf32>, vector<8x512xf32> -> vector<8x512xf32>
    %393 = arith.index_cast %c1_i32_129 : i32 to index
    %c0_131 = arith.constant 0 : index
    %c0_132 = arith.constant 0 : index
    %394 = vector.load %arg12[%393, %c0_131, %c0_132] : memref<8x8x512xf32, #tpu.memory_space<vmem>>, vector<1x8x512xf32>
    %395 = vector.shape_cast %394 : vector<1x8x512xf32> to vector<8x512xf32>
    %396 = arith.addf %392, %395 : vector<8x512xf32>
    %397 = vector.extract_strided_slice %396 {offsets = [0, 0], sizes = [8, 128], strides = [1, 1]} : vector<8x512xf32> to vector<8x128xf32>
    %398 = arith.negf %397 : vector<8x128xf32>
    %399 = math.exp %398 : vector<8x128xf32>
    %cst_133 = arith.constant 1.000000e+00 : f32
    %400 = vector.broadcast %cst_133 : f32 to vector<8x128xf32>
    %401 = arith.addf %400, %399 : vector<8x128xf32>
    %402 = arith.divf %400, %401 : vector<8x128xf32>
    %403 = vector.extract_strided_slice %396 {offsets = [0, 128], sizes = [8, 128], strides = [1, 1]} : vector<8x512xf32> to vector<8x128xf32>
    %404 = arith.negf %403 : vector<8x128xf32>
    %405 = math.exp %404 : vector<8x128xf32>
    %cst_134 = arith.constant 1.000000e+00 : f32
    %406 = vector.broadcast %cst_134 : f32 to vector<8x128xf32>
    %407 = arith.addf %406, %405 : vector<8x128xf32>
    %408 = arith.divf %406, %407 : vector<8x128xf32>
    %409 = vector.extract_strided_slice %396 {offsets = [0, 256], sizes = [8, 128], strides = [1, 1]} : vector<8x512xf32> to vector<8x128xf32>
    %410 = math.tanh %409 : vector<8x128xf32>
    %411 = vector.extract_strided_slice %396 {offsets = [0, 384], sizes = [8, 128], strides = [1, 1]} : vector<8x512xf32> to vector<8x128xf32>
    %412 = arith.negf %411 : vector<8x128xf32>
    %413 = math.exp %412 : vector<8x128xf32>
    %cst_135 = arith.constant 1.000000e+00 : f32
    %414 = vector.broadcast %cst_135 : f32 to vector<8x128xf32>
    %415 = arith.addf %414, %413 : vector<8x128xf32>
    %416 = arith.divf %414, %415 : vector<8x128xf32>
    %417 = arith.mulf %408, %385 : vector<8x128xf32>
    %418 = arith.mulf %402, %410 : vector<8x128xf32>
    %419 = arith.addf %417, %418 : vector<8x128xf32>
    %420 = math.tanh %419 : vector<8x128xf32>
    %421 = arith.mulf %416, %420 : vector<8x128xf32>
    %422 = arith.index_cast %c1_i32_129 : i32 to index
    %c0_136 = arith.constant 0 : index
    %c0_137 = arith.constant 0 : index
    %423 = vector.load %arg10[%422, %c0_136, %c0_137] : memref<8x8x128xf32, #tpu.memory_space<vmem>>, vector<1x8x128xf32>
    %424 = vector.shape_cast %423 : vector<1x8x128xf32> to vector<8x128xf32>
    %425 = vector.shape_cast %421 : vector<8x128xf32> to vector<1x8x128xf32>
    tpu.vector_store %arg10[%422, %c0_136, %c0_137], %425 {strides = array<i32>} : memref<8x8x128xf32, #tpu.memory_space<vmem>>, vector<1x8x128xf32>,
    %c2_i32_138 = arith.constant 2 : i32
    %cst_139 = arith.constant dense<0.000000e+00> : vector<8x512xf32>
    %426 = tpu.matmul %421, %346, %cst_139 {dimension_numbers = #tpu.dot_dimension_numbers<[1], [0], [0], [1], [0, 0, 1, 1], [], []>} : vector<8x128xf32>, vector<128x512xf32>, vector<8x512xf32> -> vector<8x512xf32>
    %427 = arith.index_cast %c2_i32_138 : i32 to index
    %c0_140 = arith.constant 0 : index
    %c0_141 = arith.constant 0 : index
    %428 = vector.load %arg12[%427, %c0_140, %c0_141] : memref<8x8x512xf32, #tpu.memory_space<vmem>>, vector<1x8x512xf32>
    %429 = vector.shape_cast %428 : vector<1x8x512xf32> to vector<8x512xf32>
    %430 = arith.addf %426, %429 : vector<8x512xf32>
    %431 = vector.extract_strided_slice %430 {offsets = [0, 0], sizes = [8, 128], strides = [1, 1]} : vector<8x512xf32> to vector<8x128xf32>
    %432 = arith.negf %431 : vector<8x128xf32>
    %433 = math.exp %432 : vector<8x128xf32>
    %cst_142 = arith.constant 1.000000e+00 : f32
    %434 = vector.broadcast %cst_142 : f32 to vector<8x128xf32>
    %435 = arith.addf %434, %433 : vector<8x128xf32>
    %436 = arith.divf %434, %435 : vector<8x128xf32>
    %437 = vector.extract_strided_slice %430 {offsets = [0, 128], sizes = [8, 128], strides = [1, 1]} : vector<8x512xf32> to vector<8x128xf32>
    %438 = arith.negf %437 : vector<8x128xf32>
    %439 = math.exp %438 : vector<8x128xf32>
    %cst_143 = arith.constant 1.000000e+00 : f32
    %440 = vector.broadcast %cst_143 : f32 to vector<8x128xf32>
    %441 = arith.addf %440, %439 : vector<8x128xf32>
    %442 = arith.divf %440, %441 : vector<8x128xf32>
    %443 = vector.extract_strided_slice %430 {offsets = [0, 256], sizes = [8, 128], strides = [1, 1]} : vector<8x512xf32> to vector<8x128xf32>
    %444 = math.tanh %443 : vector<8x128xf32>
    %445 = vector.extract_strided_slice %430 {offsets = [0, 384], sizes = [8, 128], strides = [1, 1]} : vector<8x512xf32> to vector<8x128xf32>
    %446 = arith.negf %445 : vector<8x128xf32>
    %447 = math.exp %446 : vector<8x128xf32>
    %cst_144 = arith.constant 1.000000e+00 : f32
    %448 = vector.broadcast %cst_144 : f32 to vector<8x128xf32>
    %449 = arith.addf %448, %447 : vector<8x128xf32>
    %450 = arith.divf %448, %449 : vector<8x128xf32>
    %451 = arith.mulf %442, %419 : vector<8x128xf32>
    %452 = arith.mulf %436, %444 : vector<8x128xf32>
    %453 = arith.addf %451, %452 : vector<8x128xf32>
    %454 = math.tanh %453 : vector<8x128xf32>
    %455 = arith.mulf %450, %454 : vector<8x128xf32>
    %456 = arith.index_cast %c2_i32_138 : i32 to index
    %c0_145 = arith.constant 0 : index
    %c0_146 = arith.constant 0 : index
    %457 = vector.load %arg10[%456, %c0_145, %c0_146] : memref<8x8x128xf32, #tpu.memory_space<vmem>>, vector<1x8x128xf32>
    %458 = vector.shape_cast %457 : vector<1x8x128xf32> to vector<8x128xf32>
    %459 = vector.shape_cast %455 : vector<8x128xf32> to vector<1x8x128xf32>
    tpu.vector_store %arg10[%456, %c0_145, %c0_146], %459 {strides = array<i32>} : memref<8x8x128xf32, #tpu.memory_space<vmem>>, vector<1x8x128xf32>,
    %c3_i32_147 = arith.constant 3 : i32
    %cst_148 = arith.constant dense<0.000000e+00> : vector<8x512xf32>
    %460 = tpu.matmul %455, %346, %cst_148 {dimension_numbers = #tpu.dot_dimension_numbers<[1], [0], [0], [1], [0, 0, 1, 1], [], []>} : vector<8x128xf32>, vector<128x512xf32>, vector<8x512xf32> -> vector<8x512xf32>
    %461 = arith.index_cast %c3_i32_147 : i32 to index
    %c0_149 = arith.constant 0 : index
    %c0_150 = arith.constant 0 : index
    %462 = vector.load %arg12[%461, %c0_149, %c0_150] : memref<8x8x512xf32, #tpu.memory_space<vmem>>, vector<1x8x512xf32>
    %463 = vector.shape_cast %462 : vector<1x8x512xf32> to vector<8x512xf32>
    %464 = arith.addf %460, %463 : vector<8x512xf32>
    %465 = vector.extract_strided_slice %464 {offsets = [0, 0], sizes = [8, 128], strides = [1, 1]} : vector<8x512xf32> to vector<8x128xf32>
    %466 = arith.negf %465 : vector<8x128xf32>
    %467 = math.exp %466 : vector<8x128xf32>
    %cst_151 = arith.constant 1.000000e+00 : f32
    %468 = vector.broadcast %cst_151 : f32 to vector<8x128xf32>
    %469 = arith.addf %468, %467 : vector<8x128xf32>
    %470 = arith.divf %468, %469 : vector<8x128xf32>
    %471 = vector.extract_strided_slice %464 {offsets = [0, 128], sizes = [8, 128], strides = [1, 1]} : vector<8x512xf32> to vector<8x128xf32>
    %472 = arith.negf %471 : vector<8x128xf32>
    %473 = math.exp %472 : vector<8x128xf32>
    %cst_152 = arith.constant 1.000000e+00 : f32
    %474 = vector.broadcast %cst_152 : f32 to vector<8x128xf32>
    %475 = arith.addf %474, %473 : vector<8x128xf32>
    %476 = arith.divf %474, %475 : vector<8x128xf32>
    %477 = vector.extract_strided_slice %464 {offsets = [0, 256], sizes = [8, 128], strides = [1, 1]} : vector<8x512xf32> to vector<8x128xf32>
    %478 = math.tanh %477 : vector<8x128xf32>
    %479 = vector.extract_strided_slice %464 {offsets = [0, 384], sizes = [8, 128], strides = [1, 1]} : vector<8x512xf32> to vector<8x128xf32>
    %480 = arith.negf %479 : vector<8x128xf32>
    %481 = math.exp %480 : vector<8x128xf32>
    %cst_153 = arith.constant 1.000000e+00 : f32
    %482 = vector.broadcast %cst_153 : f32 to vector<8x128xf32>
    %483 = arith.addf %482, %481 : vector<8x128xf32>
    %484 = arith.divf %482, %483 : vector<8x128xf32>
    %485 = arith.mulf %476, %453 : vector<8x128xf32>
    %486 = arith.mulf %470, %478 : vector<8x128xf32>
    %487 = arith.addf %485, %486 : vector<8x128xf32>
    %488 = math.tanh %487 : vector<8x128xf32>
    %489 = arith.mulf %484, %488 : vector<8x128xf32>
    %490 = arith.index_cast %c3_i32_147 : i32 to index
    %c0_154 = arith.constant 0 : index
    %c0_155 = arith.constant 0 : index
    %491 = vector.load %arg10[%490, %c0_154, %c0_155] : memref<8x8x128xf32, #tpu.memory_space<vmem>>, vector<1x8x128xf32>
    %492 = vector.shape_cast %491 : vector<1x8x128xf32> to vector<8x128xf32>
    %493 = vector.shape_cast %489 : vector<8x128xf32> to vector<1x8x128xf32>
    tpu.vector_store %arg10[%490, %c0_154, %c0_155], %493 {strides = array<i32>} : memref<8x8x128xf32, #tpu.memory_space<vmem>>, vector<1x8x128xf32>,
    %c4_i32_156 = arith.constant 4 : i32
    %cst_157 = arith.constant dense<0.000000e+00> : vector<8x512xf32>
    %494 = tpu.matmul %489, %346, %cst_157 {dimension_numbers = #tpu.dot_dimension_numbers<[1], [0], [0], [1], [0, 0, 1, 1], [], []>} : vector<8x128xf32>, vector<128x512xf32>, vector<8x512xf32> -> vector<8x512xf32>
    %495 = arith.index_cast %c4_i32_156 : i32 to index
    %c0_158 = arith.constant 0 : index
    %c0_159 = arith.constant 0 : index
    %496 = vector.load %arg12[%495, %c0_158, %c0_159] : memref<8x8x512xf32, #tpu.memory_space<vmem>>, vector<1x8x512xf32>
    %497 = vector.shape_cast %496 : vector<1x8x512xf32> to vector<8x512xf32>
    %498 = arith.addf %494, %497 : vector<8x512xf32>
    %499 = vector.extract_strided_slice %498 {offsets = [0, 0], sizes = [8, 128], strides = [1, 1]} : vector<8x512xf32> to vector<8x128xf32>
    %500 = arith.negf %499 : vector<8x128xf32>
    %501 = math.exp %500 : vector<8x128xf32>
    %cst_160 = arith.constant 1.000000e+00 : f32
    %502 = vector.broadcast %cst_160 : f32 to vector<8x128xf32>
    %503 = arith.addf %502, %501 : vector<8x128xf32>
    %504 = arith.divf %502, %503 : vector<8x128xf32>
    %505 = vector.extract_strided_slice %498 {offsets = [0, 128], sizes = [8, 128], strides = [1, 1]} : vector<8x512xf32> to vector<8x128xf32>
    %506 = arith.negf %505 : vector<8x128xf32>
    %507 = math.exp %506 : vector<8x128xf32>
    %cst_161 = arith.constant 1.000000e+00 : f32
    %508 = vector.broadcast %cst_161 : f32 to vector<8x128xf32>
    %509 = arith.addf %508, %507 : vector<8x128xf32>
    %510 = arith.divf %508, %509 : vector<8x128xf32>
    %511 = vector.extract_strided_slice %498 {offsets = [0, 256], sizes = [8, 128], strides = [1, 1]} : vector<8x512xf32> to vector<8x128xf32>
    %512 = math.tanh %511 : vector<8x128xf32>
    %513 = vector.extract_strided_slice %498 {offsets = [0, 384], sizes = [8, 128], strides = [1, 1]} : vector<8x512xf32> to vector<8x128xf32>
    %514 = arith.negf %513 : vector<8x128xf32>
    %515 = math.exp %514 : vector<8x128xf32>
    %cst_162 = arith.constant 1.000000e+00 : f32
    %516 = vector.broadcast %cst_162 : f32 to vector<8x128xf32>
    %517 = arith.addf %516, %515 : vector<8x128xf32>
    %518 = arith.divf %516, %517 : vector<8x128xf32>
    %519 = arith.mulf %510, %487 : vector<8x128xf32>
    %520 = arith.mulf %504, %512 : vector<8x128xf32>
    %521 = arith.addf %519, %520 : vector<8x128xf32>
    %522 = math.tanh %521 : vector<8x128xf32>
    %523 = arith.mulf %518, %522 : vector<8x128xf32>
    %524 = arith.index_cast %c4_i32_156 : i32 to index
    %c0_163 = arith.constant 0 : index
    %c0_164 = arith.constant 0 : index
    %525 = vector.load %arg10[%524, %c0_163, %c0_164] : memref<8x8x128xf32, #tpu.memory_space<vmem>>, vector<1x8x128xf32>
    %526 = vector.shape_cast %525 : vector<1x8x128xf32> to vector<8x128xf32>
    %527 = vector.shape_cast %523 : vector<8x128xf32> to vector<1x8x128xf32>
    tpu.vector_store %arg10[%524, %c0_163, %c0_164], %527 {strides = array<i32>} : memref<8x8x128xf32, #tpu.memory_space<vmem>>, vector<1x8x128xf32>,
    %c5_i32_165 = arith.constant 5 : i32
    %cst_166 = arith.constant dense<0.000000e+00> : vector<8x512xf32>
    %528 = tpu.matmul %523, %346, %cst_166 {dimension_numbers = #tpu.dot_dimension_numbers<[1], [0], [0], [1], [0, 0, 1, 1], [], []>} : vector<8x128xf32>, vector<128x512xf32>, vector<8x512xf32> -> vector<8x512xf32>
    %529 = arith.index_cast %c5_i32_165 : i32 to index
    %c0_167 = arith.constant 0 : index
    %c0_168 = arith.constant 0 : index
    %530 = vector.load %arg12[%529, %c0_167, %c0_168] : memref<8x8x512xf32, #tpu.memory_space<vmem>>, vector<1x8x512xf32>
    %531 = vector.shape_cast %530 : vector<1x8x512xf32> to vector<8x512xf32>
    %532 = arith.addf %528, %531 : vector<8x512xf32>
    %533 = vector.extract_strided_slice %532 {offsets = [0, 0], sizes = [8, 128], strides = [1, 1]} : vector<8x512xf32> to vector<8x128xf32>
    %534 = arith.negf %533 : vector<8x128xf32>
    %535 = math.exp %534 : vector<8x128xf32>
    %cst_169 = arith.constant 1.000000e+00 : f32
    %536 = vector.broadcast %cst_169 : f32 to vector<8x128xf32>
    %537 = arith.addf %536, %535 : vector<8x128xf32>
    %538 = arith.divf %536, %537 : vector<8x128xf32>
    %539 = vector.extract_strided_slice %532 {offsets = [0, 128], sizes = [8, 128], strides = [1, 1]} : vector<8x512xf32> to vector<8x128xf32>
    %540 = arith.negf %539 : vector<8x128xf32>
    %541 = math.exp %540 : vector<8x128xf32>
    %cst_170 = arith.constant 1.000000e+00 : f32
    %542 = vector.broadcast %cst_170 : f32 to vector<8x128xf32>
    %543 = arith.addf %542, %541 : vector<8x128xf32>
    %544 = arith.divf %542, %543 : vector<8x128xf32>
    %545 = vector.extract_strided_slice %532 {offsets = [0, 256], sizes = [8, 128], strides = [1, 1]} : vector<8x512xf32> to vector<8x128xf32>
    %546 = math.tanh %545 : vector<8x128xf32>
    %547 = vector.extract_strided_slice %532 {offsets = [0, 384], sizes = [8, 128], strides = [1, 1]} : vector<8x512xf32> to vector<8x128xf32>
    %548 = arith.negf %547 : vector<8x128xf32>
    %549 = math.exp %548 : vector<8x128xf32>
    %cst_171 = arith.constant 1.000000e+00 : f32
    %550 = vector.broadcast %cst_171 : f32 to vector<8x128xf32>
    %551 = arith.addf %550, %549 : vector<8x128xf32>
    %552 = arith.divf %550, %551 : vector<8x128xf32>
    %553 = arith.mulf %544, %521 : vector<8x128xf32>
    %554 = arith.mulf %538, %546 : vector<8x128xf32>
    %555 = arith.addf %553, %554 : vector<8x128xf32>
    %556 = math.tanh %555 : vector<8x128xf32>
    %557 = arith.mulf %552, %556 : vector<8x128xf32>
    %558 = arith.index_cast %c5_i32_165 : i32 to index
    %c0_172 = arith.constant 0 : index
    %c0_173 = arith.constant 0 : index
    %559 = vector.load %arg10[%558, %c0_172, %c0_173] : memref<8x8x128xf32, #tpu.memory_space<vmem>>, vector<1x8x128xf32>
    %560 = vector.shape_cast %559 : vector<1x8x128xf32> to vector<8x128xf32>
    %561 = vector.shape_cast %557 : vector<8x128xf32> to vector<1x8x128xf32>
    tpu.vector_store %arg10[%558, %c0_172, %c0_173], %561 {strides = array<i32>} : memref<8x8x128xf32, #tpu.memory_space<vmem>>, vector<1x8x128xf32>,
    %c6_i32_174 = arith.constant 6 : i32
    %cst_175 = arith.constant dense<0.000000e+00> : vector<8x512xf32>
    %562 = tpu.matmul %557, %346, %cst_175 {dimension_numbers = #tpu.dot_dimension_numbers<[1], [0], [0], [1], [0, 0, 1, 1], [], []>} : vector<8x128xf32>, vector<128x512xf32>, vector<8x512xf32> -> vector<8x512xf32>
    %563 = arith.index_cast %c6_i32_174 : i32 to index
    %c0_176 = arith.constant 0 : index
    %c0_177 = arith.constant 0 : index
    %564 = vector.load %arg12[%563, %c0_176, %c0_177] : memref<8x8x512xf32, #tpu.memory_space<vmem>>, vector<1x8x512xf32>
    %565 = vector.shape_cast %564 : vector<1x8x512xf32> to vector<8x512xf32>
    %566 = arith.addf %562, %565 : vector<8x512xf32>
    %567 = vector.extract_strided_slice %566 {offsets = [0, 0], sizes = [8, 128], strides = [1, 1]} : vector<8x512xf32> to vector<8x128xf32>
    %568 = arith.negf %567 : vector<8x128xf32>
    %569 = math.exp %568 : vector<8x128xf32>
    %cst_178 = arith.constant 1.000000e+00 : f32
    %570 = vector.broadcast %cst_178 : f32 to vector<8x128xf32>
    %571 = arith.addf %570, %569 : vector<8x128xf32>
    %572 = arith.divf %570, %571 : vector<8x128xf32>
    %573 = vector.extract_strided_slice %566 {offsets = [0, 128], sizes = [8, 128], strides = [1, 1]} : vector<8x512xf32> to vector<8x128xf32>
    %574 = arith.negf %573 : vector<8x128xf32>
    %575 = math.exp %574 : vector<8x128xf32>
    %cst_179 = arith.constant 1.000000e+00 : f32
    %576 = vector.broadcast %cst_179 : f32 to vector<8x128xf32>
    %577 = arith.addf %576, %575 : vector<8x128xf32>
    %578 = arith.divf %576, %577 : vector<8x128xf32>
    %579 = vector.extract_strided_slice %566 {offsets = [0, 256], sizes = [8, 128], strides = [1, 1]} : vector<8x512xf32> to vector<8x128xf32>
    %580 = math.tanh %579 : vector<8x128xf32>
    %581 = vector.extract_strided_slice %566 {offsets = [0, 384], sizes = [8, 128], strides = [1, 1]} : vector<8x512xf32> to vector<8x128xf32>
    %582 = arith.negf %581 : vector<8x128xf32>
    %583 = math.exp %582 : vector<8x128xf32>
    %cst_180 = arith.constant 1.000000e+00 : f32
    %584 = vector.broadcast %cst_180 : f32 to vector<8x128xf32>
    %585 = arith.addf %584, %583 : vector<8x128xf32>
    %586 = arith.divf %584, %585 : vector<8x128xf32>
    %587 = arith.mulf %578, %555 : vector<8x128xf32>
    %588 = arith.mulf %572, %580 : vector<8x128xf32>
    %589 = arith.addf %587, %588 : vector<8x128xf32>
    %590 = math.tanh %589 : vector<8x128xf32>
    %591 = arith.mulf %586, %590 : vector<8x128xf32>
    %592 = arith.index_cast %c6_i32_174 : i32 to index
    %c0_181 = arith.constant 0 : index
    %c0_182 = arith.constant 0 : index
    %593 = vector.load %arg10[%592, %c0_181, %c0_182] : memref<8x8x128xf32, #tpu.memory_space<vmem>>, vector<1x8x128xf32>
    %594 = vector.shape_cast %593 : vector<1x8x128xf32> to vector<8x128xf32>
    %595 = vector.shape_cast %591 : vector<8x128xf32> to vector<1x8x128xf32>
    tpu.vector_store %arg10[%592, %c0_181, %c0_182], %595 {strides = array<i32>} : memref<8x8x128xf32, #tpu.memory_space<vmem>>, vector<1x8x128xf32>,
    %c7_i32_183 = arith.constant 7 : i32
    %cst_184 = arith.constant dense<0.000000e+00> : vector<8x512xf32>
    %596 = tpu.matmul %591, %346, %cst_184 {dimension_numbers = #tpu.dot_dimension_numbers<[1], [0], [0], [1], [0, 0, 1, 1], [], []>} : vector<8x128xf32>, vector<128x512xf32>, vector<8x512xf32> -> vector<8x512xf32>
    %597 = arith.index_cast %c7_i32_183 : i32 to index
    %c0_185 = arith.constant 0 : index
    %c0_186 = arith.constant 0 : index
    %598 = vector.load %arg12[%597, %c0_185, %c0_186] : memref<8x8x512xf32, #tpu.memory_space<vmem>>, vector<1x8x512xf32>
    %599 = vector.shape_cast %598 : vector<1x8x512xf32> to vector<8x512xf32>
    %600 = arith.addf %596, %599 : vector<8x512xf32>
    %601 = vector.extract_strided_slice %600 {offsets = [0, 0], sizes = [8, 128], strides = [1, 1]} : vector<8x512xf32> to vector<8x128xf32>
    %602 = arith.negf %601 : vector<8x128xf32>
    %603 = math.exp %602 : vector<8x128xf32>
    %cst_187 = arith.constant 1.000000e+00 : f32
    %604 = vector.broadcast %cst_187 : f32 to vector<8x128xf32>
    %605 = arith.addf %604, %603 : vector<8x128xf32>
    %606 = arith.divf %604, %605 : vector<8x128xf32>
    %607 = vector.extract_strided_slice %600 {offsets = [0, 128], sizes = [8, 128], strides = [1, 1]} : vector<8x512xf32> to vector<8x128xf32>
    %608 = arith.negf %607 : vector<8x128xf32>
    %609 = math.exp %608 : vector<8x128xf32>
    %cst_188 = arith.constant 1.000000e+00 : f32
    %610 = vector.broadcast %cst_188 : f32 to vector<8x128xf32>
    %611 = arith.addf %610, %609 : vector<8x128xf32>
    %612 = arith.divf %610, %611 : vector<8x128xf32>
    %613 = vector.extract_strided_slice %600 {offsets = [0, 256], sizes = [8, 128], strides = [1, 1]} : vector<8x512xf32> to vector<8x128xf32>
    %614 = math.tanh %613 : vector<8x128xf32>
    %615 = vector.extract_strided_slice %600 {offsets = [0, 384], sizes = [8, 128], strides = [1, 1]} : vector<8x512xf32> to vector<8x128xf32>
    %616 = arith.negf %615 : vector<8x128xf32>
    %617 = math.exp %616 : vector<8x128xf32>
    %cst_189 = arith.constant 1.000000e+00 : f32
    %618 = vector.broadcast %cst_189 : f32 to vector<8x128xf32>
    %619 = arith.addf %618, %617 : vector<8x128xf32>
    %620 = arith.divf %618, %619 : vector<8x128xf32>
    %621 = arith.mulf %612, %589 : vector<8x128xf32>
    %622 = arith.mulf %606, %614 : vector<8x128xf32>
    %623 = arith.addf %621, %622 : vector<8x128xf32>
    %624 = math.tanh %623 : vector<8x128xf32>
    %625 = arith.mulf %620, %624 : vector<8x128xf32>
    %626 = arith.index_cast %c7_i32_183 : i32 to index
    %c0_190 = arith.constant 0 : index
    %c0_191 = arith.constant 0 : index
    %627 = vector.load %arg10[%626, %c0_190, %c0_191] : memref<8x8x128xf32, #tpu.memory_space<vmem>>, vector<1x8x128xf32>
    %628 = vector.shape_cast %627 : vector<1x8x128xf32> to vector<8x128xf32>
    %629 = vector.shape_cast %625 : vector<8x128xf32> to vector<1x8x128xf32>
    tpu.vector_store %arg10[%626, %c0_190, %c0_191], %629 {strides = array<i32>} : memref<8x8x128xf32, #tpu.memory_space<vmem>>, vector<1x8x128xf32>,
    %c8_i32_192 = arith.constant 8 : i32
    %c1_193 = arith.constant 1 : index
    %c0_194 = arith.constant 0 : index
    %c0_195 = arith.constant 0 : index
    %630 = vector.load %arg8[%c1_193, %c0_194, %c0_195] : memref<2x8x128xf32, #tpu.memory_space<vmem>>, vector<1x8x128xf32>
    %631 = vector.shape_cast %630 : vector<1x8x128xf32> to vector<8x128xf32>
    %632 = vector.shape_cast %625 : vector<8x128xf32> to vector<1x8x128xf32>
    tpu.vector_store %arg8[%c1_193, %c0_194, %c0_195], %632 {strides = array<i32>} : memref<2x8x128xf32, #tpu.memory_space<vmem>>, vector<1x8x128xf32>,
    %c1_196 = arith.constant 1 : index
    %c0_197 = arith.constant 0 : index
    %c0_198 = arith.constant 0 : index
    %633 = vector.load %arg9[%c1_196, %c0_197, %c0_198] : memref<2x8x128xf32, #tpu.memory_space<vmem>>, vector<1x8x128xf32>
    %634 = vector.shape_cast %633 : vector<1x8x128xf32> to vector<8x128xf32>
    %635 = vector.shape_cast %623 : vector<8x128xf32> to vector<1x8x128xf32>
    tpu.vector_store %arg9[%c1_196, %c0_197, %c0_198], %635 {strides = array<i32>} : memref<2x8x128xf32, #tpu.memory_space<vmem>>, vector<1x8x128xf32>,
    %c0_199 = arith.constant 0 : index
    %c0_200 = arith.constant 0 : index
    %c0_201 = arith.constant 0 : index
    %636 = vector.load %arg10[%c0_199, %c0_200, %c0_201] : memref<8x8x128xf32, #tpu.memory_space<vmem>>, vector<8x8x128xf32>
    %637 = vector.shape_cast %636 : vector<8x8x128xf32> to vector<64x128xf32>
    %c0_202 = arith.constant 0 : index
    %c0_203 = arith.constant 0 : index
    %638 = vector.load %arg5[%c0_202, %c0_203] : memref<128x128xf32, #tpu.memory_space<vmem>>, vector<128x128xf32>
    %cst_204 = arith.constant dense<0.000000e+00> : vector<64x128xf32>
    %639 = tpu.matmul %637, %638, %cst_204 {dimension_numbers = #tpu.dot_dimension_numbers<[1], [0], [0], [1], [0, 0, 1, 1], [], []>} : vector<64x128xf32>, vector<128x128xf32>, vector<64x128xf32> -> vector<64x128xf32>
    %c0_205 = arith.constant 0 : index
    %c0_206 = arith.constant 0 : index
    %640 = vector.load %arg6[%c0_205, %c0_206] : memref<1x128xf32, #tpu.memory_space<vmem>>, vector<1x128xf32>
    %641 = vector.broadcast %640 : vector<1x128xf32> to vector<64x128xf32>
    %642 = arith.addf %639, %641 : vector<64x128xf32>
    %643 = vector.shape_cast %642 : vector<64x128xf32> to vector<8x8x128xf32>
    %c0_207 = arith.constant 0 : index
    %c0_208 = arith.constant 0 : index
    %c0_209 = arith.constant 0 : index
    %644 = vector.load %arg7[%c0_207, %c0_208, %c0_209] : memref<8x8x128xf32, #tpu.memory_space<vmem>>, vector<8x8x128xf32>
    tpu.vector_store %arg7[%c0_207, %c0_208, %c0_209], %643 {strides = array<i32>} : memref<8x8x128xf32, #tpu.memory_space<vmem>>, vector<8x8x128xf32>,
    return
  }
}

</mosaic_0001>

<llo_original>
// kernel: tpu_custom_call.1
$region0: #{tpu_custom_call.1}
  #allocation0 [shape = 'u32[]', space=smem, size = 0x4, offset = 0x4, fixed_abs, tag = 'smem constant byte address 0x4 - core index']
  #allocation1 [shape = 'u32[144,128]{1,0:T(1,128)}', space=vmem, size = 0x12000, scoped, tag = 'internal scratch']
  #allocation2 [shape = 'f32[8,8,128]{2,1,0:T(8,128)}', space=vmem, size = 0x8000, scoped, tag = 'scratch operand']
  #allocation3 [shape = 'f32[8,8,128]{2,1,0:T(8,128)}', space=vmem, size = 0x8000, scoped, tag = 'scratch operand']
  #allocation4 [shape = 'f32[8,8,512]{2,1,0:T(8,128)}', space=vmem, size = 0x20000, scoped, tag = 'scratch operand']
  %s0 = inlined_call_operand.hbm [shape: f32[8,8,128], index: 0, kind: input, shape index: {}]
  %s1 = inlined_call_operand.vmem [shape: f32[6], index: 1, kind: input, shape index: {}]
  %s2 = inlined_call_operand.hbm [shape: f32[2,128,512], index: 2, kind: input, shape index: {}]
  %s3 = inlined_call_operand.hbm [shape: f32[2,128,512], index: 3, kind: input, shape index: {}]
  %s4 = inlined_call_operand.vmem [shape: f32[2,1,512], index: 4, kind: input, shape index: {}]
  %s5 = inlined_call_operand.hbm [shape: f32[128,128], index: 5, kind: input, shape index: {}]
  %s6 = inlined_call_operand.vmem [shape: f32[1,128], index: 6, kind: input, shape index: {}]
  %s7 = inlined_call_operand.hbm [shape: f32[8,8,128], index: 7, kind: output, shape index: {0}]
  %s8 = inlined_call_operand.hbm [shape: f32[2,8,128], index: 8, kind: output, shape index: {1}]
  %s9 = inlined_call_operand.hbm [shape: f32[2,8,128], index: 9, kind: output, shape index: {2}]
  %10 = xla_tuple %s7, %s8, %s9
  %s11 = sld [smem:[#allocation0]]
  $region74: #{tpu_custom_call.1} parent=0
    _
  %s13 = ssub.s32 1, %s11
  %s14 = scalar_select 0, %s13, %s11
  $region1: #{tpu_custom_call.1} parent=0
    #allocation5 [shape = 'u8[32768]{0}', space=vmem, size = 0x8000, scoped, tag = 'input window, operand 0, single buffered']
    #allocation6 [shape = 's32[1]{0}', space=sflag, size = 0x4, scoped, tag = 'scoped memory for tpu_custom_call.1']
    #allocation7 [shape = 's32[1]{0}', space=sflag, size = 0x4, scoped, tag = 'scoped memory for tpu_custom_call.1']
    #allocation8 [shape = 's32[1]{0}', space=sflag, size = 0x4, scoped, tag = 'scoped memory for tpu_custom_call.1']
    #allocation9 [shape = 'u8[512]{0}', space=smem, size = 0x200, scoped, tag = 'input window, operand 1, single buffered']
    #allocation10 [shape = 'u8[524288]{0}', space=vmem, size = 0x80000, scoped, tag = 'input window, operand 2, single buffered']
    #allocation11 [shape = 's32[1]{0}', space=sflag, size = 0x4, scoped, tag = 'scoped memory for tpu_custom_call.1']
    #allocation12 [shape = 'u8[524288]{0}', space=vmem, size = 0x80000, scoped, tag = 'input window, operand 3, single buffered']
    #allocation13 [shape = 'u8[65536]{0}', space=vmem, size = 0x10000, scoped, tag = 'input window, operand 5, single buffered']
    #allocation14 [shape = 's32[1]{0}', space=sflag, size = 0x4, scoped, tag = 'scoped memory for tpu_custom_call.1']
    #allocation15 [shape = 'u8[32768]{0}', space=vmem, size = 0x8000, scoped, tag = 'output window, operand 0, single buffered']
    #allocation16 [shape = 'u8[8192]{0}', space=vmem, size = 0x2000, scoped, tag = 'output window, operand 1, single buffered']
    #allocation17 [shape = 's32[1]{0}', space=sflag, size = 0x4, scoped, tag = 'scoped memory for tpu_custom_call.1']
    #allocation18 [shape = 'u8[8192]{0}', space=vmem, size = 0x2000, scoped, tag = 'output window, operand 2, single buffered']
    %15 = vsyncpa [#allocation6], 0
    %16 = vsyncpa [#allocation8], 0
    %17 = vsyncpa [#allocation11], 0
    %18 = vsyncpa [#allocation14], 0
    %19 = vsyncpa [#allocation7], 0
    %20 = vsyncpa [#allocation17], 0
    // Predicated region
    $region2: #{tpu_custom_call.1} parent=1 // pred_check
      _
    $region3: #{tpu_custom_call.1} parent=1 // pred_check_branch
      %22 = sbr.rel (0) target = $region5
    $region4: #{tpu_custom_call.1} parent=1 // pred_region
      %s24 = ssub.s32 1024, 1024
      %25 = vsyncadd [#allocation6], %s24
      %s26 = sshll.u32 [#allocation5], 4
      %s27 = int_to_ptr.vmem [resolvable:$true] %s26
      %32 = dma.hbm_to_vmem [thread:$0]  %s0, 1024, %s27, [#allocation6], 128, 128, 8
    $region5: #{tpu_custom_call.1} parent=1 // pred_fallthru
      _
    // Predicated region
    $region6: #{tpu_custom_call.1} parent=1 // pred_check
      _
    $region7: #{tpu_custom_call.1} parent=1 // pred_check_branch
      %34 = sbr.rel (0) target = $region9
    $region8: #{tpu_custom_call.1} parent=1 // pred_region
      %s36 = ssub.s32 16, 16
      %37 = vsyncadd [#allocation8], %s36
      %s39 = sshll.u32 %s1, 4
      %s40 = int_to_ptr.vmem [resolvable:$true] %s39
      %42 = dma.vmem_to_smem %s40, 16, [#allocation9], [#allocation8]
    $region9: #{tpu_custom_call.1} parent=1 // pred_fallthru
      _
    // Predicated region
    $region10: #{tpu_custom_call.1} parent=1 // pred_check
      _
    $region11: #{tpu_custom_call.1} parent=1 // pred_check_branch
      %44 = sbr.rel (0) target = $region13
    $region12: #{tpu_custom_call.1} parent=1 // pred_region
      %s46 = ssub.s32 16384, 16384
      %47 = vsyncadd [#allocation11], %s46
      %s48 = sshll.u32 [#allocation10], 4
      %s49 = int_to_ptr.vmem [resolvable:$true] %s48
      %54 = dma.hbm_to_vmem [thread:$0]  %s2, 16384, %s49, [#allocation11], 512, 512, 32
    $region13: #{tpu_custom_call.1} parent=1 // pred_fallthru
      _
    // Predicated region
    $region14: #{tpu_custom_call.1} parent=1 // pred_check
      _
    $region15: #{tpu_custom_call.1} parent=1 // pred_check_branch
      %56 = sbr.rel (0) target = $region17
    $region16: #{tpu_custom_call.1} parent=1 // pred_region
      %s58 = ssub.s32 16384, 16384
      %59 = vsyncadd [#allocation11], %s58
      %s60 = sshll.u32 [#allocation12], 4
      %s61 = int_to_ptr.vmem [resolvable:$true] %s60
      %66 = dma.hbm_to_vmem [thread:$0]  %s3, 16384, %s61, [#allocation11], 512, 512, 32
    $region17: #{tpu_custom_call.1} parent=1 // pred_fallthru
      _
    // Predicated region
    $region18: #{tpu_custom_call.1} parent=1 // pred_check
      _
    $region19: #{tpu_custom_call.1} parent=1 // pred_check_branch
      %68 = sbr.rel (0) target = $region21
    $region20: #{tpu_custom_call.1} parent=1 // pred_region
      _
    $region21: #{tpu_custom_call.1} parent=1 // pred_fallthru
      _
    // Predicated region
    $region22: #{tpu_custom_call.1} parent=1 // pred_check
      _
    $region23: #{tpu_custom_call.1} parent=1 // pred_check_branch
      %70 = sbr.rel (0) target = $region25
    $region24: #{tpu_custom_call.1} parent=1 // pred_region
      %s72 = ssub.s32 2048, 2048
      %73 = vsyncadd [#allocation14], %s72
      %s74 = sshll.u32 [#allocation13], 4
      %s75 = int_to_ptr.vmem [resolvable:$true] %s74
      %80 = dma.hbm_to_vmem [thread:$0]  %s5, 2048, %s75, [#allocation14], 128, 128, 8
    $region25: #{tpu_custom_call.1} parent=1 // pred_fallthru
      _
    // Predicated region
    $region26: #{tpu_custom_call.1} parent=1 // pred_check
      _
    $region27: #{tpu_custom_call.1} parent=1 // pred_check_branch
      %82 = sbr.rel (0) target = $region29
    $region28: #{tpu_custom_call.1} parent=1 // pred_region
      _
    $region29: #{tpu_custom_call.1} parent=1 // pred_fallthru
      _
    // Predicated region
    $region30: #{tpu_custom_call.1} parent=1 // pred_check
      _
    $region31: #{tpu_custom_call.1} parent=1 // pred_check_branch
      %84 = sbr.rel (0) target = $region33
    $region32: #{tpu_custom_call.1} parent=1 // pred_region
      %85 = dma.done [#allocation6], 1024
    $region33: #{tpu_custom_call.1} parent=1 // pred_fallthru
      _
    // Predicated region
    $region34: #{tpu_custom_call.1} parent=1 // pred_check
      _
    $region35: #{tpu_custom_call.1} parent=1 // pred_check_branch
      %87 = sbr.rel (0) target = $region37
    $region36: #{tpu_custom_call.1} parent=1 // pred_region
      %88 = dma.done [#allocation8], 16
    $region37: #{tpu_custom_call.1} parent=1 // pred_fallthru
      _
    // Predicated region
    $region38: #{tpu_custom_call.1} parent=1 // pred_check
      _
    $region39: #{tpu_custom_call.1} parent=1 // pred_check_branch
      %90 = sbr.rel (0) target = $region41
    $region40: #{tpu_custom_call.1} parent=1 // pred_region
      %91 = dma.done [#allocation11], 16384
    $region41: #{tpu_custom_call.1} parent=1 // pred_fallthru
      _
    // Predicated region
    $region42: #{tpu_custom_call.1} parent=1 // pred_check
      _
    $region43: #{tpu_custom_call.1} parent=1 // pred_check_branch
      %93 = sbr.rel (0) target = $region45
    $region44: #{tpu_custom_call.1} parent=1 // pred_region
      %94 = dma.done [#allocation11], 16384
    $region45: #{tpu_custom_call.1} parent=1 // pred_fallthru
      _
    // Predicated region
    $region46: #{tpu_custom_call.1} parent=1 // pred_check
      _
    $region47: #{tpu_custom_call.1} parent=1 // pred_check_branch
      %96 = sbr.rel (0) target = $region49
    $region48: #{tpu_custom_call.1} parent=1 // pred_region
      %97 = dma.done [#allocation14], 2048
    $region49: #{tpu_custom_call.1} parent=1 // pred_fallthru
      _
    %98 = sfence
    %v99 = vld [vmem:[#allocation5] sm:$0xff]
    %v100 = vld [vmem:[#allocation5 + $0x8] sm:$0xff]
    %v101 = vld [vmem:[#allocation5 + $0x10] sm:$0xff]
    %v102 = vld [vmem:[#allocation5 + $0x18] sm:$0xff]
    %v103 = vld [vmem:[#allocation5 + $0x20] sm:$0xff]
    %v104 = vld [vmem:[#allocation5 + $0x28] sm:$0xff]
    %v105 = vld [vmem:[#allocation5 + $0x30] sm:$0xff]
    %v106 = vld [vmem:[#allocation5 + $0x38] sm:$0xff]
    %s107 = sld [smem:[#allocation9]]
    %s108 = sld [smem:[#allocation9 + $0x1]]
    %s109 = sld [smem:[#allocation9 + $0x2]]
    %s110 = sld [smem:[#allocation9 + $0x3]]
    %s111 = sld [smem:[#allocation9 + $0x4]]
    %s112 = sld [smem:[#allocation9 + $0x5]]
    %v113 = vadd.f32 %v99, %v100
    %v114 = vadd.f32 %v113, %v101
    %v115 = vadd.f32 %v114, %v102
    %v116 = vadd.f32 %v115, %v103
    %v117 = vadd.f32 %v116, %v104
    %v118 = vadd.f32 %v117, %v105
    %v119 = vadd.f32 %v118, %v106
    %120 = vadd.xlane.f32.xlu0 %v119
    %v121 = vpop.xlane.xlu0 %120
    %v122 = vrot.slane %v121, 4
    %v123 = vadd.f32 %v121, %v122
    %v124 = vrot.slane %v123, 2
    %v125 = vadd.f32 %v123, %v124
    %v126 = vrot.slane %v125, 1
    %v127 = vadd.f32 %v125, %v126
    %s128 = vtos %v127
    %v129 = vmul.f32 %v99, %v99
    %v130 = vmul.f32 %v100, %v100
    %v131 = vmul.f32 %v101, %v101
    %v132 = vmul.f32 %v102, %v102
    %v133 = vmul.f32 %v103, %v103
    %v134 = vmul.f32 %v104, %v104
    %v135 = vmul.f32 %v105, %v105
    %v136 = vmul.f32 %v106, %v106
    %v137 = vadd.f32 %v129, %v130
    %v138 = vadd.f32 %v137, %v131
    %v139 = vadd.f32 %v138, %v132
    %v140 = vadd.f32 %v139, %v133
    %v141 = vadd.f32 %v140, %v134
    %v142 = vadd.f32 %v141, %v135
    %v143 = vadd.f32 %v142, %v136
    %144 = vadd.xlane.f32.xlu0 %v143
    %v145 = vpop.xlane.xlu0 %144
    %v146 = vrot.slane %v145, 4
    %v147 = vadd.f32 %v145, %v146
    %v148 = vrot.slane %v147, 2
    %v149 = vadd.f32 %v147, %v148
    %v150 = vrot.slane %v149, 1
    %v151 = vadd.f32 %v149, %v150
    %s152 = vtos %v151
    %s153 = smul.f32 %s107, %s128
    %s154 = smul.f32 %s108, 256.0
    %s155 = sadd.f32 %s153, %s154
    %s156 = smul.f32 %s107, %s107
    %s157 = smul.f32 %s156, %s152
    %s158 = smul.f32 %s107, 2.0
    %s159 = smul.f32 %s158, %s108
    %s160 = smul.f32 %s159, %s128
    %s161 = sadd.f32 %s157, %s160
    %s162 = smul.f32 %s108, %s108
    %s163 = smul.f32 %s162, 256.0
    %s164 = sadd.f32 %s161, %s163
    %v165 = vrcp.pop 256.0
    %s166 = vtos %v165
    %s167 = smul.f32 %s155, %s166
    %v168 = vrcp.pop 256.0
    %s169 = vtos %v168
    %s170 = smul.f32 %s164, %s169
    %s171 = smul.f32 %s167, %s167
    %s172 = ssub.f32 %s170, %s171
    %s173 = smax.f32 %s172, 0.0
    %s174 = sadd.f32 %s173, 1e-05
    %v175 = vstv %s174
    %v176 = vrsqrt.pop %v175
    %s177 = vtos %v176
    %s178 = smul.f32 %s109, %s177
    %s179 = smul.f32 %s178, %s111
    %s180 = smul.f32 %s109, %s167
    %s181 = smul.f32 %s180, %s177
    %s182 = ssub.f32 %s110, %s181
    %s183 = smul.f32 %s182, %s111
    %s184 = sadd.f32 %s183, %s112
    %s185 = smul.f32 %s179, %s107
    %s186 = smul.f32 %s179, %s108
    %s187 = sadd.f32 %s186, %s184
    %v188 = vstv %s185
    %v189 = vmul.f32 %v188, %v99
    %v190 = vmul.f32 %v188, %v100
    %v191 = vmul.f32 %v188, %v101
    %v192 = vmul.f32 %v188, %v102
    %v193 = vmul.f32 %v188, %v103
    %v194 = vmul.f32 %v188, %v104
    %v195 = vmul.f32 %v188, %v105
    %v196 = vmul.f32 %v188, %v106
    %v197 = vstv %s187
    %v198 = vadd.f32 %v189, %v197
    %v199 = vadd.f32 %v190, %v197
    %v200 = vadd.f32 %v191, %v197
    %v201 = vadd.f32 %v192, %v197
    %v202 = vadd.f32 %v193, %v197
    %v203 = vadd.f32 %v194, %v197
    %v204 = vadd.f32 %v195, %v197
    %v205 = vadd.f32 %v196, %v197
    %206 = vst [vmem:[#allocation2] sm:$0xff] %v198
    %207 = vst [vmem:[#allocation2 + $0x8] sm:$0xff] %v199
    %208 = vst [vmem:[#allocation2 + $0x10] sm:$0xff] %v200
    %209 = vst [vmem:[#allocation2 + $0x18] sm:$0xff] %v201
    %210 = vst [vmem:[#allocation2 + $0x20] sm:$0xff] %v202
    %211 = vst [vmem:[#allocation2 + $0x28] sm:$0xff] %v203
    %212 = vst [vmem:[#allocation2 + $0x30] sm:$0xff] %v204
    %213 = vst [vmem:[#allocation2 + $0x38] sm:$0xff] %v205
    %v214 = vld [vmem:[#allocation10] sm:$0xff]
    %v215 = vld [vmem:[#allocation10 + $0x8] sm:$0xff]
    %v216 = vld [vmem:[#allocation10 + $0x10] sm:$0xff]
    %v217 = vld [vmem:[#allocation10 + $0x18] sm:$0xff]
    %v218 = vld [vmem:[#allocation10 + $0x20] sm:$0xff]
    %v219 = vld [vmem:[#allocation10 + $0x28] sm:$0xff]
    %v220 = vld [vmem:[#allocation10 + $0x30] sm:$0xff]
    %v221 = vld [vmem:[#allocation10 + $0x38] sm:$0xff]
    %v222 = vld [vmem:[#allocation10 + $0x40] sm:$0xff]
    %v223 = vld [vmem:[#allocation10 + $0x48] sm:$0xff]
    %v224 = vld [vmem:[#allocation10 + $0x50] sm:$0xff]
    %v225 = vld [vmem:[#allocation10 + $0x58] sm:$0xff]
    %v226 = vld [vmem:[#allocation10 + $0x60] sm:$0xff]
    %v227 = vld [vmem:[#allocation10 + $0x68] sm:$0xff]
    %v228 = vld [vmem:[#allocation10 + $0x70] sm:$0xff]
    %v229 = vld [vmem:[#allocation10 + $0x78] sm:$0xff]
    %v230 = vld [vmem:[#allocation10 + $0x80] sm:$0xff]
    %v231 = vld [vmem:[#allocation10 + $0x88] sm:$0xff]
    %v232 = vld [vmem:[#allocation10 + $0x90] sm:$0xff]
    %v233 = vld [vmem:[#allocation10 + $0x98] sm:$0xff]
    %v234 = vld [vmem:[#allocation10 + $0xa0] sm:$0xff]
    %v235 = vld [vmem:[#allocation10 + $0xa8] sm:$0xff]
    %v236 = vld [vmem:[#allocation10 + $0xb0] sm:$0xff]
    %v237 = vld [vmem:[#allocation10 + $0xb8] sm:$0xff]
    %v238 = vld [vmem:[#allocation10 + $0xc0] sm:$0xff]
    %v239 = vld [vmem:[#allocation10 + $0xc8] sm:$0xff]
    %v240 = vld [vmem:[#allocation10 + $0xd0] sm:$0xff]
    %v241 = vld [vmem:[#allocation10 + $0xd8] sm:$0xff]
    %v242 = vld [vmem:[#allocation10 + $0xe0] sm:$0xff]
    %v243 = vld [vmem:[#allocation10 + $0xe8] sm:$0xff]
    %v244 = vld [vmem:[#allocation10 + $0xf0] sm:$0xff]
    %v245 = vld [vmem:[#allocation10 + $0xf8] sm:$0xff]
    %v246 = vld [vmem:[#allocation10 + $0x100] sm:$0xff]
    %v247 = vld [vmem:[#allocation10 + $0x108] sm:$0xff]
    %v248 = vld [vmem:[#allocation10 + $0x110] sm:$0xff]
    %v249 = vld [vmem:[#allocation10 + $0x118] sm:$0xff]
    %v250 = vld [vmem:[#allocation10 + $0x120] sm:$0xff]
    %v251 = vld [vmem:[#allocation10 + $0x128] sm:$0xff]
    %v252 = vld [vmem:[#allocation10 + $0x130] sm:$0xff]
    %v253 = vld [vmem:[#allocation10 + $0x138] sm:$0xff]
    %v254 = vld [vmem:[#allocation10 + $0x140] sm:$0xff]
    %v255 = vld [vmem:[#allocation10 + $0x148] sm:$0xff]
    %v256 = vld [vmem:[#allocation10 + $0x150] sm:$0xff]
    %v257 = vld [vmem:[#allocation10 + $0x158] sm:$0xff]
    %v258 = vld [vmem:[#allocation10 + $0x160] sm:$0xff]
    %v259 = vld [vmem:[#allocation10 + $0x168] sm:$0xff]
    %v260 = vld [vmem:[#allocation10 + $0x170] sm:$0xff]
    %v261 = vld [vmem:[#allocation10 + $0x178] sm:$0xff]
    %v262 = vld [vmem:[#allocation10 + $0x180] sm:$0xff]
    %v263 = vld [vmem:[#allocation10 + $0x188] sm:$0xff]
    %v264 = vld [vmem:[#allocation10 + $0x190] sm:$0xff]
    %v265 = vld [vmem:[#allocation10 + $0x198] sm:$0xff]
    %v266 = vld [vmem:[#allocation10 + $0x1a0] sm:$0xff]
    %v267 = vld [vmem:[#allocation10 + $0x1a8] sm:$0xff]
    %v268 = vld [vmem:[#allocation10 + $0x1b0] sm:$0xff]
    %v269 = vld [vmem:[#allocation10 + $0x1b8] sm:$0xff]
    %v270 = vld [vmem:[#allocation10 + $0x1c0] sm:$0xff]
    %v271 = vld [vmem:[#allocation10 + $0x1c8] sm:$0xff]
    %v272 = vld [vmem:[#allocation10 + $0x1d0] sm:$0xff]
    %v273 = vld [vmem:[#allocation10 + $0x1d8] sm:$0xff]
    %v274 = vld [vmem:[#allocation10 + $0x1e0] sm:$0xff]
    %v275 = vld [vmem:[#allocation10 + $0x1e8] sm:$0xff]
    %v276 = vld [vmem:[#allocation10 + $0x1f0] sm:$0xff]
    %v277 = vld [vmem:[#allocation10 + $0x1f8] sm:$0xff]
    %v278 = vld [vmem:[#allocation12] sm:$0xff]
    %v279 = vld [vmem:[#allocation12 + $0x8] sm:$0xff]
    %v280 = vld [vmem:[#allocation12 + $0x10] sm:$0xff]
    %v281 = vld [vmem:[#allocation12 + $0x18] sm:$0xff]
    %v282 = vld [vmem:[#allocation12 + $0x20] sm:$0xff]
    %v283 = vld [vmem:[#allocation12 + $0x28] sm:$0xff]
    %v284 = vld [vmem:[#allocation12 + $0x30] sm:$0xff]
    %v285 = vld [vmem:[#allocation12 + $0x38] sm:$0xff]
    %v286 = vld [vmem:[#allocation12 + $0x40] sm:$0xff]
    %v287 = vld [vmem:[#allocation12 + $0x48] sm:$0xff]
    %v288 = vld [vmem:[#allocation12 + $0x50] sm:$0xff]
    %v289 = vld [vmem:[#allocation12 + $0x58] sm:$0xff]
    %v290 = vld [vmem:[#allocation12 + $0x60] sm:$0xff]
    %v291 = vld [vmem:[#allocation12 + $0x68] sm:$0xff]
    %v292 = vld [vmem:[#allocation12 + $0x70] sm:$0xff]
    %v293 = vld [vmem:[#allocation12 + $0x78] sm:$0xff]
    %v294 = vld [vmem:[#allocation12 + $0x80] sm:$0xff]
    %v295 = vld [vmem:[#allocation12 + $0x88] sm:$0xff]
    %v296 = vld [vmem:[#allocation12 + $0x90] sm:$0xff]
    %v297 = vld [vmem:[#allocation12 + $0x98] sm:$0xff]
    %v298 = vld [vmem:[#allocation12 + $0xa0] sm:$0xff]
    %v299 = vld [vmem:[#allocation12 + $0xa8] sm:$0xff]
    %v300 = vld [vmem:[#allocation12 + $0xb0] sm:$0xff]
    %v301 = vld [vmem:[#allocation12 + $0xb8] sm:$0xff]
    %v302 = vld [vmem:[#allocation12 + $0xc0] sm:$0xff]
    %v303 = vld [vmem:[#allocation12 + $0xc8] sm:$0xff]
    %v304 = vld [vmem:[#allocation12 + $0xd0] sm:$0xff]
    %v305 = vld [vmem:[#allocation12 + $0xd8] sm:$0xff]
    %v306 = vld [vmem:[#allocation12 + $0xe0] sm:$0xff]
    %v307 = vld [vmem:[#allocation12 + $0xe8] sm:$0xff]
    %v308 = vld [vmem:[#allocation12 + $0xf0] sm:$0xff]
    %v309 = vld [vmem:[#allocation12 + $0xf8] sm:$0xff]
    %v310 = vld [vmem:[#allocation12 + $0x100] sm:$0xff]
    %v311 = vld [vmem:[#allocation12 + $0x108] sm:$0xff]
    %v312 = vld [vmem:[#allocation12 + $0x110] sm:$0xff]
    %v313 = vld [vmem:[#allocation12 + $0x118] sm:$0xff]
    %v314 = vld [vmem:[#allocation12 + $0x120] sm:$0xff]
    %v315 = vld [vmem:[#allocation12 + $0x128] sm:$0xff]
    %v316 = vld [vmem:[#allocation12 + $0x130] sm:$0xff]
    %v317 = vld [vmem:[#allocation12 + $0x138] sm:$0xff]
    %v318 = vld [vmem:[#allocation12 + $0x140] sm:$0xff]
    %v319 = vld [vmem:[#allocation12 + $0x148] sm:$0xff]
    %v320 = vld [vmem:[#allocation12 + $0x150] sm:$0xff]
    %v321 = vld [vmem:[#allocation12 + $0x158] sm:$0xff]
    %v322 = vld [vmem:[#allocation12 + $0x160] sm:$0xff]
    %v323 = vld [vmem:[#allocation12 + $0x168] sm:$0xff]
    %v324 = vld [vmem:[#allocation12 + $0x170] sm:$0xff]
    %v325 = vld [vmem:[#allocation12 + $0x178] sm:$0xff]
    %v326 = vld [vmem:[#allocation12 + $0x180] sm:$0xff]
    %v327 = vld [vmem:[#allocation12 + $0x188] sm:$0xff]
    %v328 = vld [vmem:[#allocation12 + $0x190] sm:$0xff]
    %v329 = vld [vmem:[#allocation12 + $0x198] sm:$0xff]
    %v330 = vld [vmem:[#allocation12 + $0x1a0] sm:$0xff]
    %v331 = vld [vmem:[#allocation12 + $0x1a8] sm:$0xff]
    %v332 = vld [vmem:[#allocation12 + $0x1b0] sm:$0xff]
    %v333 = vld [vmem:[#allocation12 + $0x1b8] sm:$0xff]
    %v334 = vld [vmem:[#allocation12 + $0x1c0] sm:$0xff]
    %v335 = vld [vmem:[#allocation12 + $0x1c8] sm:$0xff]
    %v336 = vld [vmem:[#allocation12 + $0x1d0] sm:$0xff]
    %v337 = vld [vmem:[#allocation12 + $0x1d8] sm:$0xff]
    %v338 = vld [vmem:[#allocation12 + $0x1e0] sm:$0xff]
    %v339 = vld [vmem:[#allocation12 + $0x1e8] sm:$0xff]
    %v340 = vld [vmem:[#allocation12 + $0x1f0] sm:$0xff]
    %v341 = vld [vmem:[#allocation12 + $0x1f8] sm:$0xff]
    %v342 = vld [vmem:[%s4] sm:$0xf]
    %v343 = vld [vmem:[#allocation2] sm:$0xff]
    %v344 = vld [vmem:[#allocation2 + $0x8] sm:$0xff]
    %v345 = vld [vmem:[#allocation2 + $0x10] sm:$0xff]
    %v346 = vld [vmem:[#allocation2 + $0x18] sm:$0xff]
    %v347 = vld [vmem:[#allocation2 + $0x20] sm:$0xff]
    %v348 = vld [vmem:[#allocation2 + $0x28] sm:$0xff]
    %v349 = vld [vmem:[#allocation2 + $0x30] sm:$0xff]
    %v350 = vld [vmem:[#allocation2 + $0x38] sm:$0xff]
    %v352 = vlaneseq
    %v353 = vshrl.u32 %v352, 7
    %v354 = vsub.s32 0, %v353
    %v355 = vrot.slane %v342, %v354
    %v356 = vlaneseq
    %v357 = vshrl.u32 %v356, 7
    %v358 = vsub.s32 1, %v357
    %v359 = vrot.slane %v342, %v358
    %v360 = vlaneseq
    %v361 = vshrl.u32 %v360, 7
    %v362 = vsub.s32 2, %v361
    %v363 = vrot.slane %v342, %v362
    %v364 = vlaneseq
    %v365 = vshrl.u32 %v364, 7
    %v366 = vsub.s32 3, %v365
    %v367 = vrot.slane %v342, %v366
    %372 = vmatprep.subr.mxu0 %v215
    %373 = vmatpush1.msra.mxu0 %v214
    %374 = vmatprep.subr.mxu0 %v219
    %375 = vmatpush1.msra.mxu0 %v218
    %376 = vmatprep.subr.mxu0 %v223
    %377 = vmatpush1.msra.mxu0 %v222
    %378 = vmatprep.subr.mxu0 %v227
    %379 = vmatpush1.msra.mxu0 %v226
    %380 = vmatprep.subr.mxu0 %v231
    %381 = vmatpush1.msra.mxu0 %v230
    %382 = vmatprep.subr.mxu0 %v235
    %383 = vmatpush1.msra.mxu0 %v234
    %384 = vmatprep.subr.mxu0 %v239
    %385 = vmatpush1.msra.mxu0 %v238
    %386 = vmatprep.subr.mxu0 %v243
    %387 = vmatpush1.msra.mxu0 %v242
    %388 = vmatprep.subr.mxu0 %v247
    %389 = vmatpush1.msra.mxu0 %v246
    %390 = vmatprep.subr.mxu0 %v251
    %391 = vmatpush1.msra.mxu0 %v250
    %392 = vmatprep.subr.mxu0 %v255
    %393 = vmatpush1.msra.mxu0 %v254
    %394 = vmatprep.subr.mxu0 %v259
    %395 = vmatpush1.msra.mxu0 %v258
    %396 = vmatprep.subr.mxu0 %v263
    %397 = vmatpush1.msra.mxu0 %v262
    %398 = vmatprep.subr.mxu0 %v267
    %399 = vmatpush1.msra.mxu0 %v266
    %400 = vmatprep.subr.mxu0 %v271
    %401 = vmatpush1.msra.mxu0 %v270
    %402 = vmatprep.subr.mxu0 %v275
    %403 = vmatpush1.msra.mxu0 %v274
    %404 = vmatprep.subr.mxu0 0.0
    %405 = vmatpush1.msra.mxu0 0.0
    %406 = vmatprep.subr.mxu0 0.0
    %407 = vmatpush1.msra.mxu0 0.0
    %408 = vmatprep.subr.mxu0 0.0
    %409 = vmatpush1.msra.mxu0 0.0
    %410 = vmatprep.subr.mxu0 0.0
    %411 = vmatpush1.msra.mxu0 0.0
    %412 = vmatprep.subr.mxu0 0.0
    %413 = vmatpush1.msra.mxu0 0.0
    %414 = vmatprep.subr.mxu0 0.0
    %415 = vmatpush1.msra.mxu0 0.0
    %416 = vmatprep.subr.mxu0 0.0
    %417 = vmatpush1.msra.mxu0 0.0
    %418 = vmatprep.subr.mxu0 0.0
    %419 = vmatpush1.msra.mxu0 0.0
    %420 = vmatprep.subr.mxu0 0.0
    %421 = vmatpush1.msra.mxu0 0.0
    %422 = vmatprep.subr.mxu0 0.0
    %423 = vmatpush1.msra.mxu0 0.0
    %424 = vmatprep.subr.mxu0 0.0
    %425 = vmatpush1.msra.mxu0 0.0
    %426 = vmatprep.subr.mxu0 0.0
    %427 = vmatpush1.msra.mxu0 0.0
    %428 = vmatprep.subr.mxu0 0.0
    %429 = vmatpush1.msra.mxu0 0.0
    %430 = vmatprep.subr.mxu0 0.0
    %431 = vmatpush1.msra.mxu0 0.0
    %432 = vmatprep.subr.mxu0 0.0
    %433 = vmatpush1.msra.mxu0 0.0
    %434 = vmatprep.subr.mxu0 0.0
    %435 = vmatpush1.msra.mxu0 0.0
    %436 = vmatprep.mubr.f32.mxu0 0.0
    %437 = vmatmul.mubr.f32.gmra.mrb[0].mxu0 %v343
    %v438 = vpop.f32.mrb[0].mxu0
    %v439 = vadd.f32 %v355, %v438
    %v440 = vpop.f32.mrb[0].mxu0
    %v441 = vadd.f32 %v359, %v440
    %442 = vmatprep.mubr.f32.mxu0 0.0
    %443 = vmatmul.mubr.f32.gmra.mrb[0].mxu0 %v344
    %v444 = vpop.f32.mrb[0].mxu0
    %v445 = vadd.f32 %v355, %v444
    %v446 = vpop.f32.mrb[0].mxu0
    %v447 = vadd.f32 %v359, %v446
    %448 = vmatprep.mubr.f32.mxu0 0.0
    %449 = vmatmul.mubr.f32.gmra.mrb[0].mxu0 %v345
    %v450 = vpop.f32.mrb[0].mxu0
    %v451 = vadd.f32 %v355, %v450
    %v452 = vpop.f32.mrb[0].mxu0
    %v453 = vadd.f32 %v359, %v452
    %454 = vmatprep.mubr.f32.mxu0 0.0
    %455 = vmatmul.mubr.f32.gmra.mrb[0].mxu0 %v346
    %v456 = vpop.f32.mrb[0].mxu0
    %v457 = vadd.f32 %v355, %v456
    %v458 = vpop.f32.mrb[0].mxu0
    %v459 = vadd.f32 %v359, %v458
    %460 = vmatprep.mubr.f32.mxu0 0.0
    %461 = vmatmul.mubr.f32.gmra.mrb[0].mxu0 %v347
    %v462 = vpop.f32.mrb[0].mxu0
    %v463 = vadd.f32 %v355, %v462
    %v464 = vpop.f32.mrb[0].mxu0
    %v465 = vadd.f32 %v359, %v464
    %466 = vmatprep.mubr.f32.mxu0 0.0
    %467 = vmatmul.mubr.f32.gmra.mrb[0].mxu0 %v348
    %v468 = vpop.f32.mrb[0].mxu0
    %v469 = vadd.f32 %v355, %v468
    %v470 = vpop.f32.mrb[0].mxu0
    %v471 = vadd.f32 %v359, %v470
    %472 = vmatprep.mubr.f32.mxu0 0.0
    %473 = vmatmul.mubr.f32.gmra.mrb[0].mxu0 %v349
    %v474 = vpop.f32.mrb[0].mxu0
    %v475 = vadd.f32 %v355, %v474
    %v476 = vpop.f32.mrb[0].mxu0
    %v477 = vadd.f32 %v359, %v476
    %478 = vmatprep.mubr.f32.mxu0 0.0
    %479 = vmatmul.mubr.f32.gmra.mrb[0].mxu0 %v350
    %v480 = vpop.f32.mrb[0].mxu0
    %v481 = vadd.f32 %v355, %v480
    %v482 = vpop.f32.mrb[0].mxu0
    %v483 = vadd.f32 %v359, %v482
    %484 = vdwg.mxu0
    %485 = vmatprep.subr.mxu0 %v217
    %486 = vmatpush1.msra.mxu0 %v216
    %487 = vmatprep.subr.mxu0 %v221
    %488 = vmatpush1.msra.mxu0 %v220
    %489 = vmatprep.subr.mxu0 %v225
    %490 = vmatpush1.msra.mxu0 %v224
    %491 = vmatprep.subr.mxu0 %v229
    %492 = vmatpush1.msra.mxu0 %v228
    %493 = vmatprep.subr.mxu0 %v233
    %494 = vmatpush1.msra.mxu0 %v232
    %495 = vmatprep.subr.mxu0 %v237
    %496 = vmatpush1.msra.mxu0 %v236
    %497 = vmatprep.subr.mxu0 %v241
    %498 = vmatpush1.msra.mxu0 %v240
    %499 = vmatprep.subr.mxu0 %v245
    %500 = vmatpush1.msra.mxu0 %v244
    %501 = vmatprep.subr.mxu0 %v249
    %502 = vmatpush1.msra.mxu0 %v248
    %503 = vmatprep.subr.mxu0 %v253
    %504 = vmatpush1.msra.mxu0 %v252
    %505 = vmatprep.subr.mxu0 %v257
    %506 = vmatpush1.msra.mxu0 %v256
    %507 = vmatprep.subr.mxu0 %v261
    %508 = vmatpush1.msra.mxu0 %v260
    %509 = vmatprep.subr.mxu0 %v265
    %510 = vmatpush1.msra.mxu0 %v264
    %511 = vmatprep.subr.mxu0 %v269
    %512 = vmatpush1.msra.mxu0 %v268
    %513 = vmatprep.subr.mxu0 %v273
    %514 = vmatpush1.msra.mxu0 %v272
    %515 = vmatprep.subr.mxu0 %v277
    %516 = vmatpush1.msra.mxu0 %v276
    %517 = vmatprep.subr.mxu0 0.0
    %518 = vmatpush1.msra.mxu0 0.0
    %519 = vmatprep.subr.mxu0 0.0
    %520 = vmatpush1.msra.mxu0 0.0
    %521 = vmatprep.subr.mxu0 0.0
    %522 = vmatpush1.msra.mxu0 0.0
    %523 = vmatprep.subr.mxu0 0.0
    %524 = vmatpush1.msra.mxu0 0.0
    %525 = vmatprep.subr.mxu0 0.0
    %526 = vmatpush1.msra.mxu0 0.0
    %527 = vmatprep.subr.mxu0 0.0
    %528 = vmatpush1.msra.mxu0 0.0
    %529 = vmatprep.subr.mxu0 0.0
    %530 = vmatpush1.msra.mxu0 0.0
    %531 = vmatprep.subr.mxu0 0.0
    %532 = vmatpush1.msra.mxu0 0.0
    %533 = vmatprep.subr.mxu0 0.0
    %534 = vmatpush1.msra.mxu0 0.0
    %535 = vmatprep.subr.mxu0 0.0
    %536 = vmatpush1.msra.mxu0 0.0
    %537 = vmatprep.subr.mxu0 0.0
    %538 = vmatpush1.msra.mxu0 0.0
    %539 = vmatprep.subr.mxu0 0.0
    %540 = vmatpush1.msra.mxu0 0.0
    %541 = vmatprep.subr.mxu0 0.0
    %542 = vmatpush1.msra.mxu0 0.0
    %543 = vmatprep.subr.mxu0 0.0
    %544 = vmatpush1.msra.mxu0 0.0
    %545 = vmatprep.subr.mxu0 0.0
    %546 = vmatpush1.msra.mxu0 0.0
    %547 = vmatprep.subr.mxu0 0.0
    %548 = vmatpush1.msra.mxu0 0.0
    %549 = vmatprep.mubr.f32.mxu0 0.0
    %550 = vmatmul.mubr.f32.gmra.mrb[0].mxu0 %v343
    %v551 = vpop.f32.mrb[0].mxu0
    %v552 = vadd.f32 %v363, %v551
    %v553 = vpop.f32.mrb[0].mxu0
    %v554 = vadd.f32 %v367, %v553
    %555 = vmatprep.mubr.f32.mxu0 0.0
    %556 = vmatmul.mubr.f32.gmra.mrb[0].mxu0 %v344
    %v557 = vpop.f32.mrb[0].mxu0
    %v558 = vadd.f32 %v363, %v557
    %v559 = vpop.f32.mrb[0].mxu0
    %v560 = vadd.f32 %v367, %v559
    %561 = vmatprep.mubr.f32.mxu0 0.0
    %562 = vmatmul.mubr.f32.gmra.mrb[0].mxu0 %v345
    %v563 = vpop.f32.mrb[0].mxu0
    %v564 = vadd.f32 %v363, %v563
    %v565 = vpop.f32.mrb[0].mxu0
    %v566 = vadd.f32 %v367, %v565
    %567 = vmatprep.mubr.f32.mxu0 0.0
    %568 = vmatmul.mubr.f32.gmra.mrb[0].mxu0 %v346
    %v569 = vpop.f32.mrb[0].mxu0
    %v570 = vadd.f32 %v363, %v569
    %v571 = vpop.f32.mrb[0].mxu0
    %v572 = vadd.f32 %v367, %v571
    %573 = vmatprep.mubr.f32.mxu0 0.0
    %574 = vmatmul.mubr.f32.gmra.mrb[0].mxu0 %v347
    %v575 = vpop.f32.mrb[0].mxu0
    %v576 = vadd.f32 %v363, %v575
    %v577 = vpop.f32.mrb[0].mxu0
    %v578 = vadd.f32 %v367, %v577
    %579 = vmatprep.mubr.f32.mxu0 0.0
    %580 = vmatmul.mubr.f32.gmra.mrb[0].mxu0 %v348
    %v581 = vpop.f32.mrb[0].mxu0
    %v582 = vadd.f32 %v363, %v581
    %v583 = vpop.f32.mrb[0].mxu0
    %v584 = vadd.f32 %v367, %v583
    %585 = vmatprep.mubr.f32.mxu0 0.0
    %586 = vmatmul.mubr.f32.gmra.mrb[0].mxu0 %v349
    %v587 = vpop.f32.mrb[0].mxu0
    %v588 = vadd.f32 %v363, %v587
    %v589 = vpop.f32.mrb[0].mxu0
    %v590 = vadd.f32 %v367, %v589
    %591 = vmatprep.mubr.f32.mxu0 0.0
    %592 = vmatmul.mubr.f32.gmra.mrb[0].mxu0 %v350
    %v593 = vpop.f32.mrb[0].mxu0
    %v594 = vadd.f32 %v363, %v593
    %v595 = vpop.f32.mrb[0].mxu0
    %v596 = vadd.f32 %v367, %v595
    %597 = vdwg.mxu0
    %598 = vst [vmem:[#allocation4] sm:$0xff] %v439
    %599 = vst [vmem:[#allocation4 + $0x8] sm:$0xff] %v441
    %600 = vst [vmem:[#allocation4 + $0x10] sm:$0xff] %v552
    %601 = vst [vmem:[#allocation4 + $0x18] sm:$0xff] %v554
    %602 = vst [vmem:[#allocation4 + $0x20] sm:$0xff] %v445
    %603 = vst [vmem:[#allocation4 + $0x28] sm:$0xff] %v447
    %604 = vst [vmem:[#allocation4 + $0x30] sm:$0xff] %v558
    %605 = vst [vmem:[#allocation4 + $0x38] sm:$0xff] %v560
    %606 = vst [vmem:[#allocation4 + $0x40] sm:$0xff] %v451
    %607 = vst [vmem:[#allocation4 + $0x48] sm:$0xff] %v453
    %608 = vst [vmem:[#allocation4 + $0x50] sm:$0xff] %v564
    %609 = vst [vmem:[#allocation4 + $0x58] sm:$0xff] %v566
    %610 = vst [vmem:[#allocation4 + $0x60] sm:$0xff] %v457
    %611 = vst [vmem:[#allocation4 + $0x68] sm:$0xff] %v459
    %612 = vst [vmem:[#allocation4 + $0x70] sm:$0xff] %v570
    %613 = vst [vmem:[#allocation4 + $0x78] sm:$0xff] %v572
    %614 = vst [vmem:[#allocation4 + $0x80] sm:$0xff] %v463
    %615 = vst [vmem:[#allocation4 + $0x88] sm:$0xff] %v465
    %616 = vst [vmem:[#allocation4 + $0x90] sm:$0xff] %v576
    %617 = vst [vmem:[#allocation4 + $0x98] sm:$0xff] %v578
    %618 = vst [vmem:[#allocation4 + $0xa0] sm:$0xff] %v469
    %619 = vst [vmem:[#allocation4 + $0xa8] sm:$0xff] %v471
    %620 = vst [vmem:[#allocation4 + $0xb0] sm:$0xff] %v582
    %621 = vst [vmem:[#allocation4 + $0xb8] sm:$0xff] %v584
    %622 = vst [vmem:[#allocation4 + $0xc0] sm:$0xff] %v475
    %623 = vst [vmem:[#allocation4 + $0xc8] sm:$0xff] %v477
    %624 = vst [vmem:[#allocation4 + $0xd0] sm:$0xff] %v588
    %625 = vst [vmem:[#allocation4 + $0xd8] sm:$0xff] %v590
    %626 = vst [vmem:[#allocation4 + $0xe0] sm:$0xff] %v481
    %627 = vst [vmem:[#allocation4 + $0xe8] sm:$0xff] %v483
    %628 = vst [vmem:[#allocation4 + $0xf0] sm:$0xff] %v594
    %629 = vst [vmem:[#allocation4 + $0xf8] sm:$0xff] %v596
    %v630 = vld [vmem:[#allocation4] sm:$0xff]
    %v631 = vld [vmem:[#allocation4 + $0x8] sm:$0xff]
    %v632 = vld [vmem:[#allocation4 + $0x10] sm:$0xff]
    %v633 = vld [vmem:[#allocation4 + $0x18] sm:$0xff]
    %634 = vmatprep.subr.mxu0 %v279
    %635 = vmatpush1.msra.mxu0 %v278
    %636 = vmatprep.subr.mxu0 %v283
    %637 = vmatpush1.msra.mxu0 %v282
    %638 = vmatprep.subr.mxu0 %v287
    %639 = vmatpush1.msra.mxu0 %v286
    %640 = vmatprep.subr.mxu0 %v291
    %641 = vmatpush1.msra.mxu0 %v290
    %642 = vmatprep.subr.mxu0 %v295
    %643 = vmatpush1.msra.mxu0 %v294
    %644 = vmatprep.subr.mxu0 %v299
    %645 = vmatpush1.msra.mxu0 %v298
    %646 = vmatprep.subr.mxu0 %v303
    %647 = vmatpush1.msra.mxu0 %v302
    %648 = vmatprep.subr.mxu0 %v307
    %649 = vmatpush1.msra.mxu0 %v306
    %650 = vmatprep.subr.mxu0 %v311
    %651 = vmatpush1.msra.mxu0 %v310
    %652 = vmatprep.subr.mxu0 %v315
    %653 = vmatpush1.msra.mxu0 %v314
    %654 = vmatprep.subr.mxu0 %v319
    %655 = vmatpush1.msra.mxu0 %v318
    %656 = vmatprep.subr.mxu0 %v323
    %657 = vmatpush1.msra.mxu0 %v322
    %658 = vmatprep.subr.mxu0 %v327
    %659 = vmatpush1.msra.mxu0 %v326
    %660 = vmatprep.subr.mxu0 %v331
    %661 = vmatpush1.msra.mxu0 %v330
    %662 = vmatprep.subr.mxu0 %v335
    %663 = vmatpush1.msra.mxu0 %v334
    %664 = vmatprep.subr.mxu0 %v339
    %665 = vmatpush1.msra.mxu0 %v338
    %666 = vmatprep.subr.mxu0 0.0
    %667 = vmatpush1.msra.mxu0 0.0
    %668 = vmatprep.subr.mxu0 0.0
    %669 = vmatpush1.msra.mxu0 0.0
    %670 = vmatprep.subr.mxu0 0.0
    %671 = vmatpush1.msra.mxu0 0.0
    %672 = vmatprep.subr.mxu0 0.0
    %673 = vmatpush1.msra.mxu0 0.0
    %674 = vmatprep.subr.mxu0 0.0
    %675 = vmatpush1.msra.mxu0 0.0
    %676 = vmatprep.subr.mxu0 0.0
    %677 = vmatpush1.msra.mxu0 0.0
    %678 = vmatprep.subr.mxu0 0.0
    %679 = vmatpush1.msra.mxu0 0.0
    %680 = vmatprep.subr.mxu0 0.0
    %681 = vmatpush1.msra.mxu0 0.0
    %682 = vmatprep.subr.mxu0 0.0
    %683 = vmatpush1.msra.mxu0 0.0
    %684 = vmatprep.subr.mxu0 0.0
    %685 = vmatpush1.msra.mxu0 0.0
    %686 = vmatprep.subr.mxu0 0.0
    %687 = vmatpush1.msra.mxu0 0.0
    %688 = vmatprep.subr.mxu0 0.0
    %689 = vmatpush1.msra.mxu0 0.0
    %690 = vmatprep.subr.mxu0 0.0
    %691 = vmatpush1.msra.mxu0 0.0
    %692 = vmatprep.subr.mxu0 0.0
    %693 = vmatpush1.msra.mxu0 0.0
    %694 = vmatprep.subr.mxu0 0.0
    %695 = vmatpush1.msra.mxu0 0.0
    %696 = vmatprep.subr.mxu0 0.0
    %697 = vmatpush1.msra.mxu0 0.0
    %698 = vmatprep.mubr.f32.mxu0 0.0
    %699 = vmatmul.mubr.f32.gmra.mrb[0].mxu0 0.0
    %v700 = vpop.f32.mrb[0].mxu0
    %v701 = vadd.f32 %v630, %v700
    %v702 = vpop.f32.mrb[0].mxu0
    %v703 = vadd.f32 %v631, %v702
    %704 = vdwg.mxu0
    %705 = vmatprep.subr.mxu0 %v281
    %706 = vmatpush1.msra.mxu0 %v280
    %707 = vmatprep.subr.mxu0 %v285
    %708 = vmatpush1.msra.mxu0 %v284
    %709 = vmatprep.subr.mxu0 %v289
    %710 = vmatpush1.msra.mxu0 %v288
    %711 = vmatprep.subr.mxu0 %v293
    %712 = vmatpush1.msra.mxu0 %v292
    %713 = vmatprep.subr.mxu0 %v297
    %714 = vmatpush1.msra.mxu0 %v296
    %715 = vmatprep.subr.mxu0 %v301
    %716 = vmatpush1.msra.mxu0 %v300
    %717 = vmatprep.subr.mxu0 %v305
    %718 = vmatpush1.msra.mxu0 %v304
    %719 = vmatprep.subr.mxu0 %v309
    %720 = vmatpush1.msra.mxu0 %v308
    %721 = vmatprep.subr.mxu0 %v313
    %722 = vmatpush1.msra.mxu0 %v312
    %723 = vmatprep.subr.mxu0 %v317
    %724 = vmatpush1.msra.mxu0 %v316
    %725 = vmatprep.subr.mxu0 %v321
    %726 = vmatpush1.msra.mxu0 %v320
    %727 = vmatprep.subr.mxu0 %v325
    %728 = vmatpush1.msra.mxu0 %v324
    %729 = vmatprep.subr.mxu0 %v329
    %730 = vmatpush1.msra.mxu0 %v328
    %731 = vmatprep.subr.mxu0 %v333
    %732 = vmatpush1.msra.mxu0 %v332
    %733 = vmatprep.subr.mxu0 %v337
    %734 = vmatpush1.msra.mxu0 %v336
    %735 = vmatprep.subr.mxu0 %v341
    %736 = vmatpush1.msra.mxu0 %v340
    %737 = vmatprep.subr.mxu0 0.0
    %738 = vmatpush1.msra.mxu0 0.0
    %739 = vmatprep.subr.mxu0 0.0
    %740 = vmatpush1.msra.mxu0 0.0
    %741 = vmatprep.subr.mxu0 0.0
    %742 = vmatpush1.msra.mxu0 0.0
    %743 = vmatprep.subr.mxu0 0.0
    %744 = vmatpush1.msra.mxu0 0.0
    %745 = vmatprep.subr.mxu0 0.0
    %746 = vmatpush1.msra.mxu0 0.0
    %747 = vmatprep.subr.mxu0 0.0
    %748 = vmatpush1.msra.mxu0 0.0
    %749 = vmatprep.subr.mxu0 0.0
    %750 = vmatpush1.msra.mxu0 0.0
    %751 = vmatprep.subr.mxu0 0.0
    %752 = vmatpush1.msra.mxu0 0.0
    %753 = vmatprep.subr.mxu0 0.0
    %754 = vmatpush1.msra.mxu0 0.0
    %755 = vmatprep.subr.mxu0 0.0
    %756 = vmatpush1.msra.mxu0 0.0
    %757 = vmatprep.subr.mxu0 0.0
    %758 = vmatpush1.msra.mxu0 0.0
    %759 = vmatprep.subr.mxu0 0.0
    %760 = vmatpush1.msra.mxu0 0.0
    %761 = vmatprep.subr.mxu0 0.0
    %762 = vmatpush1.msra.mxu0 0.0
    %763 = vmatprep.subr.mxu0 0.0
    %764 = vmatpush1.msra.mxu0 0.0
    %765 = vmatprep.subr.mxu0 0.0
    %766 = vmatpush1.msra.mxu0 0.0
    %767 = vmatprep.subr.mxu0 0.0
    %768 = vmatpush1.msra.mxu0 0.0
    %769 = vmatprep.mubr.f32.mxu0 0.0
    %770 = vmatmul.mubr.f32.gmra.mrb[0].mxu0 0.0
    %v771 = vpop.f32.mrb[0].mxu0
    %v772 = vadd.f32 %v632, %v771
    %v773 = vpop.f32.mrb[0].mxu0
    %v774 = vadd.f32 %v633, %v773
    %775 = vdwg.mxu0
    %v776 = vxor.u32 %v701, 2147483648
    %v777 = vmul.f32 %v776, 1.442695
    %v778 = vpow.pop %v777
    %v779 = vadd.f32 %v778, 1.0
    %v780 = vrcp.pop %v779
    %v781 = vmul.f32 1.0, %v780
    %v782 = vxor.u32 %v703, 2147483648
    %v783 = vmul.f32 %v782, 1.442695
    %v784 = vpow.pop %v783
    %v785 = vadd.f32 %v784, 1.0
    %v786 = vrcp.pop %v785
    %v787 = vmul.f32 1.0, %v786
    %v788 = vtanh.pop %v772
    %v789 = vxor.u32 %v774, 2147483648
    %v790 = vmul.f32 %v789, 1.442695
    %v791 = vpow.pop %v790
    %v792 = vadd.f32 %v791, 1.0
    %v793 = vrcp.pop %v792
    %v794 = vmul.f32 1.0, %v793
    %v795 = vmul.f32 %v787, 0.0
    %v796 = vmul.f32 %v781, %v788
    %v797 = vadd.f32 %v795, %v796
    %v798 = vtanh.pop %v797
    %v799 = vmul.f32 %v794, %v798
    %800 = vst [vmem:[#allocation3] sm:$0xff] %v799
    %s801 = scalar_lea.vmem [#allocation4], 32
    %v802 = vld [vmem:[%s801] sm:$0xff]
    %v803 = vld [vmem:[%s801 + $0x8] sm:$0xff]
    %v804 = vld [vmem:[%s801 + $0x10] sm:$0xff]
    %v805 = vld [vmem:[%s801 + $0x18] sm:$0xff]
    %806 = vmatprep.subr.mxu0 %v279
    %807 = vmatpush1.msra.mxu0 %v278
    %808 = vmatprep.subr.mxu0 %v283
    %809 = vmatpush1.msra.mxu0 %v282
    %810 = vmatprep.subr.mxu0 %v287
    %811 = vmatpush1.msra.mxu0 %v286
    %812 = vmatprep.subr.mxu0 %v291
    %813 = vmatpush1.msra.mxu0 %v290
    %814 = vmatprep.subr.mxu0 %v295
    %815 = vmatpush1.msra.mxu0 %v294
    %816 = vmatprep.subr.mxu0 %v299
    %817 = vmatpush1.msra.mxu0 %v298
    %818 = vmatprep.subr.mxu0 %v303
    %819 = vmatpush1.msra.mxu0 %v302
    %820 = vmatprep.subr.mxu0 %v307
    %821 = vmatpush1.msra.mxu0 %v306
    %822 = vmatprep.subr.mxu0 %v311
    %823 = vmatpush1.msra.mxu0 %v310
    %824 = vmatprep.subr.mxu0 %v315
    %825 = vmatpush1.msra.mxu0 %v314
    %826 = vmatprep.subr.mxu0 %v319
    %827 = vmatpush1.msra.mxu0 %v318
    %828 = vmatprep.subr.mxu0 %v323
    %829 = vmatpush1.msra.mxu0 %v322
    %830 = vmatprep.subr.mxu0 %v327
    %831 = vmatpush1.msra.mxu0 %v326
    %832 = vmatprep.subr.mxu0 %v331
    %833 = vmatpush1.msra.mxu0 %v330
    %834 = vmatprep.subr.mxu0 %v335
    %835 = vmatpush1.msra.mxu0 %v334
    %836 = vmatprep.subr.mxu0 %v339
    %837 = vmatpush1.msra.mxu0 %v338
    %838 = vmatprep.subr.mxu0 0.0
    %839 = vmatpush1.msra.mxu0 0.0
    %840 = vmatprep.subr.mxu0 0.0
    %841 = vmatpush1.msra.mxu0 0.0
    %842 = vmatprep.subr.mxu0 0.0
    %843 = vmatpush1.msra.mxu0 0.0
    %844 = vmatprep.subr.mxu0 0.0
    %845 = vmatpush1.msra.mxu0 0.0
    %846 = vmatprep.subr.mxu0 0.0
    %847 = vmatpush1.msra.mxu0 0.0
    %848 = vmatprep.subr.mxu0 0.0
    %849 = vmatpush1.msra.mxu0 0.0
    %850 = vmatprep.subr.mxu0 0.0
    %851 = vmatpush1.msra.mxu0 0.0
    %852 = vmatprep.subr.mxu0 0.0
    %853 = vmatpush1.msra.mxu0 0.0
    %854 = vmatprep.subr.mxu0 0.0
    %855 = vmatpush1.msra.mxu0 0.0
    %856 = vmatprep.subr.mxu0 0.0
    %857 = vmatpush1.msra.mxu0 0.0
    %858 = vmatprep.subr.mxu0 0.0
    %859 = vmatpush1.msra.mxu0 0.0
    %860 = vmatprep.subr.mxu0 0.0
    %861 = vmatpush1.msra.mxu0 0.0
    %862 = vmatprep.subr.mxu0 0.0
    %863 = vmatpush1.msra.mxu0 0.0
    %864 = vmatprep.subr.mxu0 0.0
    %865 = vmatpush1.msra.mxu0 0.0
    %866 = vmatprep.subr.mxu0 0.0
    %867 = vmatpush1.msra.mxu0 0.0
    %868 = vmatprep.subr.mxu0 0.0
    %869 = vmatpush1.msra.mxu0 0.0
    %870 = vmatprep.mubr.f32.mxu0 0.0
    %871 = vmatmul.mubr.f32.gmra.mrb[0].mxu0 %v799
    %v872 = vpop.f32.mrb[0].mxu0
    %v873 = vadd.f32 %v802, %v872
    %v874 = vpop.f32.mrb[0].mxu0
    %v875 = vadd.f32 %v803, %v874
    %876 = vdwg.mxu0
    %877 = vmatprep.subr.mxu0 %v281
    %878 = vmatpush1.msra.mxu0 %v280
    %879 = vmatprep.subr.mxu0 %v285
    %880 = vmatpush1.msra.mxu0 %v284
    %881 = vmatprep.subr.mxu0 %v289
    %882 = vmatpush1.msra.mxu0 %v288
    %883 = vmatprep.subr.mxu0 %v293
    %884 = vmatpush1.msra.mxu0 %v292
    %885 = vmatprep.subr.mxu0 %v297
    %886 = vmatpush1.msra.mxu0 %v296
    %887 = vmatprep.subr.mxu0 %v301
    %888 = vmatpush1.msra.mxu0 %v300
    %889 = vmatprep.subr.mxu0 %v305
    %890 = vmatpush1.msra.mxu0 %v304
    %891 = vmatprep.subr.mxu0 %v309
    %892 = vmatpush1.msra.mxu0 %v308
    %893 = vmatprep.subr.mxu0 %v313
    %894 = vmatpush1.msra.mxu0 %v312
    %895 = vmatprep.subr.mxu0 %v317
    %896 = vmatpush1.msra.mxu0 %v316
    %897 = vmatprep.subr.mxu0 %v321
    %898 = vmatpush1.msra.mxu0 %v320
    %899 = vmatprep.subr.mxu0 %v325
    %900 = vmatpush1.msra.mxu0 %v324
    %901 = vmatprep.subr.mxu0 %v329
    %902 = vmatpush1.msra.mxu0 %v328
    %903 = vmatprep.subr.mxu0 %v333
    %904 = vmatpush1.msra.mxu0 %v332
    %905 = vmatprep.subr.mxu0 %v337
    %906 = vmatpush1.msra.mxu0 %v336
    %907 = vmatprep.subr.mxu0 %v341
    %908 = vmatpush1.msra.mxu0 %v340
    %909 = vmatprep.subr.mxu0 0.0
    %910 = vmatpush1.msra.mxu0 0.0
    %911 = vmatprep.subr.mxu0 0.0
    %912 = vmatpush1.msra.mxu0 0.0
    %913 = vmatprep.subr.mxu0 0.0
    %914 = vmatpush1.msra.mxu0 0.0
    %915 = vmatprep.subr.mxu0 0.0
    %916 = vmatpush1.msra.mxu0 0.0
    %917 = vmatprep.subr.mxu0 0.0
    %918 = vmatpush1.msra.mxu0 0.0
    %919 = vmatprep.subr.mxu0 0.0
    %920 = vmatpush1.msra.mxu0 0.0
    %921 = vmatprep.subr.mxu0 0.0
    %922 = vmatpush1.msra.mxu0 0.0
    %923 = vmatprep.subr.mxu0 0.0
    %924 = vmatpush1.msra.mxu0 0.0
    %925 = vmatprep.subr.mxu0 0.0
    %926 = vmatpush1.msra.mxu0 0.0
    %927 = vmatprep.subr.mxu0 0.0
    %928 = vmatpush1.msra.mxu0 0.0
    %929 = vmatprep.subr.mxu0 0.0
    %930 = vmatpush1.msra.mxu0 0.0
    %931 = vmatprep.subr.mxu0 0.0
    %932 = vmatpush1.msra.mxu0 0.0
    %933 = vmatprep.subr.mxu0 0.0
    %934 = vmatpush1.msra.mxu0 0.0
    %935 = vmatprep.subr.mxu0 0.0
    %936 = vmatpush1.msra.mxu0 0.0
    %937 = vmatprep.subr.mxu0 0.0
    %938 = vmatpush1.msra.mxu0 0.0
    %939 = vmatprep.subr.mxu0 0.0
    %940 = vmatpush1.msra.mxu0 0.0
    %941 = vmatprep.mubr.f32.mxu0 0.0
    %942 = vmatmul.mubr.f32.gmra.mrb[0].mxu0 %v799
    %v943 = vpop.f32.mrb[0].mxu0
    %v944 = vadd.f32 %v804, %v943
    %v945 = vpop.f32.mrb[0].mxu0
    %v946 = vadd.f32 %v805, %v945
    %947 = vdwg.mxu0
    %v948 = vxor.u32 %v873, 2147483648
    %v949 = vmul.f32 %v948, 1.442695
    %v950 = vpow.pop %v949
    %v951 = vadd.f32 %v950, 1.0
    %v952 = vrcp.pop %v951
    %v953 = vmul.f32 1.0, %v952
    %v954 = vxor.u32 %v875, 2147483648
    %v955 = vmul.f32 %v954, 1.442695
    %v956 = vpow.pop %v955
    %v957 = vadd.f32 %v956, 1.0
    %v958 = vrcp.pop %v957
    %v959 = vmul.f32 1.0, %v958
    %v960 = vtanh.pop %v944
    %v961 = vxor.u32 %v946, 2147483648
    %v962 = vmul.f32 %v961, 1.442695
    %v963 = vpow.pop %v962
    %v964 = vadd.f32 %v963, 1.0
    %v965 = vrcp.pop %v964
    %v966 = vmul.f32 1.0, %v965
    %v967 = vmul.f32 %v959, %v797
    %v968 = vmul.f32 %v953, %v960
    %v969 = vadd.f32 %v967, %v968
    %v970 = vtanh.pop %v969
    %v971 = vmul.f32 %v966, %v970
    %s972 = scalar_lea.vmem [#allocation3], 8
    %973 = vst [vmem:[%s972] sm:$0xff] %v971
    %s974 = scalar_lea.vmem [#allocation4], 64
    %v975 = vld [vmem:[%s974] sm:$0xff]
    %v976 = vld [vmem:[%s974 + $0x8] sm:$0xff]
    %v977 = vld [vmem:[%s974 + $0x10] sm:$0xff]
    %v978 = vld [vmem:[%s974 + $0x18] sm:$0xff]
    %979 = vmatprep.subr.mxu0 %v279
    %980 = vmatpush1.msra.mxu0 %v278
    %981 = vmatprep.subr.mxu0 %v283
    %982 = vmatpush1.msra.mxu0 %v282
    %983 = vmatprep.subr.mxu0 %v287
    %984 = vmatpush1.msra.mxu0 %v286
    %985 = vmatprep.subr.mxu0 %v291
    %986 = vmatpush1.msra.mxu0 %v290
    %987 = vmatprep.subr.mxu0 %v295
    %988 = vmatpush1.msra.mxu0 %v294
    %989 = vmatprep.subr.mxu0 %v299
    %990 = vmatpush1.msra.mxu0 %v298
    %991 = vmatprep.subr.mxu0 %v303
    %992 = vmatpush1.msra.mxu0 %v302
    %993 = vmatprep.subr.mxu0 %v307
    %994 = vmatpush1.msra.mxu0 %v306
    %995 = vmatprep.subr.mxu0 %v311
    %996 = vmatpush1.msra.mxu0 %v310
    %997 = vmatprep.subr.mxu0 %v315
    %998 = vmatpush1.msra.mxu0 %v314
    %999 = vmatprep.subr.mxu0 %v319
    %1000 = vmatpush1.msra.mxu0 %v318
    %1001 = vmatprep.subr.mxu0 %v323
    %1002 = vmatpush1.msra.mxu0 %v322
    %1003 = vmatprep.subr.mxu0 %v327
    %1004 = vmatpush1.msra.mxu0 %v326
    %1005 = vmatprep.subr.mxu0 %v331
    %1006 = vmatpush1.msra.mxu0 %v330
    %1007 = vmatprep.subr.mxu0 %v335
    %1008 = vmatpush1.msra.mxu0 %v334
    %1009 = vmatprep.subr.mxu0 %v339
    %1010 = vmatpush1.msra.mxu0 %v338
    %1011 = vmatprep.subr.mxu0 0.0
    %1012 = vmatpush1.msra.mxu0 0.0
    %1013 = vmatprep.subr.mxu0 0.0
    %1014 = vmatpush1.msra.mxu0 0.0
    %1015 = vmatprep.subr.mxu0 0.0
    %1016 = vmatpush1.msra.mxu0 0.0
    %1017 = vmatprep.subr.mxu0 0.0
    %1018 = vmatpush1.msra.mxu0 0.0
    %1019 = vmatprep.subr.mxu0 0.0
    %1020 = vmatpush1.msra.mxu0 0.0
    %1021 = vmatprep.subr.mxu0 0.0
    %1022 = vmatpush1.msra.mxu0 0.0
    %1023 = vmatprep.subr.mxu0 0.0
    %1024 = vmatpush1.msra.mxu0 0.0
    %1025 = vmatprep.subr.mxu0 0.0
    %1026 = vmatpush1.msra.mxu0 0.0
    %1027 = vmatprep.subr.mxu0 0.0
    %1028 = vmatpush1.msra.mxu0 0.0
    %1029 = vmatprep.subr.mxu0 0.0
    %1030 = vmatpush1.msra.mxu0 0.0
    %1031 = vmatprep.subr.mxu0 0.0
    %1032 = vmatpush1.msra.mxu0 0.0
    %1033 = vmatprep.subr.mxu0 0.0
    %1034 = vmatpush1.msra.mxu0 0.0
    %1035 = vmatprep.subr.mxu0 0.0
    %1036 = vmatpush1.msra.mxu0 0.0
    %1037 = vmatprep.subr.mxu0 0.0
    %1038 = vmatpush1.msra.mxu0 0.0
    %1039 = vmatprep.subr.mxu0 0.0
    %1040 = vmatpush1.msra.mxu0 0.0
    %1041 = vmatprep.subr.mxu0 0.0
    %1042 = vmatpush1.msra.mxu0 0.0
    %1043 = vmatprep.mubr.f32.mxu0 0.0
    %1044 = vmatmul.mubr.f32.gmra.mrb[0].mxu0 %v971
    %v1045 = vpop.f32.mrb[0].mxu0
    %v1046 = vadd.f32 %v975, %v1045
    %v1047 = vpop.f32.mrb[0].mxu0
    %v1048 = vadd.f32 %v976, %v1047
    %1049 = vdwg.mxu0
    %1050 = vmatprep.subr.mxu0 %v281
    %1051 = vmatpush1.msra.mxu0 %v280
    %1052 = vmatprep.subr.mxu0 %v285
    %1053 = vmatpush1.msra.mxu0 %v284
    %1054 = vmatprep.subr.mxu0 %v289
    %1055 = vmatpush1.msra.mxu0 %v288
    %1056 = vmatprep.subr.mxu0 %v293
    %1057 = vmatpush1.msra.mxu0 %v292
    %1058 = vmatprep.subr.mxu0 %v297
    %1059 = vmatpush1.msra.mxu0 %v296
    %1060 = vmatprep.subr.mxu0 %v301
    %1061 = vmatpush1.msra.mxu0 %v300
    %1062 = vmatprep.subr.mxu0 %v305
    %1063 = vmatpush1.msra.mxu0 %v304
    %1064 = vmatprep.subr.mxu0 %v309
    %1065 = vmatpush1.msra.mxu0 %v308
    %1066 = vmatprep.subr.mxu0 %v313
    %1067 = vmatpush1.msra.mxu0 %v312
    %1068 = vmatprep.subr.mxu0 %v317
    %1069 = vmatpush1.msra.mxu0 %v316
    %1070 = vmatprep.subr.mxu0 %v321
    %1071 = vmatpush1.msra.mxu0 %v320
    %1072 = vmatprep.subr.mxu0 %v325
    %1073 = vmatpush1.msra.mxu0 %v324
    %1074 = vmatprep.subr.mxu0 %v329
    %1075 = vmatpush1.msra.mxu0 %v328
    %1076 = vmatprep.subr.mxu0 %v333
    %1077 = vmatpush1.msra.mxu0 %v332
    %1078 = vmatprep.subr.mxu0 %v337
    %1079 = vmatpush1.msra.mxu0 %v336
    %1080 = vmatprep.subr.mxu0 %v341
    %1081 = vmatpush1.msra.mxu0 %v340
    %1082 = vmatprep.subr.mxu0 0.0
    %1083 = vmatpush1.msra.mxu0 0.0
    %1084 = vmatprep.subr.mxu0 0.0
    %1085 = vmatpush1.msra.mxu0 0.0
    %1086 = vmatprep.subr.mxu0 0.0
    %1087 = vmatpush1.msra.mxu0 0.0
    %1088 = vmatprep.subr.mxu0 0.0
    %1089 = vmatpush1.msra.mxu0 0.0
    %1090 = vmatprep.subr.mxu0 0.0
    %1091 = vmatpush1.msra.mxu0 0.0
    %1092 = vmatprep.subr.mxu0 0.0
    %1093 = vmatpush1.msra.mxu0 0.0
    %1094 = vmatprep.subr.mxu0 0.0
    %1095 = vmatpush1.msra.mxu0 0.0
    %1096 = vmatprep.subr.mxu0 0.0
    %1097 = vmatpush1.msra.mxu0 0.0
    %1098 = vmatprep.subr.mxu0 0.0
    %1099 = vmatpush1.msra.mxu0 0.0
    %1100 = vmatprep.subr.mxu0 0.0
    %1101 = vmatpush1.msra.mxu0 0.0
    %1102 = vmatprep.subr.mxu0 0.0
    %1103 = vmatpush1.msra.mxu0 0.0
    %1104 = vmatprep.subr.mxu0 0.0
    %1105 = vmatpush1.msra.mxu0 0.0
    %1106 = vmatprep.subr.mxu0 0.0
    %1107 = vmatpush1.msra.mxu0 0.0
    %1108 = vmatprep.subr.mxu0 0.0
    %1109 = vmatpush1.msra.mxu0 0.0
    %1110 = vmatprep.subr.mxu0 0.0
    %1111 = vmatpush1.msra.mxu0 0.0
    %1112 = vmatprep.subr.mxu0 0.0
    %1113 = vmatpush1.msra.mxu0 0.0
    %1114 = vmatprep.mubr.f32.mxu0 0.0
    %1115 = vmatmul.mubr.f32.gmra.mrb[0].mxu0 %v971
    %v1116 = vpop.f32.mrb[0].mxu0
    %v1117 = vadd.f32 %v977, %v1116
    %v1118 = vpop.f32.mrb[0].mxu0
    %v1119 = vadd.f32 %v978, %v1118
    %1120 = vdwg.mxu0
    %v1121 = vxor.u32 %v1046, 2147483648
    %v1122 = vmul.f32 %v1121, 1.442695
    %v1123 = vpow.pop %v1122
    %v1124 = vadd.f32 %v1123, 1.0
    %v1125 = vrcp.pop %v1124
    %v1126 = vmul.f32 1.0, %v1125
    %v1127 = vxor.u32 %v1048, 2147483648
    %v1128 = vmul.f32 %v1127, 1.442695
    %v1129 = vpow.pop %v1128
    %v1130 = vadd.f32 %v1129, 1.0
    %v1131 = vrcp.pop %v1130
    %v1132 = vmul.f32 1.0, %v1131
    %v1133 = vtanh.pop %v1117
    %v1134 = vxor.u32 %v1119, 2147483648
    %v1135 = vmul.f32 %v1134, 1.442695
    %v1136 = vpow.pop %v1135
    %v1137 = vadd.f32 %v1136, 1.0
    %v1138 = vrcp.pop %v1137
    %v1139 = vmul.f32 1.0, %v1138
    %v1140 = vmul.f32 %v1132, %v969
    %v1141 = vmul.f32 %v1126, %v1133
    %v1142 = vadd.f32 %v1140, %v1141
    %v1143 = vtanh.pop %v1142
    %v1144 = vmul.f32 %v1139, %v1143
    %s1145 = scalar_lea.vmem [#allocation3], 16
    %1146 = vst [vmem:[%s1145] sm:$0xff] %v1144
    %s1147 = scalar_lea.vmem [#allocation4], 96
    %v1148 = vld [vmem:[%s1147] sm:$0xff]
    %v1149 = vld [vmem:[%s1147 + $0x8] sm:$0xff]
    %v1150 = vld [vmem:[%s1147 + $0x10] sm:$0xff]
    %v1151 = vld [vmem:[%s1147 + $0x18] sm:$0xff]
    %1152 = vmatprep.subr.mxu0 %v279
    %1153 = vmatpush1.msra.mxu0 %v278
    %1154 = vmatprep.subr.mxu0 %v283
    %1155 = vmatpush1.msra.mxu0 %v282
    %1156 = vmatprep.subr.mxu0 %v287
    %1157 = vmatpush1.msra.mxu0 %v286
    %1158 = vmatprep.subr.mxu0 %v291
    %1159 = vmatpush1.msra.mxu0 %v290
    %1160 = vmatprep.subr.mxu0 %v295
    %1161 = vmatpush1.msra.mxu0 %v294
    %1162 = vmatprep.subr.mxu0 %v299
    %1163 = vmatpush1.msra.mxu0 %v298
    %1164 = vmatprep.subr.mxu0 %v303
    %1165 = vmatpush1.msra.mxu0 %v302
    %1166 = vmatprep.subr.mxu0 %v307
    %1167 = vmatpush1.msra.mxu0 %v306
    %1168 = vmatprep.subr.mxu0 %v311
    %1169 = vmatpush1.msra.mxu0 %v310
    %1170 = vmatprep.subr.mxu0 %v315
    %1171 = vmatpush1.msra.mxu0 %v314
    %1172 = vmatprep.subr.mxu0 %v319
    %1173 = vmatpush1.msra.mxu0 %v318
    %1174 = vmatprep.subr.mxu0 %v323
    %1175 = vmatpush1.msra.mxu0 %v322
    %1176 = vmatprep.subr.mxu0 %v327
    %1177 = vmatpush1.msra.mxu0 %v326
    %1178 = vmatprep.subr.mxu0 %v331
    %1179 = vmatpush1.msra.mxu0 %v330
    %1180 = vmatprep.subr.mxu0 %v335
    %1181 = vmatpush1.msra.mxu0 %v334
    %1182 = vmatprep.subr.mxu0 %v339
    %1183 = vmatpush1.msra.mxu0 %v338
    %1184 = vmatprep.subr.mxu0 0.0
    %1185 = vmatpush1.msra.mxu0 0.0
    %1186 = vmatprep.subr.mxu0 0.0
    %1187 = vmatpush1.msra.mxu0 0.0
    %1188 = vmatprep.subr.mxu0 0.0
    %1189 = vmatpush1.msra.mxu0 0.0
    %1190 = vmatprep.subr.mxu0 0.0
    %1191 = vmatpush1.msra.mxu0 0.0
    %1192 = vmatprep.subr.mxu0 0.0
    %1193 = vmatpush1.msra.mxu0 0.0
    %1194 = vmatprep.subr.mxu0 0.0
    %1195 = vmatpush1.msra.mxu0 0.0
    %1196 = vmatprep.subr.mxu0 0.0
    %1197 = vmatpush1.msra.mxu0 0.0
    %1198 = vmatprep.subr.mxu0 0.0
    %1199 = vmatpush1.msra.mxu0 0.0
    %1200 = vmatprep.subr.mxu0 0.0
    %1201 = vmatpush1.msra.mxu0 0.0
    %1202 = vmatprep.subr.mxu0 0.0
    %1203 = vmatpush1.msra.mxu0 0.0
    %1204 = vmatprep.subr.mxu0 0.0
    %1205 = vmatpush1.msra.mxu0 0.0
    %1206 = vmatprep.subr.mxu0 0.0
    %1207 = vmatpush1.msra.mxu0 0.0
    %1208 = vmatprep.subr.mxu0 0.0
    %1209 = vmatpush1.msra.mxu0 0.0
    %1210 = vmatprep.subr.mxu0 0.0
    %1211 = vmatpush1.msra.mxu0 0.0
    %1212 = vmatprep.subr.mxu0 0.0
    %1213 = vmatpush1.msra.mxu0 0.0
    %1214 = vmatprep.subr.mxu0 0.0
    %1215 = vmatpush1.msra.mxu0 0.0
    %1216 = vmatprep.mubr.f32.mxu0 0.0
    %1217 = vmatmul.mubr.f32.gmra.mrb[0].mxu0 %v1144
    %v1218 = vpop.f32.mrb[0].mxu0
    %v1219 = vadd.f32 %v1148, %v1218
    %v1220 = vpop.f32.mrb[0].mxu0
    %v1221 = vadd.f32 %v1149, %v1220
    %1222 = vdwg.mxu0
    %1223 = vmatprep.subr.mxu0 %v281
    %1224 = vmatpush1.msra.mxu0 %v280
    %1225 = vmatprep.subr.mxu0 %v285
    %1226 = vmatpush1.msra.mxu0 %v284
    %1227 = vmatprep.subr.mxu0 %v289
    %1228 = vmatpush1.msra.mxu0 %v288
    %1229 = vmatprep.subr.mxu0 %v293
    %1230 = vmatpush1.msra.mxu0 %v292
    %1231 = vmatprep.subr.mxu0 %v297
    %1232 = vmatpush1.msra.mxu0 %v296
    %1233 = vmatprep.subr.mxu0 %v301
    %1234 = vmatpush1.msra.mxu0 %v300
    %1235 = vmatprep.subr.mxu0 %v305
    %1236 = vmatpush1.msra.mxu0 %v304
    %1237 = vmatprep.subr.mxu0 %v309
    %1238 = vmatpush1.msra.mxu0 %v308
    %1239 = vmatprep.subr.mxu0 %v313
    %1240 = vmatpush1.msra.mxu0 %v312
    %1241 = vmatprep.subr.mxu0 %v317
    %1242 = vmatpush1.msra.mxu0 %v316
    %1243 = vmatprep.subr.mxu0 %v321
    %1244 = vmatpush1.msra.mxu0 %v320
    %1245 = vmatprep.subr.mxu0 %v325
    %1246 = vmatpush1.msra.mxu0 %v324
    %1247 = vmatprep.subr.mxu0 %v329
    %1248 = vmatpush1.msra.mxu0 %v328
    %1249 = vmatprep.subr.mxu0 %v333
    %1250 = vmatpush1.msra.mxu0 %v332
    %1251 = vmatprep.subr.mxu0 %v337
    %1252 = vmatpush1.msra.mxu0 %v336
    %1253 = vmatprep.subr.mxu0 %v341
    %1254 = vmatpush1.msra.mxu0 %v340
    %1255 = vmatprep.subr.mxu0 0.0
    %1256 = vmatpush1.msra.mxu0 0.0
    %1257 = vmatprep.subr.mxu0 0.0
    %1258 = vmatpush1.msra.mxu0 0.0
    %1259 = vmatprep.subr.mxu0 0.0
    %1260 = vmatpush1.msra.mxu0 0.0
    %1261 = vmatprep.subr.mxu0 0.0
    %1262 = vmatpush1.msra.mxu0 0.0
    %1263 = vmatprep.subr.mxu0 0.0
    %1264 = vmatpush1.msra.mxu0 0.0
    %1265 = vmatprep.subr.mxu0 0.0
    %1266 = vmatpush1.msra.mxu0 0.0
    %1267 = vmatprep.subr.mxu0 0.0
    %1268 = vmatpush1.msra.mxu0 0.0
    %1269 = vmatprep.subr.mxu0 0.0
    %1270 = vmatpush1.msra.mxu0 0.0
    %1271 = vmatprep.subr.mxu0 0.0
    %1272 = vmatpush1.msra.mxu0 0.0
    %1273 = vmatprep.subr.mxu0 0.0
    %1274 = vmatpush1.msra.mxu0 0.0
    %1275 = vmatprep.subr.mxu0 0.0
    %1276 = vmatpush1.msra.mxu0 0.0
    %1277 = vmatprep.subr.mxu0 0.0
    %1278 = vmatpush1.msra.mxu0 0.0
    %1279 = vmatprep.subr.mxu0 0.0
    %1280 = vmatpush1.msra.mxu0 0.0
    %1281 = vmatprep.subr.mxu0 0.0
    %1282 = vmatpush1.msra.mxu0 0.0
    %1283 = vmatprep.subr.mxu0 0.0
    %1284 = vmatpush1.msra.mxu0 0.0
    %1285 = vmatprep.subr.mxu0 0.0
    %1286 = vmatpush1.msra.mxu0 0.0
    %1287 = vmatprep.mubr.f32.mxu0 0.0
    %1288 = vmatmul.mubr.f32.gmra.mrb[0].mxu0 %v1144
    %v1289 = vpop.f32.mrb[0].mxu0
    %v1290 = vadd.f32 %v1150, %v1289
    %v1291 = vpop.f32.mrb[0].mxu0
    %v1292 = vadd.f32 %v1151, %v1291
    %1293 = vdwg.mxu0
    %v1294 = vxor.u32 %v1219, 2147483648
    %v1295 = vmul.f32 %v1294, 1.442695
    %v1296 = vpow.pop %v1295
    %v1297 = vadd.f32 %v1296, 1.0
    %v1298 = vrcp.pop %v1297
    %v1299 = vmul.f32 1.0, %v1298
    %v1300 = vxor.u32 %v1221, 2147483648
    %v1301 = vmul.f32 %v1300, 1.442695
    %v1302 = vpow.pop %v1301
    %v1303 = vadd.f32 %v1302, 1.0
    %v1304 = vrcp.pop %v1303
    %v1305 = vmul.f32 1.0, %v1304
    %v1306 = vtanh.pop %v1290
    %v1307 = vxor.u32 %v1292, 2147483648
    %v1308 = vmul.f32 %v1307, 1.442695
    %v1309 = vpow.pop %v1308
    %v1310 = vadd.f32 %v1309, 1.0
    %v1311 = vrcp.pop %v1310
    %v1312 = vmul.f32 1.0, %v1311
    %v1313 = vmul.f32 %v1305, %v1142
    %v1314 = vmul.f32 %v1299, %v1306
    %v1315 = vadd.f32 %v1313, %v1314
    %v1316 = vtanh.pop %v1315
    %v1317 = vmul.f32 %v1312, %v1316
    %s1318 = scalar_lea.vmem [#allocation3], 24
    %1319 = vst [vmem:[%s1318] sm:$0xff] %v1317
    %s1320 = scalar_lea.vmem [#allocation4], 128
    %v1321 = vld [vmem:[%s1320] sm:$0xff]
    %v1322 = vld [vmem:[%s1320 + $0x8] sm:$0xff]
    %v1323 = vld [vmem:[%s1320 + $0x10] sm:$0xff]
    %v1324 = vld [vmem:[%s1320 + $0x18] sm:$0xff]
    %1325 = vmatprep.subr.mxu0 %v279
    %1326 = vmatpush1.msra.mxu0 %v278
    %1327 = vmatprep.subr.mxu0 %v283
    %1328 = vmatpush1.msra.mxu0 %v282
    %1329 = vmatprep.subr.mxu0 %v287
    %1330 = vmatpush1.msra.mxu0 %v286
    %1331 = vmatprep.subr.mxu0 %v291
    %1332 = vmatpush1.msra.mxu0 %v290
    %1333 = vmatprep.subr.mxu0 %v295
    %1334 = vmatpush1.msra.mxu0 %v294
    %1335 = vmatprep.subr.mxu0 %v299
    %1336 = vmatpush1.msra.mxu0 %v298
    %1337 = vmatprep.subr.mxu0 %v303
    %1338 = vmatpush1.msra.mxu0 %v302
    %1339 = vmatprep.subr.mxu0 %v307
    %1340 = vmatpush1.msra.mxu0 %v306
    %1341 = vmatprep.subr.mxu0 %v311
    %1342 = vmatpush1.msra.mxu0 %v310
    %1343 = vmatprep.subr.mxu0 %v315
    %1344 = vmatpush1.msra.mxu0 %v314
    %1345 = vmatprep.subr.mxu0 %v319
    %1346 = vmatpush1.msra.mxu0 %v318
    %1347 = vmatprep.subr.mxu0 %v323
    %1348 = vmatpush1.msra.mxu0 %v322
    %1349 = vmatprep.subr.mxu0 %v327
    %1350 = vmatpush1.msra.mxu0 %v326
    %1351 = vmatprep.subr.mxu0 %v331
    %1352 = vmatpush1.msra.mxu0 %v330
    %1353 = vmatprep.subr.mxu0 %v335
    %1354 = vmatpush1.msra.mxu0 %v334
    %1355 = vmatprep.subr.mxu0 %v339
    %1356 = vmatpush1.msra.mxu0 %v338
    %1357 = vmatprep.subr.mxu0 0.0
    %1358 = vmatpush1.msra.mxu0 0.0
    %1359 = vmatprep.subr.mxu0 0.0
    %1360 = vmatpush1.msra.mxu0 0.0
    %1361 = vmatprep.subr.mxu0 0.0
    %1362 = vmatpush1.msra.mxu0 0.0
    %1363 = vmatprep.subr.mxu0 0.0
    %1364 = vmatpush1.msra.mxu0 0.0
    %1365 = vmatprep.subr.mxu0 0.0
    %1366 = vmatpush1.msra.mxu0 0.0
    %1367 = vmatprep.subr.mxu0 0.0
    %1368 = vmatpush1.msra.mxu0 0.0
    %1369 = vmatprep.subr.mxu0 0.0
    %1370 = vmatpush1.msra.mxu0 0.0
    %1371 = vmatprep.subr.mxu0 0.0
    %1372 = vmatpush1.msra.mxu0 0.0
    %1373 = vmatprep.subr.mxu0 0.0
    %1374 = vmatpush1.msra.mxu0 0.0
    %1375 = vmatprep.subr.mxu0 0.0
    %1376 = vmatpush1.msra.mxu0 0.0
    %1377 = vmatprep.subr.mxu0 0.0
    %1378 = vmatpush1.msra.mxu0 0.0
    %1379 = vmatprep.subr.mxu0 0.0
    %1380 = vmatpush1.msra.mxu0 0.0
    %1381 = vmatprep.subr.mxu0 0.0
    %1382 = vmatpush1.msra.mxu0 0.0
    %1383 = vmatprep.subr.mxu0 0.0
    %1384 = vmatpush1.msra.mxu0 0.0
    %1385 = vmatprep.subr.mxu0 0.0
    %1386 = vmatpush1.msra.mxu0 0.0
    %1387 = vmatprep.subr.mxu0 0.0
    %1388 = vmatpush1.msra.mxu0 0.0
    %1389 = vmatprep.mubr.f32.mxu0 0.0
    %1390 = vmatmul.mubr.f32.gmra.mrb[0].mxu0 %v1317
    %v1391 = vpop.f32.mrb[0].mxu0
    %v1392 = vadd.f32 %v1321, %v1391
    %v1393 = vpop.f32.mrb[0].mxu0
    %v1394 = vadd.f32 %v1322, %v1393
    %1395 = vdwg.mxu0
    %1396 = vmatprep.subr.mxu0 %v281
    %1397 = vmatpush1.msra.mxu0 %v280
    %1398 = vmatprep.subr.mxu0 %v285
    %1399 = vmatpush1.msra.mxu0 %v284
    %1400 = vmatprep.subr.mxu0 %v289
    %1401 = vmatpush1.msra.mxu0 %v288
    %1402 = vmatprep.subr.mxu0 %v293
    %1403 = vmatpush1.msra.mxu0 %v292
    %1404 = vmatprep.subr.mxu0 %v297
    %1405 = vmatpush1.msra.mxu0 %v296
    %1406 = vmatprep.subr.mxu0 %v301
    %1407 = vmatpush1.msra.mxu0 %v300
    %1408 = vmatprep.subr.mxu0 %v305
    %1409 = vmatpush1.msra.mxu0 %v304
    %1410 = vmatprep.subr.mxu0 %v309
    %1411 = vmatpush1.msra.mxu0 %v308
    %1412 = vmatprep.subr.mxu0 %v313
    %1413 = vmatpush1.msra.mxu0 %v312
    %1414 = vmatprep.subr.mxu0 %v317
    %1415 = vmatpush1.msra.mxu0 %v316
    %1416 = vmatprep.subr.mxu0 %v321
    %1417 = vmatpush1.msra.mxu0 %v320
    %1418 = vmatprep.subr.mxu0 %v325
    %1419 = vmatpush1.msra.mxu0 %v324
    %1420 = vmatprep.subr.mxu0 %v329
    %1421 = vmatpush1.msra.mxu0 %v328
    %1422 = vmatprep.subr.mxu0 %v333
    %1423 = vmatpush1.msra.mxu0 %v332
    %1424 = vmatprep.subr.mxu0 %v337
    %1425 = vmatpush1.msra.mxu0 %v336
    %1426 = vmatprep.subr.mxu0 %v341
    %1427 = vmatpush1.msra.mxu0 %v340
    %1428 = vmatprep.subr.mxu0 0.0
    %1429 = vmatpush1.msra.mxu0 0.0
    %1430 = vmatprep.subr.mxu0 0.0
    %1431 = vmatpush1.msra.mxu0 0.0
    %1432 = vmatprep.subr.mxu0 0.0
    %1433 = vmatpush1.msra.mxu0 0.0
    %1434 = vmatprep.subr.mxu0 0.0
    %1435 = vmatpush1.msra.mxu0 0.0
    %1436 = vmatprep.subr.mxu0 0.0
    %1437 = vmatpush1.msra.mxu0 0.0
    %1438 = vmatprep.subr.mxu0 0.0
    %1439 = vmatpush1.msra.mxu0 0.0
    %1440 = vmatprep.subr.mxu0 0.0
    %1441 = vmatpush1.msra.mxu0 0.0
    %1442 = vmatprep.subr.mxu0 0.0
    %1443 = vmatpush1.msra.mxu0 0.0
    %1444 = vmatprep.subr.mxu0 0.0
    %1445 = vmatpush1.msra.mxu0 0.0
    %1446 = vmatprep.subr.mxu0 0.0
    %1447 = vmatpush1.msra.mxu0 0.0
    %1448 = vmatprep.subr.mxu0 0.0
    %1449 = vmatpush1.msra.mxu0 0.0
    %1450 = vmatprep.subr.mxu0 0.0
    %1451 = vmatpush1.msra.mxu0 0.0
    %1452 = vmatprep.subr.mxu0 0.0
    %1453 = vmatpush1.msra.mxu0 0.0
    %1454 = vmatprep.subr.mxu0 0.0
    %1455 = vmatpush1.msra.mxu0 0.0
    %1456 = vmatprep.subr.mxu0 0.0
    %1457 = vmatpush1.msra.mxu0 0.0
    %1458 = vmatprep.subr.mxu0 0.0
    %1459 = vmatpush1.msra.mxu0 0.0
    %1460 = vmatprep.mubr.f32.mxu0 0.0
    %1461 = vmatmul.mubr.f32.gmra.mrb[0].mxu0 %v1317
    %v1462 = vpop.f32.mrb[0].mxu0
    %v1463 = vadd.f32 %v1323, %v1462
    %v1464 = vpop.f32.mrb[0].mxu0
    %v1465 = vadd.f32 %v1324, %v1464
    %1466 = vdwg.mxu0
    %v1467 = vxor.u32 %v1392, 2147483648
    %v1468 = vmul.f32 %v1467, 1.442695
    %v1469 = vpow.pop %v1468
    %v1470 = vadd.f32 %v1469, 1.0
    %v1471 = vrcp.pop %v1470
    %v1472 = vmul.f32 1.0, %v1471
    %v1473 = vxor.u32 %v1394, 2147483648
    %v1474 = vmul.f32 %v1473, 1.442695
    %v1475 = vpow.pop %v1474
    %v1476 = vadd.f32 %v1475, 1.0
    %v1477 = vrcp.pop %v1476
    %v1478 = vmul.f32 1.0, %v1477
    %v1479 = vtanh.pop %v1463
    %v1480 = vxor.u32 %v1465, 2147483648
    %v1481 = vmul.f32 %v1480, 1.442695
    %v1482 = vpow.pop %v1481
    %v1483 = vadd.f32 %v1482, 1.0
    %v1484 = vrcp.pop %v1483
    %v1485 = vmul.f32 1.0, %v1484
    %v1486 = vmul.f32 %v1478, %v1315
    %v1487 = vmul.f32 %v1472, %v1479
    %v1488 = vadd.f32 %v1486, %v1487
    %v1489 = vtanh.pop %v1488
    %v1490 = vmul.f32 %v1485, %v1489
    %s1491 = scalar_lea.vmem [#allocation3], 32
    %1492 = vst [vmem:[%s1491] sm:$0xff] %v1490
    %s1493 = scalar_lea.vmem [#allocation4], 160
    %v1494 = vld [vmem:[%s1493] sm:$0xff]
    %v1495 = vld [vmem:[%s1493 + $0x8] sm:$0xff]
    %v1496 = vld [vmem:[%s1493 + $0x10] sm:$0xff]
    %v1497 = vld [vmem:[%s1493 + $0x18] sm:$0xff]
    %1498 = vmatprep.subr.mxu0 %v279
    %1499 = vmatpush1.msra.mxu0 %v278
    %1500 = vmatprep.subr.mxu0 %v283
    %1501 = vmatpush1.msra.mxu0 %v282
    %1502 = vmatprep.subr.mxu0 %v287
    %1503 = vmatpush1.msra.mxu0 %v286
    %1504 = vmatprep.subr.mxu0 %v291
    %1505 = vmatpush1.msra.mxu0 %v290
    %1506 = vmatprep.subr.mxu0 %v295
    %1507 = vmatpush1.msra.mxu0 %v294
    %1508 = vmatprep.subr.mxu0 %v299
    %1509 = vmatpush1.msra.mxu0 %v298
    %1510 = vmatprep.subr.mxu0 %v303
    %1511 = vmatpush1.msra.mxu0 %v302
    %1512 = vmatprep.subr.mxu0 %v307
    %1513 = vmatpush1.msra.mxu0 %v306
    %1514 = vmatprep.subr.mxu0 %v311
    %1515 = vmatpush1.msra.mxu0 %v310
    %1516 = vmatprep.subr.mxu0 %v315
    %1517 = vmatpush1.msra.mxu0 %v314
    %1518 = vmatprep.subr.mxu0 %v319
    %1519 = vmatpush1.msra.mxu0 %v318
    %1520 = vmatprep.subr.mxu0 %v323
    %1521 = vmatpush1.msra.mxu0 %v322
    %1522 = vmatprep.subr.mxu0 %v327
    %1523 = vmatpush1.msra.mxu0 %v326
    %1524 = vmatprep.subr.mxu0 %v331
    %1525 = vmatpush1.msra.mxu0 %v330
    %1526 = vmatprep.subr.mxu0 %v335
    %1527 = vmatpush1.msra.mxu0 %v334
    %1528 = vmatprep.subr.mxu0 %v339
    %1529 = vmatpush1.msra.mxu0 %v338
    %1530 = vmatprep.subr.mxu0 0.0
    %1531 = vmatpush1.msra.mxu0 0.0
    %1532 = vmatprep.subr.mxu0 0.0
    %1533 = vmatpush1.msra.mxu0 0.0
    %1534 = vmatprep.subr.mxu0 0.0
    %1535 = vmatpush1.msra.mxu0 0.0
    %1536 = vmatprep.subr.mxu0 0.0
    %1537 = vmatpush1.msra.mxu0 0.0
    %1538 = vmatprep.subr.mxu0 0.0
    %1539 = vmatpush1.msra.mxu0 0.0
    %1540 = vmatprep.subr.mxu0 0.0
    %1541 = vmatpush1.msra.mxu0 0.0
    %1542 = vmatprep.subr.mxu0 0.0
    %1543 = vmatpush1.msra.mxu0 0.0
    %1544 = vmatprep.subr.mxu0 0.0
    %1545 = vmatpush1.msra.mxu0 0.0
    %1546 = vmatprep.subr.mxu0 0.0
    %1547 = vmatpush1.msra.mxu0 0.0
    %1548 = vmatprep.subr.mxu0 0.0
    %1549 = vmatpush1.msra.mxu0 0.0
    %1550 = vmatprep.subr.mxu0 0.0
    %1551 = vmatpush1.msra.mxu0 0.0
    %1552 = vmatprep.subr.mxu0 0.0
    %1553 = vmatpush1.msra.mxu0 0.0
    %1554 = vmatprep.subr.mxu0 0.0
    %1555 = vmatpush1.msra.mxu0 0.0
    %1556 = vmatprep.subr.mxu0 0.0
    %1557 = vmatpush1.msra.mxu0 0.0
    %1558 = vmatprep.subr.mxu0 0.0
    %1559 = vmatpush1.msra.mxu0 0.0
    %1560 = vmatprep.subr.mxu0 0.0
    %1561 = vmatpush1.msra.mxu0 0.0
    %1562 = vmatprep.mubr.f32.mxu0 0.0
    %1563 = vmatmul.mubr.f32.gmra.mrb[0].mxu0 %v1490
    %v1564 = vpop.f32.mrb[0].mxu0
    %v1565 = vadd.f32 %v1494, %v1564
    %v1566 = vpop.f32.mrb[0].mxu0
    %v1567 = vadd.f32 %v1495, %v1566
    %1568 = vdwg.mxu0
    %1569 = vmatprep.subr.mxu0 %v281
    %1570 = vmatpush1.msra.mxu0 %v280
    %1571 = vmatprep.subr.mxu0 %v285
    %1572 = vmatpush1.msra.mxu0 %v284
    %1573 = vmatprep.subr.mxu0 %v289
    %1574 = vmatpush1.msra.mxu0 %v288
    %1575 = vmatprep.subr.mxu0 %v293
    %1576 = vmatpush1.msra.mxu0 %v292
    %1577 = vmatprep.subr.mxu0 %v297
    %1578 = vmatpush1.msra.mxu0 %v296
    %1579 = vmatprep.subr.mxu0 %v301
    %1580 = vmatpush1.msra.mxu0 %v300
    %1581 = vmatprep.subr.mxu0 %v305
    %1582 = vmatpush1.msra.mxu0 %v304
    %1583 = vmatprep.subr.mxu0 %v309
    %1584 = vmatpush1.msra.mxu0 %v308
    %1585 = vmatprep.subr.mxu0 %v313
    %1586 = vmatpush1.msra.mxu0 %v312
    %1587 = vmatprep.subr.mxu0 %v317
    %1588 = vmatpush1.msra.mxu0 %v316
    %1589 = vmatprep.subr.mxu0 %v321
    %1590 = vmatpush1.msra.mxu0 %v320
    %1591 = vmatprep.subr.mxu0 %v325
    %1592 = vmatpush1.msra.mxu0 %v324
    %1593 = vmatprep.subr.mxu0 %v329
    %1594 = vmatpush1.msra.mxu0 %v328
    %1595 = vmatprep.subr.mxu0 %v333
    %1596 = vmatpush1.msra.mxu0 %v332
    %1597 = vmatprep.subr.mxu0 %v337
    %1598 = vmatpush1.msra.mxu0 %v336
    %1599 = vmatprep.subr.mxu0 %v341
    %1600 = vmatpush1.msra.mxu0 %v340
    %1601 = vmatprep.subr.mxu0 0.0
    %1602 = vmatpush1.msra.mxu0 0.0
    %1603 = vmatprep.subr.mxu0 0.0
    %1604 = vmatpush1.msra.mxu0 0.0
    %1605 = vmatprep.subr.mxu0 0.0
    %1606 = vmatpush1.msra.mxu0 0.0
    %1607 = vmatprep.subr.mxu0 0.0
    %1608 = vmatpush1.msra.mxu0 0.0
    %1609 = vmatprep.subr.mxu0 0.0
    %1610 = vmatpush1.msra.mxu0 0.0
    %1611 = vmatprep.subr.mxu0 0.0
    %1612 = vmatpush1.msra.mxu0 0.0
    %1613 = vmatprep.subr.mxu0 0.0
    %1614 = vmatpush1.msra.mxu0 0.0
    %1615 = vmatprep.subr.mxu0 0.0
    %1616 = vmatpush1.msra.mxu0 0.0
    %1617 = vmatprep.subr.mxu0 0.0
    %1618 = vmatpush1.msra.mxu0 0.0
    %1619 = vmatprep.subr.mxu0 0.0
    %1620 = vmatpush1.msra.mxu0 0.0
    %1621 = vmatprep.subr.mxu0 0.0
    %1622 = vmatpush1.msra.mxu0 0.0
    %1623 = vmatprep.subr.mxu0 0.0
    %1624 = vmatpush1.msra.mxu0 0.0
    %1625 = vmatprep.subr.mxu0 0.0
    %1626 = vmatpush1.msra.mxu0 0.0
    %1627 = vmatprep.subr.mxu0 0.0
    %1628 = vmatpush1.msra.mxu0 0.0
    %1629 = vmatprep.subr.mxu0 0.0
    %1630 = vmatpush1.msra.mxu0 0.0
    %1631 = vmatprep.subr.mxu0 0.0
    %1632 = vmatpush1.msra.mxu0 0.0
    %1633 = vmatprep.mubr.f32.mxu0 0.0
    %1634 = vmatmul.mubr.f32.gmra.mrb[0].mxu0 %v1490
    %v1635 = vpop.f32.mrb[0].mxu0
    %v1636 = vadd.f32 %v1496, %v1635
    %v1637 = vpop.f32.mrb[0].mxu0
    %v1638 = vadd.f32 %v1497, %v1637
    %1639 = vdwg.mxu0
    %v1640 = vxor.u32 %v1565, 2147483648
    %v1641 = vmul.f32 %v1640, 1.442695
    %v1642 = vpow.pop %v1641
    %v1643 = vadd.f32 %v1642, 1.0
    %v1644 = vrcp.pop %v1643
    %v1645 = vmul.f32 1.0, %v1644
    %v1646 = vxor.u32 %v1567, 2147483648
    %v1647 = vmul.f32 %v1646, 1.442695
    %v1648 = vpow.pop %v1647
    %v1649 = vadd.f32 %v1648, 1.0
    %v1650 = vrcp.pop %v1649
    %v1651 = vmul.f32 1.0, %v1650
    %v1652 = vtanh.pop %v1636
    %v1653 = vxor.u32 %v1638, 2147483648
    %v1654 = vmul.f32 %v1653, 1.442695
    %v1655 = vpow.pop %v1654
    %v1656 = vadd.f32 %v1655, 1.0
    %v1657 = vrcp.pop %v1656
    %v1658 = vmul.f32 1.0, %v1657
    %v1659 = vmul.f32 %v1651, %v1488
    %v1660 = vmul.f32 %v1645, %v1652
    %v1661 = vadd.f32 %v1659, %v1660
    %v1662 = vtanh.pop %v1661
    %v1663 = vmul.f32 %v1658, %v1662
    %s1664 = scalar_lea.vmem [#allocation3], 40
    %1665 = vst [vmem:[%s1664] sm:$0xff] %v1663
    %s1666 = scalar_lea.vmem [#allocation4], 192
    %v1667 = vld [vmem:[%s1666] sm:$0xff]
    %v1668 = vld [vmem:[%s1666 + $0x8] sm:$0xff]
    %v1669 = vld [vmem:[%s1666 + $0x10] sm:$0xff]
    %v1670 = vld [vmem:[%s1666 + $0x18] sm:$0xff]
    %1671 = vmatprep.subr.mxu0 %v279
    %1672 = vmatpush1.msra.mxu0 %v278
    %1673 = vmatprep.subr.mxu0 %v283
    %1674 = vmatpush1.msra.mxu0 %v282
    %1675 = vmatprep.subr.mxu0 %v287
    %1676 = vmatpush1.msra.mxu0 %v286
    %1677 = vmatprep.subr.mxu0 %v291
    %1678 = vmatpush1.msra.mxu0 %v290
    %1679 = vmatprep.subr.mxu0 %v295
    %1680 = vmatpush1.msra.mxu0 %v294
    %1681 = vmatprep.subr.mxu0 %v299
    %1682 = vmatpush1.msra.mxu0 %v298
    %1683 = vmatprep.subr.mxu0 %v303
    %1684 = vmatpush1.msra.mxu0 %v302
    %1685 = vmatprep.subr.mxu0 %v307
    %1686 = vmatpush1.msra.mxu0 %v306
    %1687 = vmatprep.subr.mxu0 %v311
    %1688 = vmatpush1.msra.mxu0 %v310
    %1689 = vmatprep.subr.mxu0 %v315
    %1690 = vmatpush1.msra.mxu0 %v314
    %1691 = vmatprep.subr.mxu0 %v319
    %1692 = vmatpush1.msra.mxu0 %v318
    %1693 = vmatprep.subr.mxu0 %v323
    %1694 = vmatpush1.msra.mxu0 %v322
    %1695 = vmatprep.subr.mxu0 %v327
    %1696 = vmatpush1.msra.mxu0 %v326
    %1697 = vmatprep.subr.mxu0 %v331
    %1698 = vmatpush1.msra.mxu0 %v330
    %1699 = vmatprep.subr.mxu0 %v335
    %1700 = vmatpush1.msra.mxu0 %v334
    %1701 = vmatprep.subr.mxu0 %v339
    %1702 = vmatpush1.msra.mxu0 %v338
    %1703 = vmatprep.subr.mxu0 0.0
    %1704 = vmatpush1.msra.mxu0 0.0
    %1705 = vmatprep.subr.mxu0 0.0
    %1706 = vmatpush1.msra.mxu0 0.0
    %1707 = vmatprep.subr.mxu0 0.0
    %1708 = vmatpush1.msra.mxu0 0.0
    %1709 = vmatprep.subr.mxu0 0.0
    %1710 = vmatpush1.msra.mxu0 0.0
    %1711 = vmatprep.subr.mxu0 0.0
    %1712 = vmatpush1.msra.mxu0 0.0
    %1713 = vmatprep.subr.mxu0 0.0
    %1714 = vmatpush1.msra.mxu0 0.0
    %1715 = vmatprep.subr.mxu0 0.0
    %1716 = vmatpush1.msra.mxu0 0.0
    %1717 = vmatprep.subr.mxu0 0.0
    %1718 = vmatpush1.msra.mxu0 0.0
    %1719 = vmatprep.subr.mxu0 0.0
    %1720 = vmatpush1.msra.mxu0 0.0
    %1721 = vmatprep.subr.mxu0 0.0
    %1722 = vmatpush1.msra.mxu0 0.0
    %1723 = vmatprep.subr.mxu0 0.0
    %1724 = vmatpush1.msra.mxu0 0.0
    %1725 = vmatprep.subr.mxu0 0.0
    %1726 = vmatpush1.msra.mxu0 0.0
    %1727 = vmatprep.subr.mxu0 0.0
    %1728 = vmatpush1.msra.mxu0 0.0
    %1729 = vmatprep.subr.mxu0 0.0
    %1730 = vmatpush1.msra.mxu0 0.0
    %1731 = vmatprep.subr.mxu0 0.0
    %1732 = vmatpush1.msra.mxu0 0.0
    %1733 = vmatprep.subr.mxu0 0.0
    %1734 = vmatpush1.msra.mxu0 0.0
    %1735 = vmatprep.mubr.f32.mxu0 0.0
    %1736 = vmatmul.mubr.f32.gmra.mrb[0].mxu0 %v1663
    %v1737 = vpop.f32.mrb[0].mxu0
    %v1738 = vadd.f32 %v1667, %v1737
    %v1739 = vpop.f32.mrb[0].mxu0
    %v1740 = vadd.f32 %v1668, %v1739
    %1741 = vdwg.mxu0
    %1742 = vmatprep.subr.mxu0 %v281
    %1743 = vmatpush1.msra.mxu0 %v280
    %1744 = vmatprep.subr.mxu0 %v285
    %1745 = vmatpush1.msra.mxu0 %v284
    %1746 = vmatprep.subr.mxu0 %v289
    %1747 = vmatpush1.msra.mxu0 %v288
    %1748 = vmatprep.subr.mxu0 %v293
    %1749 = vmatpush1.msra.mxu0 %v292
    %1750 = vmatprep.subr.mxu0 %v297
    %1751 = vmatpush1.msra.mxu0 %v296
    %1752 = vmatprep.subr.mxu0 %v301
    %1753 = vmatpush1.msra.mxu0 %v300
    %1754 = vmatprep.subr.mxu0 %v305
    %1755 = vmatpush1.msra.mxu0 %v304
    %1756 = vmatprep.subr.mxu0 %v309
    %1757 = vmatpush1.msra.mxu0 %v308
    %1758 = vmatprep.subr.mxu0 %v313
    %1759 = vmatpush1.msra.mxu0 %v312
    %1760 = vmatprep.subr.mxu0 %v317
    %1761 = vmatpush1.msra.mxu0 %v316
    %1762 = vmatprep.subr.mxu0 %v321
    %1763 = vmatpush1.msra.mxu0 %v320
    %1764 = vmatprep.subr.mxu0 %v325
    %1765 = vmatpush1.msra.mxu0 %v324
    %1766 = vmatprep.subr.mxu0 %v329
    %1767 = vmatpush1.msra.mxu0 %v328
    %1768 = vmatprep.subr.mxu0 %v333
    %1769 = vmatpush1.msra.mxu0 %v332
    %1770 = vmatprep.subr.mxu0 %v337
    %1771 = vmatpush1.msra.mxu0 %v336
    %1772 = vmatprep.subr.mxu0 %v341
    %1773 = vmatpush1.msra.mxu0 %v340
    %1774 = vmatprep.subr.mxu0 0.0
    %1775 = vmatpush1.msra.mxu0 0.0
    %1776 = vmatprep.subr.mxu0 0.0
    %1777 = vmatpush1.msra.mxu0 0.0
    %1778 = vmatprep.subr.mxu0 0.0
    %1779 = vmatpush1.msra.mxu0 0.0
    %1780 = vmatprep.subr.mxu0 0.0
    %1781 = vmatpush1.msra.mxu0 0.0
    %1782 = vmatprep.subr.mxu0 0.0
    %1783 = vmatpush1.msra.mxu0 0.0
    %1784 = vmatprep.subr.mxu0 0.0
    %1785 = vmatpush1.msra.mxu0 0.0
    %1786 = vmatprep.subr.mxu0 0.0
    %1787 = vmatpush1.msra.mxu0 0.0
    %1788 = vmatprep.subr.mxu0 0.0
    %1789 = vmatpush1.msra.mxu0 0.0
    %1790 = vmatprep.subr.mxu0 0.0
    %1791 = vmatpush1.msra.mxu0 0.0
    %1792 = vmatprep.subr.mxu0 0.0
    %1793 = vmatpush1.msra.mxu0 0.0
    %1794 = vmatprep.subr.mxu0 0.0
    %1795 = vmatpush1.msra.mxu0 0.0
    %1796 = vmatprep.subr.mxu0 0.0
    %1797 = vmatpush1.msra.mxu0 0.0
    %1798 = vmatprep.subr.mxu0 0.0
    %1799 = vmatpush1.msra.mxu0 0.0
    %1800 = vmatprep.subr.mxu0 0.0
    %1801 = vmatpush1.msra.mxu0 0.0
    %1802 = vmatprep.subr.mxu0 0.0
    %1803 = vmatpush1.msra.mxu0 0.0
    %1804 = vmatprep.subr.mxu0 0.0
    %1805 = vmatpush1.msra.mxu0 0.0
    %1806 = vmatprep.mubr.f32.mxu0 0.0
    %1807 = vmatmul.mubr.f32.gmra.mrb[0].mxu0 %v1663
    %v1808 = vpop.f32.mrb[0].mxu0
    %v1809 = vadd.f32 %v1669, %v1808
    %v1810 = vpop.f32.mrb[0].mxu0
    %v1811 = vadd.f32 %v1670, %v1810
    %1812 = vdwg.mxu0
    %v1813 = vxor.u32 %v1738, 2147483648
    %v1814 = vmul.f32 %v1813, 1.442695
    %v1815 = vpow.pop %v1814
    %v1816 = vadd.f32 %v1815, 1.0
    %v1817 = vrcp.pop %v1816
    %v1818 = vmul.f32 1.0, %v1817
    %v1819 = vxor.u32 %v1740, 2147483648
    %v1820 = vmul.f32 %v1819, 1.442695
    %v1821 = vpow.pop %v1820
    %v1822 = vadd.f32 %v1821, 1.0
    %v1823 = vrcp.pop %v1822
    %v1824 = vmul.f32 1.0, %v1823
    %v1825 = vtanh.pop %v1809
    %v1826 = vxor.u32 %v1811, 2147483648
    %v1827 = vmul.f32 %v1826, 1.442695
    %v1828 = vpow.pop %v1827
    %v1829 = vadd.f32 %v1828, 1.0
    %v1830 = vrcp.pop %v1829
    %v1831 = vmul.f32 1.0, %v1830
    %v1832 = vmul.f32 %v1824, %v1661
    %v1833 = vmul.f32 %v1818, %v1825
    %v1834 = vadd.f32 %v1832, %v1833
    %v1835 = vtanh.pop %v1834
    %v1836 = vmul.f32 %v1831, %v1835
    %s1837 = scalar_lea.vmem [#allocation3], 48
    %1838 = vst [vmem:[%s1837] sm:$0xff] %v1836
    %s1839 = scalar_lea.vmem [#allocation4], 224
    %v1840 = vld [vmem:[%s1839] sm:$0xff]
    %v1841 = vld [vmem:[%s1839 + $0x8] sm:$0xff]
    %v1842 = vld [vmem:[%s1839 + $0x10] sm:$0xff]
    %v1843 = vld [vmem:[%s1839 + $0x18] sm:$0xff]
    %1844 = vmatprep.subr.mxu0 %v279
    %1845 = vmatpush1.msra.mxu0 %v278
    %1846 = vmatprep.subr.mxu0 %v283
    %1847 = vmatpush1.msra.mxu0 %v282
    %1848 = vmatprep.subr.mxu0 %v287
    %1849 = vmatpush1.msra.mxu0 %v286
    %1850 = vmatprep.subr.mxu0 %v291
    %1851 = vmatpush1.msra.mxu0 %v290
    %1852 = vmatprep.subr.mxu0 %v295
    %1853 = vmatpush1.msra.mxu0 %v294
    %1854 = vmatprep.subr.mxu0 %v299
    %1855 = vmatpush1.msra.mxu0 %v298
    %1856 = vmatprep.subr.mxu0 %v303
    %1857 = vmatpush1.msra.mxu0 %v302
    %1858 = vmatprep.subr.mxu0 %v307
    %1859 = vmatpush1.msra.mxu0 %v306
    %1860 = vmatprep.subr.mxu0 %v311
    %1861 = vmatpush1.msra.mxu0 %v310
    %1862 = vmatprep.subr.mxu0 %v315
    %1863 = vmatpush1.msra.mxu0 %v314
    %1864 = vmatprep.subr.mxu0 %v319
    %1865 = vmatpush1.msra.mxu0 %v318
    %1866 = vmatprep.subr.mxu0 %v323
    %1867 = vmatpush1.msra.mxu0 %v322
    %1868 = vmatprep.subr.mxu0 %v327
    %1869 = vmatpush1.msra.mxu0 %v326
    %1870 = vmatprep.subr.mxu0 %v331
    %1871 = vmatpush1.msra.mxu0 %v330
    %1872 = vmatprep.subr.mxu0 %v335
    %1873 = vmatpush1.msra.mxu0 %v334
    %1874 = vmatprep.subr.mxu0 %v339
    %1875 = vmatpush1.msra.mxu0 %v338
    %1876 = vmatprep.subr.mxu0 0.0
    %1877 = vmatpush1.msra.mxu0 0.0
    %1878 = vmatprep.subr.mxu0 0.0
    %1879 = vmatpush1.msra.mxu0 0.0
    %1880 = vmatprep.subr.mxu0 0.0
    %1881 = vmatpush1.msra.mxu0 0.0
    %1882 = vmatprep.subr.mxu0 0.0
    %1883 = vmatpush1.msra.mxu0 0.0
    %1884 = vmatprep.subr.mxu0 0.0
    %1885 = vmatpush1.msra.mxu0 0.0
    %1886 = vmatprep.subr.mxu0 0.0
    %1887 = vmatpush1.msra.mxu0 0.0
    %1888 = vmatprep.subr.mxu0 0.0
    %1889 = vmatpush1.msra.mxu0 0.0
    %1890 = vmatprep.subr.mxu0 0.0
    %1891 = vmatpush1.msra.mxu0 0.0
    %1892 = vmatprep.subr.mxu0 0.0
    %1893 = vmatpush1.msra.mxu0 0.0
    %1894 = vmatprep.subr.mxu0 0.0
    %1895 = vmatpush1.msra.mxu0 0.0
    %1896 = vmatprep.subr.mxu0 0.0
    %1897 = vmatpush1.msra.mxu0 0.0
    %1898 = vmatprep.subr.mxu0 0.0
    %1899 = vmatpush1.msra.mxu0 0.0
    %1900 = vmatprep.subr.mxu0 0.0
    %1901 = vmatpush1.msra.mxu0 0.0
    %1902 = vmatprep.subr.mxu0 0.0
    %1903 = vmatpush1.msra.mxu0 0.0
    %1904 = vmatprep.subr.mxu0 0.0
    %1905 = vmatpush1.msra.mxu0 0.0
    %1906 = vmatprep.subr.mxu0 0.0
    %1907 = vmatpush1.msra.mxu0 0.0
    %1908 = vmatprep.mubr.f32.mxu0 0.0
    %1909 = vmatmul.mubr.f32.gmra.mrb[0].mxu0 %v1836
    %v1910 = vpop.f32.mrb[0].mxu0
    %v1911 = vadd.f32 %v1840, %v1910
    %v1912 = vpop.f32.mrb[0].mxu0
    %v1913 = vadd.f32 %v1841, %v1912
    %1914 = vdwg.mxu0
    %1915 = vmatprep.subr.mxu0 %v281
    %1916 = vmatpush1.msra.mxu0 %v280
    %1917 = vmatprep.subr.mxu0 %v285
    %1918 = vmatpush1.msra.mxu0 %v284
    %1919 = vmatprep.subr.mxu0 %v289
    %1920 = vmatpush1.msra.mxu0 %v288
    %1921 = vmatprep.subr.mxu0 %v293
    %1922 = vmatpush1.msra.mxu0 %v292
    %1923 = vmatprep.subr.mxu0 %v297
    %1924 = vmatpush1.msra.mxu0 %v296
    %1925 = vmatprep.subr.mxu0 %v301
    %1926 = vmatpush1.msra.mxu0 %v300
    %1927 = vmatprep.subr.mxu0 %v305
    %1928 = vmatpush1.msra.mxu0 %v304
    %1929 = vmatprep.subr.mxu0 %v309
    %1930 = vmatpush1.msra.mxu0 %v308
    %1931 = vmatprep.subr.mxu0 %v313
    %1932 = vmatpush1.msra.mxu0 %v312
    %1933 = vmatprep.subr.mxu0 %v317
    %1934 = vmatpush1.msra.mxu0 %v316
    %1935 = vmatprep.subr.mxu0 %v321
    %1936 = vmatpush1.msra.mxu0 %v320
    %1937 = vmatprep.subr.mxu0 %v325
    %1938 = vmatpush1.msra.mxu0 %v324
    %1939 = vmatprep.subr.mxu0 %v329
    %1940 = vmatpush1.msra.mxu0 %v328
    %1941 = vmatprep.subr.mxu0 %v333
    %1942 = vmatpush1.msra.mxu0 %v332
    %1943 = vmatprep.subr.mxu0 %v337
    %1944 = vmatpush1.msra.mxu0 %v336
    %1945 = vmatprep.subr.mxu0 %v341
    %1946 = vmatpush1.msra.mxu0 %v340
    %1947 = vmatprep.subr.mxu0 0.0
    %1948 = vmatpush1.msra.mxu0 0.0
    %1949 = vmatprep.subr.mxu0 0.0
    %1950 = vmatpush1.msra.mxu0 0.0
    %1951 = vmatprep.subr.mxu0 0.0
    %1952 = vmatpush1.msra.mxu0 0.0
    %1953 = vmatprep.subr.mxu0 0.0
    %1954 = vmatpush1.msra.mxu0 0.0
    %1955 = vmatprep.subr.mxu0 0.0
    %1956 = vmatpush1.msra.mxu0 0.0
    %1957 = vmatprep.subr.mxu0 0.0
    %1958 = vmatpush1.msra.mxu0 0.0
    %1959 = vmatprep.subr.mxu0 0.0
    %1960 = vmatpush1.msra.mxu0 0.0
    %1961 = vmatprep.subr.mxu0 0.0
    %1962 = vmatpush1.msra.mxu0 0.0
    %1963 = vmatprep.subr.mxu0 0.0
    %1964 = vmatpush1.msra.mxu0 0.0
    %1965 = vmatprep.subr.mxu0 0.0
    %1966 = vmatpush1.msra.mxu0 0.0
    %1967 = vmatprep.subr.mxu0 0.0
    %1968 = vmatpush1.msra.mxu0 0.0
    %1969 = vmatprep.subr.mxu0 0.0
    %1970 = vmatpush1.msra.mxu0 0.0
    %1971 = vmatprep.subr.mxu0 0.0
    %1972 = vmatpush1.msra.mxu0 0.0
    %1973 = vmatprep.subr.mxu0 0.0
    %1974 = vmatpush1.msra.mxu0 0.0
    %1975 = vmatprep.subr.mxu0 0.0
    %1976 = vmatpush1.msra.mxu0 0.0
    %1977 = vmatprep.subr.mxu0 0.0
    %1978 = vmatpush1.msra.mxu0 0.0
    %1979 = vmatprep.mubr.f32.mxu0 0.0
    %1980 = vmatmul.mubr.f32.gmra.mrb[0].mxu0 %v1836
    %v1981 = vpop.f32.mrb[0].mxu0
    %v1982 = vadd.f32 %v1842, %v1981
    %v1983 = vpop.f32.mrb[0].mxu0
    %v1984 = vadd.f32 %v1843, %v1983
    %1985 = vdwg.mxu0
    %v1986 = vxor.u32 %v1911, 2147483648
    %v1987 = vmul.f32 %v1986, 1.442695
    %v1988 = vpow.pop %v1987
    %v1989 = vadd.f32 %v1988, 1.0
    %v1990 = vrcp.pop %v1989
    %v1991 = vmul.f32 1.0, %v1990
    %v1992 = vxor.u32 %v1913, 2147483648
    %v1993 = vmul.f32 %v1992, 1.442695
    %v1994 = vpow.pop %v1993
    %v1995 = vadd.f32 %v1994, 1.0
    %v1996 = vrcp.pop %v1995
    %v1997 = vmul.f32 1.0, %v1996
    %v1998 = vtanh.pop %v1982
    %v1999 = vxor.u32 %v1984, 2147483648
    %v2000 = vmul.f32 %v1999, 1.442695
    %v2001 = vpow.pop %v2000
    %v2002 = vadd.f32 %v2001, 1.0
    %v2003 = vrcp.pop %v2002
    %v2004 = vmul.f32 1.0, %v2003
    %v2005 = vmul.f32 %v1997, %v1834
    %v2006 = vmul.f32 %v1991, %v1998
    %v2007 = vadd.f32 %v2005, %v2006
    %v2008 = vtanh.pop %v2007
    %v2009 = vmul.f32 %v2004, %v2008
    %s2010 = scalar_lea.vmem [#allocation3], 56
    %2011 = vst [vmem:[%s2010] sm:$0xff] %v2009
    %2012 = vst [vmem:[#allocation16] sm:$0xff] %v2009
    %2013 = vst [vmem:[#allocation18] sm:$0xff] %v2007
    %s2014 = scalar_lea.vmem [#allocation10], 512
    %v2015 = vld [vmem:[%s2014] sm:$0xff]
    %v2016 = vld [vmem:[%s2014 + $0x8] sm:$0xff]
    %v2017 = vld [vmem:[%s2014 + $0x10] sm:$0xff]
    %v2018 = vld [vmem:[%s2014 + $0x18] sm:$0xff]
    %v2019 = vld [vmem:[%s2014 + $0x20] sm:$0xff]
    %v2020 = vld [vmem:[%s2014 + $0x28] sm:$0xff]
    %v2021 = vld [vmem:[%s2014 + $0x30] sm:$0xff]
    %v2022 = vld [vmem:[%s2014 + $0x38] sm:$0xff]
    %v2023 = vld [vmem:[%s2014 + $0x40] sm:$0xff]
    %v2024 = vld [vmem:[%s2014 + $0x48] sm:$0xff]
    %v2025 = vld [vmem:[%s2014 + $0x50] sm:$0xff]
    %v2026 = vld [vmem:[%s2014 + $0x58] sm:$0xff]
    %v2027 = vld [vmem:[%s2014 + $0x60] sm:$0xff]
    %v2028 = vld [vmem:[%s2014 + $0x68] sm:$0xff]
    %v2029 = vld [vmem:[%s2014 + $0x70] sm:$0xff]
    %v2030 = vld [vmem:[%s2014 + $0x78] sm:$0xff]
    %v2031 = vld [vmem:[%s2014 + $0x80] sm:$0xff]
    %v2032 = vld [vmem:[%s2014 + $0x88] sm:$0xff]
    %v2033 = vld [vmem:[%s2014 + $0x90] sm:$0xff]
    %v2034 = vld [vmem:[%s2014 + $0x98] sm:$0xff]
    %v2035 = vld [vmem:[%s2014 + $0xa0] sm:$0xff]
    %v2036 = vld [vmem:[%s2014 + $0xa8] sm:$0xff]
    %v2037 = vld [vmem:[%s2014 + $0xb0] sm:$0xff]
    %v2038 = vld [vmem:[%s2014 + $0xb8] sm:$0xff]
    %v2039 = vld [vmem:[%s2014 + $0xc0] sm:$0xff]
    %v2040 = vld [vmem:[%s2014 + $0xc8] sm:$0xff]
    %v2041 = vld [vmem:[%s2014 + $0xd0] sm:$0xff]
    %v2042 = vld [vmem:[%s2014 + $0xd8] sm:$0xff]
    %v2043 = vld [vmem:[%s2014 + $0xe0] sm:$0xff]
    %v2044 = vld [vmem:[%s2014 + $0xe8] sm:$0xff]
    %v2045 = vld [vmem:[%s2014 + $0xf0] sm:$0xff]
    %v2046 = vld [vmem:[%s2014 + $0xf8] sm:$0xff]
    %v2047 = vld [vmem:[%s2014 + $0x100] sm:$0xff]
    %v2048 = vld [vmem:[%s2014 + $0x108] sm:$0xff]
    %v2049 = vld [vmem:[%s2014 + $0x110] sm:$0xff]
    %v2050 = vld [vmem:[%s2014 + $0x118] sm:$0xff]
    %v2051 = vld [vmem:[%s2014 + $0x120] sm:$0xff]
    %v2052 = vld [vmem:[%s2014 + $0x128] sm:$0xff]
    %v2053 = vld [vmem:[%s2014 + $0x130] sm:$0xff]
    %v2054 = vld [vmem:[%s2014 + $0x138] sm:$0xff]
    %v2055 = vld [vmem:[%s2014 + $0x140] sm:$0xff]
    %v2056 = vld [vmem:[%s2014 + $0x148] sm:$0xff]
    %v2057 = vld [vmem:[%s2014 + $0x150] sm:$0xff]
    %v2058 = vld [vmem:[%s2014 + $0x158] sm:$0xff]
    %v2059 = vld [vmem:[%s2014 + $0x160] sm:$0xff]
    %v2060 = vld [vmem:[%s2014 + $0x168] sm:$0xff]
    %v2061 = vld [vmem:[%s2014 + $0x170] sm:$0xff]
    %v2062 = vld [vmem:[%s2014 + $0x178] sm:$0xff]
    %v2063 = vld [vmem:[%s2014 + $0x180] sm:$0xff]
    %v2064 = vld [vmem:[%s2014 + $0x188] sm:$0xff]
    %v2065 = vld [vmem:[%s2014 + $0x190] sm:$0xff]
    %v2066 = vld [vmem:[%s2014 + $0x198] sm:$0xff]
    %v2067 = vld [vmem:[%s2014 + $0x1a0] sm:$0xff]
    %v2068 = vld [vmem:[%s2014 + $0x1a8] sm:$0xff]
    %v2069 = vld [vmem:[%s2014 + $0x1b0] sm:$0xff]
    %v2070 = vld [vmem:[%s2014 + $0x1b8] sm:$0xff]
    %v2071 = vld [vmem:[%s2014 + $0x1c0] sm:$0xff]
    %v2072 = vld [vmem:[%s2014 + $0x1c8] sm:$0xff]
    %v2073 = vld [vmem:[%s2014 + $0x1d0] sm:$0xff]
    %v2074 = vld [vmem:[%s2014 + $0x1d8] sm:$0xff]
    %v2075 = vld [vmem:[%s2014 + $0x1e0] sm:$0xff]
    %v2076 = vld [vmem:[%s2014 + $0x1e8] sm:$0xff]
    %v2077 = vld [vmem:[%s2014 + $0x1f0] sm:$0xff]
    %v2078 = vld [vmem:[%s2014 + $0x1f8] sm:$0xff]
    %s2079 = scalar_lea.vmem [#allocation12], 512
    %v2080 = vld [vmem:[%s2079] sm:$0xff]
    %v2081 = vld [vmem:[%s2079 + $0x8] sm:$0xff]
    %v2082 = vld [vmem:[%s2079 + $0x10] sm:$0xff]
    %v2083 = vld [vmem:[%s2079 + $0x18] sm:$0xff]
    %v2084 = vld [vmem:[%s2079 + $0x20] sm:$0xff]
    %v2085 = vld [vmem:[%s2079 + $0x28] sm:$0xff]
    %v2086 = vld [vmem:[%s2079 + $0x30] sm:$0xff]
    %v2087 = vld [vmem:[%s2079 + $0x38] sm:$0xff]
    %v2088 = vld [vmem:[%s2079 + $0x40] sm:$0xff]
    %v2089 = vld [vmem:[%s2079 + $0x48] sm:$0xff]
    %v2090 = vld [vmem:[%s2079 + $0x50] sm:$0xff]
    %v2091 = vld [vmem:[%s2079 + $0x58] sm:$0xff]
    %v2092 = vld [vmem:[%s2079 + $0x60] sm:$0xff]
    %v2093 = vld [vmem:[%s2079 + $0x68] sm:$0xff]
    %v2094 = vld [vmem:[%s2079 + $0x70] sm:$0xff]
    %v2095 = vld [vmem:[%s2079 + $0x78] sm:$0xff]
    %v2096 = vld [vmem:[%s2079 + $0x80] sm:$0xff]
    %v2097 = vld [vmem:[%s2079 + $0x88] sm:$0xff]
    %v2098 = vld [vmem:[%s2079 + $0x90] sm:$0xff]
    %v2099 = vld [vmem:[%s2079 + $0x98] sm:$0xff]
    %v2100 = vld [vmem:[%s2079 + $0xa0] sm:$0xff]
    %v2101 = vld [vmem:[%s2079 + $0xa8] sm:$0xff]
    %v2102 = vld [vmem:[%s2079 + $0xb0] sm:$0xff]
    %v2103 = vld [vmem:[%s2079 + $0xb8] sm:$0xff]
    %v2104 = vld [vmem:[%s2079 + $0xc0] sm:$0xff]
    %v2105 = vld [vmem:[%s2079 + $0xc8] sm:$0xff]
    %v2106 = vld [vmem:[%s2079 + $0xd0] sm:$0xff]
    %v2107 = vld [vmem:[%s2079 + $0xd8] sm:$0xff]
    %v2108 = vld [vmem:[%s2079 + $0xe0] sm:$0xff]
    %v2109 = vld [vmem:[%s2079 + $0xe8] sm:$0xff]
    %v2110 = vld [vmem:[%s2079 + $0xf0] sm:$0xff]
    %v2111 = vld [vmem:[%s2079 + $0xf8] sm:$0xff]
    %v2112 = vld [vmem:[%s2079 + $0x100] sm:$0xff]
    %v2113 = vld [vmem:[%s2079 + $0x108] sm:$0xff]
    %v2114 = vld [vmem:[%s2079 + $0x110] sm:$0xff]
    %v2115 = vld [vmem:[%s2079 + $0x118] sm:$0xff]
    %v2116 = vld [vmem:[%s2079 + $0x120] sm:$0xff]
    %v2117 = vld [vmem:[%s2079 + $0x128] sm:$0xff]
    %v2118 = vld [vmem:[%s2079 + $0x130] sm:$0xff]
    %v2119 = vld [vmem:[%s2079 + $0x138] sm:$0xff]
    %v2120 = vld [vmem:[%s2079 + $0x140] sm:$0xff]
    %v2121 = vld [vmem:[%s2079 + $0x148] sm:$0xff]
    %v2122 = vld [vmem:[%s2079 + $0x150] sm:$0xff]
    %v2123 = vld [vmem:[%s2079 + $0x158] sm:$0xff]
    %v2124 = vld [vmem:[%s2079 + $0x160] sm:$0xff]
    %v2125 = vld [vmem:[%s2079 + $0x168] sm:$0xff]
    %v2126 = vld [vmem:[%s2079 + $0x170] sm:$0xff]
    %v2127 = vld [vmem:[%s2079 + $0x178] sm:$0xff]
    %v2128 = vld [vmem:[%s2079 + $0x180] sm:$0xff]
    %v2129 = vld [vmem:[%s2079 + $0x188] sm:$0xff]
    %v2130 = vld [vmem:[%s2079 + $0x190] sm:$0xff]
    %v2131 = vld [vmem:[%s2079 + $0x198] sm:$0xff]
    %v2132 = vld [vmem:[%s2079 + $0x1a0] sm:$0xff]
    %v2133 = vld [vmem:[%s2079 + $0x1a8] sm:$0xff]
    %v2134 = vld [vmem:[%s2079 + $0x1b0] sm:$0xff]
    %v2135 = vld [vmem:[%s2079 + $0x1b8] sm:$0xff]
    %v2136 = vld [vmem:[%s2079 + $0x1c0] sm:$0xff]
    %v2137 = vld [vmem:[%s2079 + $0x1c8] sm:$0xff]
    %v2138 = vld [vmem:[%s2079 + $0x1d0] sm:$0xff]
    %v2139 = vld [vmem:[%s2079 + $0x1d8] sm:$0xff]
    %v2140 = vld [vmem:[%s2079 + $0x1e0] sm:$0xff]
    %v2141 = vld [vmem:[%s2079 + $0x1e8] sm:$0xff]
    %v2142 = vld [vmem:[%s2079 + $0x1f0] sm:$0xff]
    %v2143 = vld [vmem:[%s2079 + $0x1f8] sm:$0xff]
    %s2144 = scalar_lea.vmem %s4, 4
    %v2145 = vld [vmem:[%s2144] sm:$0xf]
    %v2146 = vld [vmem:[#allocation3] sm:$0xff]
    %v2147 = vld [vmem:[#allocation3 + $0x8] sm:$0xff]
    %v2148 = vld [vmem:[#allocation3 + $0x10] sm:$0xff]
    %v2149 = vld [vmem:[#allocation3 + $0x18] sm:$0xff]
    %v2150 = vld [vmem:[#allocation3 + $0x20] sm:$0xff]
    %v2151 = vld [vmem:[#allocation3 + $0x28] sm:$0xff]
    %v2152 = vld [vmem:[#allocation3 + $0x30] sm:$0xff]
    %v2153 = vld [vmem:[#allocation3 + $0x38] sm:$0xff]
    %v2155 = vlaneseq
    %v2156 = vshrl.u32 %v2155, 7
    %v2157 = vsub.s32 0, %v2156
    %v2158 = vrot.slane %v2145, %v2157
    %v2159 = vlaneseq
    %v2160 = vshrl.u32 %v2159, 7
    %v2161 = vsub.s32 1, %v2160
    %v2162 = vrot.slane %v2145, %v2161
    %v2163 = vlaneseq
    %v2164 = vshrl.u32 %v2163, 7
    %v2165 = vsub.s32 2, %v2164
    %v2166 = vrot.slane %v2145, %v2165
    %v2167 = vlaneseq
    %v2168 = vshrl.u32 %v2167, 7
    %v2169 = vsub.s32 3, %v2168
    %v2170 = vrot.slane %v2145, %v2169
    %2175 = vmatprep.subr.mxu0 %v2016
    %2176 = vmatpush1.msra.mxu0 %v2015
    %2177 = vmatprep.subr.mxu0 %v2020
    %2178 = vmatpush1.msra.mxu0 %v2019
    %2179 = vmatprep.subr.mxu0 %v2024
    %2180 = vmatpush1.msra.mxu0 %v2023
    %2181 = vmatprep.subr.mxu0 %v2028
    %2182 = vmatpush1.msra.mxu0 %v2027
    %2183 = vmatprep.subr.mxu0 %v2032
    %2184 = vmatpush1.msra.mxu0 %v2031
    %2185 = vmatprep.subr.mxu0 %v2036
    %2186 = vmatpush1.msra.mxu0 %v2035
    %2187 = vmatprep.subr.mxu0 %v2040
    %2188 = vmatpush1.msra.mxu0 %v2039
    %2189 = vmatprep.subr.mxu0 %v2044
    %2190 = vmatpush1.msra.mxu0 %v2043
    %2191 = vmatprep.subr.mxu0 %v2048
    %2192 = vmatpush1.msra.mxu0 %v2047
    %2193 = vmatprep.subr.mxu0 %v2052
    %2194 = vmatpush1.msra.mxu0 %v2051
    %2195 = vmatprep.subr.mxu0 %v2056
    %2196 = vmatpush1.msra.mxu0 %v2055
    %2197 = vmatprep.subr.mxu0 %v2060
    %2198 = vmatpush1.msra.mxu0 %v2059
    %2199 = vmatprep.subr.mxu0 %v2064
    %2200 = vmatpush1.msra.mxu0 %v2063
    %2201 = vmatprep.subr.mxu0 %v2068
    %2202 = vmatpush1.msra.mxu0 %v2067
    %2203 = vmatprep.subr.mxu0 %v2072
    %2204 = vmatpush1.msra.mxu0 %v2071
    %2205 = vmatprep.subr.mxu0 %v2076
    %2206 = vmatpush1.msra.mxu0 %v2075
    %2207 = vmatprep.subr.mxu0 0.0
    %2208 = vmatpush1.msra.mxu0 0.0
    %2209 = vmatprep.subr.mxu0 0.0
    %2210 = vmatpush1.msra.mxu0 0.0
    %2211 = vmatprep.subr.mxu0 0.0
    %2212 = vmatpush1.msra.mxu0 0.0
    %2213 = vmatprep.subr.mxu0 0.0
    %2214 = vmatpush1.msra.mxu0 0.0
    %2215 = vmatprep.subr.mxu0 0.0
    %2216 = vmatpush1.msra.mxu0 0.0
    %2217 = vmatprep.subr.mxu0 0.0
    %2218 = vmatpush1.msra.mxu0 0.0
    %2219 = vmatprep.subr.mxu0 0.0
    %2220 = vmatpush1.msra.mxu0 0.0
    %2221 = vmatprep.subr.mxu0 0.0
    %2222 = vmatpush1.msra.mxu0 0.0
    %2223 = vmatprep.subr.mxu0 0.0
    %2224 = vmatpush1.msra.mxu0 0.0
    %2225 = vmatprep.subr.mxu0 0.0
    %2226 = vmatpush1.msra.mxu0 0.0
    %2227 = vmatprep.subr.mxu0 0.0
    %2228 = vmatpush1.msra.mxu0 0.0
    %2229 = vmatprep.subr.mxu0 0.0
    %2230 = vmatpush1.msra.mxu0 0.0
    %2231 = vmatprep.subr.mxu0 0.0
    %2232 = vmatpush1.msra.mxu0 0.0
    %2233 = vmatprep.subr.mxu0 0.0
    %2234 = vmatpush1.msra.mxu0 0.0
    %2235 = vmatprep.subr.mxu0 0.0
    %2236 = vmatpush1.msra.mxu0 0.0
    %2237 = vmatprep.subr.mxu0 0.0
    %2238 = vmatpush1.msra.mxu0 0.0
    %2239 = vmatprep.mubr.f32.mxu0 0.0
    %2240 = vmatmul.mubr.f32.gmra.mrb[0].mxu0 %v2146
    %v2241 = vpop.f32.mrb[0].mxu0
    %v2242 = vadd.f32 %v2158, %v2241
    %v2243 = vpop.f32.mrb[0].mxu0
    %v2244 = vadd.f32 %v2162, %v2243
    %2245 = vmatprep.mubr.f32.mxu0 0.0
    %2246 = vmatmul.mubr.f32.gmra.mrb[0].mxu0 %v2147
    %v2247 = vpop.f32.mrb[0].mxu0
    %v2248 = vadd.f32 %v2158, %v2247
    %v2249 = vpop.f32.mrb[0].mxu0
    %v2250 = vadd.f32 %v2162, %v2249
    %2251 = vmatprep.mubr.f32.mxu0 0.0
    %2252 = vmatmul.mubr.f32.gmra.mrb[0].mxu0 %v2148
    %v2253 = vpop.f32.mrb[0].mxu0
    %v2254 = vadd.f32 %v2158, %v2253
    %v2255 = vpop.f32.mrb[0].mxu0
    %v2256 = vadd.f32 %v2162, %v2255
    %2257 = vmatprep.mubr.f32.mxu0 0.0
    %2258 = vmatmul.mubr.f32.gmra.mrb[0].mxu0 %v2149
    %v2259 = vpop.f32.mrb[0].mxu0
    %v2260 = vadd.f32 %v2158, %v2259
    %v2261 = vpop.f32.mrb[0].mxu0
    %v2262 = vadd.f32 %v2162, %v2261
    %2263 = vmatprep.mubr.f32.mxu0 0.0
    %2264 = vmatmul.mubr.f32.gmra.mrb[0].mxu0 %v2150
    %v2265 = vpop.f32.mrb[0].mxu0
    %v2266 = vadd.f32 %v2158, %v2265
    %v2267 = vpop.f32.mrb[0].mxu0
    %v2268 = vadd.f32 %v2162, %v2267
    %2269 = vmatprep.mubr.f32.mxu0 0.0
    %2270 = vmatmul.mubr.f32.gmra.mrb[0].mxu0 %v2151
    %v2271 = vpop.f32.mrb[0].mxu0
    %v2272 = vadd.f32 %v2158, %v2271
    %v2273 = vpop.f32.mrb[0].mxu0
    %v2274 = vadd.f32 %v2162, %v2273
    %2275 = vmatprep.mubr.f32.mxu0 0.0
    %2276 = vmatmul.mubr.f32.gmra.mrb[0].mxu0 %v2152
    %v2277 = vpop.f32.mrb[0].mxu0
    %v2278 = vadd.f32 %v2158, %v2277
    %v2279 = vpop.f32.mrb[0].mxu0
    %v2280 = vadd.f32 %v2162, %v2279
    %2281 = vmatprep.mubr.f32.mxu0 0.0
    %2282 = vmatmul.mubr.f32.gmra.mrb[0].mxu0 %v2153
    %v2283 = vpop.f32.mrb[0].mxu0
    %v2284 = vadd.f32 %v2158, %v2283
    %v2285 = vpop.f32.mrb[0].mxu0
    %v2286 = vadd.f32 %v2162, %v2285
    %2287 = vdwg.mxu0
    %2288 = vmatprep.subr.mxu0 %v2018
    %2289 = vmatpush1.msra.mxu0 %v2017
    %2290 = vmatprep.subr.mxu0 %v2022
    %2291 = vmatpush1.msra.mxu0 %v2021
    %2292 = vmatprep.subr.mxu0 %v2026
    %2293 = vmatpush1.msra.mxu0 %v2025
    %2294 = vmatprep.subr.mxu0 %v2030
    %2295 = vmatpush1.msra.mxu0 %v2029
    %2296 = vmatprep.subr.mxu0 %v2034
    %2297 = vmatpush1.msra.mxu0 %v2033
    %2298 = vmatprep.subr.mxu0 %v2038
    %2299 = vmatpush1.msra.mxu0 %v2037
    %2300 = vmatprep.subr.mxu0 %v2042
    %2301 = vmatpush1.msra.mxu0 %v2041
    %2302 = vmatprep.subr.mxu0 %v2046
    %2303 = vmatpush1.msra.mxu0 %v2045
    %2304 = vmatprep.subr.mxu0 %v2050
    %2305 = vmatpush1.msra.mxu0 %v2049
    %2306 = vmatprep.subr.mxu0 %v2054
    %2307 = vmatpush1.msra.mxu0 %v2053
    %2308 = vmatprep.subr.mxu0 %v2058
    %2309 = vmatpush1.msra.mxu0 %v2057
    %2310 = vmatprep.subr.mxu0 %v2062
    %2311 = vmatpush1.msra.mxu0 %v2061
    %2312 = vmatprep.subr.mxu0 %v2066
    %2313 = vmatpush1.msra.mxu0 %v2065
    %2314 = vmatprep.subr.mxu0 %v2070
    %2315 = vmatpush1.msra.mxu0 %v2069
    %2316 = vmatprep.subr.mxu0 %v2074
    %2317 = vmatpush1.msra.mxu0 %v2073
    %2318 = vmatprep.subr.mxu0 %v2078
    %2319 = vmatpush1.msra.mxu0 %v2077
    %2320 = vmatprep.subr.mxu0 0.0
    %2321 = vmatpush1.msra.mxu0 0.0
    %2322 = vmatprep.subr.mxu0 0.0
    %2323 = vmatpush1.msra.mxu0 0.0
    %2324 = vmatprep.subr.mxu0 0.0
    %2325 = vmatpush1.msra.mxu0 0.0
    %2326 = vmatprep.subr.mxu0 0.0
    %2327 = vmatpush1.msra.mxu0 0.0
    %2328 = vmatprep.subr.mxu0 0.0
    %2329 = vmatpush1.msra.mxu0 0.0
    %2330 = vmatprep.subr.mxu0 0.0
    %2331 = vmatpush1.msra.mxu0 0.0
    %2332 = vmatprep.subr.mxu0 0.0
    %2333 = vmatpush1.msra.mxu0 0.0
    %2334 = vmatprep.subr.mxu0 0.0
    %2335 = vmatpush1.msra.mxu0 0.0
    %2336 = vmatprep.subr.mxu0 0.0
    %2337 = vmatpush1.msra.mxu0 0.0
    %2338 = vmatprep.subr.mxu0 0.0
    %2339 = vmatpush1.msra.mxu0 0.0
    %2340 = vmatprep.subr.mxu0 0.0
    %2341 = vmatpush1.msra.mxu0 0.0
    %2342 = vmatprep.subr.mxu0 0.0
    %2343 = vmatpush1.msra.mxu0 0.0
    %2344 = vmatprep.subr.mxu0 0.0
    %2345 = vmatpush1.msra.mxu0 0.0
    %2346 = vmatprep.subr.mxu0 0.0
    %2347 = vmatpush1.msra.mxu0 0.0
    %2348 = vmatprep.subr.mxu0 0.0
    %2349 = vmatpush1.msra.mxu0 0.0
    %2350 = vmatprep.subr.mxu0 0.0
    %2351 = vmatpush1.msra.mxu0 0.0
    %2352 = vmatprep.mubr.f32.mxu0 0.0
    %2353 = vmatmul.mubr.f32.gmra.mrb[0].mxu0 %v2146
    %v2354 = vpop.f32.mrb[0].mxu0
    %v2355 = vadd.f32 %v2166, %v2354
    %v2356 = vpop.f32.mrb[0].mxu0
    %v2357 = vadd.f32 %v2170, %v2356
    %2358 = vmatprep.mubr.f32.mxu0 0.0
    %2359 = vmatmul.mubr.f32.gmra.mrb[0].mxu0 %v2147
    %v2360 = vpop.f32.mrb[0].mxu0
    %v2361 = vadd.f32 %v2166, %v2360
    %v2362 = vpop.f32.mrb[0].mxu0
    %v2363 = vadd.f32 %v2170, %v2362
    %2364 = vmatprep.mubr.f32.mxu0 0.0
    %2365 = vmatmul.mubr.f32.gmra.mrb[0].mxu0 %v2148
    %v2366 = vpop.f32.mrb[0].mxu0
    %v2367 = vadd.f32 %v2166, %v2366
    %v2368 = vpop.f32.mrb[0].mxu0
    %v2369 = vadd.f32 %v2170, %v2368
    %2370 = vmatprep.mubr.f32.mxu0 0.0
    %2371 = vmatmul.mubr.f32.gmra.mrb[0].mxu0 %v2149
    %v2372 = vpop.f32.mrb[0].mxu0
    %v2373 = vadd.f32 %v2166, %v2372
    %v2374 = vpop.f32.mrb[0].mxu0
    %v2375 = vadd.f32 %v2170, %v2374
    %2376 = vmatprep.mubr.f32.mxu0 0.0
    %2377 = vmatmul.mubr.f32.gmra.mrb[0].mxu0 %v2150
    %v2378 = vpop.f32.mrb[0].mxu0
    %v2379 = vadd.f32 %v2166, %v2378
    %v2380 = vpop.f32.mrb[0].mxu0
    %v2381 = vadd.f32 %v2170, %v2380
    %2382 = vmatprep.mubr.f32.mxu0 0.0
    %2383 = vmatmul.mubr.f32.gmra.mrb[0].mxu0 %v2151
    %v2384 = vpop.f32.mrb[0].mxu0
    %v2385 = vadd.f32 %v2166, %v2384
    %v2386 = vpop.f32.mrb[0].mxu0
    %v2387 = vadd.f32 %v2170, %v2386
    %2388 = vmatprep.mubr.f32.mxu0 0.0
    %2389 = vmatmul.mubr.f32.gmra.mrb[0].mxu0 %v2152
    %v2390 = vpop.f32.mrb[0].mxu0
    %v2391 = vadd.f32 %v2166, %v2390
    %v2392 = vpop.f32.mrb[0].mxu0
    %v2393 = vadd.f32 %v2170, %v2392
    %2394 = vmatprep.mubr.f32.mxu0 0.0
    %2395 = vmatmul.mubr.f32.gmra.mrb[0].mxu0 %v2153
    %v2396 = vpop.f32.mrb[0].mxu0
    %v2397 = vadd.f32 %v2166, %v2396
    %v2398 = vpop.f32.mrb[0].mxu0
    %v2399 = vadd.f32 %v2170, %v2398
    %2400 = vdwg.mxu0
    %2401 = vst [vmem:[#allocation4] sm:$0xff] %v2242
    %2402 = vst [vmem:[#allocation4 + $0x8] sm:$0xff] %v2244
    %2403 = vst [vmem:[#allocation4 + $0x10] sm:$0xff] %v2355
    %2404 = vst [vmem:[#allocation4 + $0x18] sm:$0xff] %v2357
    %2405 = vst [vmem:[#allocation4 + $0x20] sm:$0xff] %v2248
    %2406 = vst [vmem:[#allocation4 + $0x28] sm:$0xff] %v2250
    %2407 = vst [vmem:[#allocation4 + $0x30] sm:$0xff] %v2361
    %2408 = vst [vmem:[#allocation4 + $0x38] sm:$0xff] %v2363
    %2409 = vst [vmem:[#allocation4 + $0x40] sm:$0xff] %v2254
    %2410 = vst [vmem:[#allocation4 + $0x48] sm:$0xff] %v2256
    %2411 = vst [vmem:[#allocation4 + $0x50] sm:$0xff] %v2367
    %2412 = vst [vmem:[#allocation4 + $0x58] sm:$0xff] %v2369
    %2413 = vst [vmem:[#allocation4 + $0x60] sm:$0xff] %v2260
    %2414 = vst [vmem:[#allocation4 + $0x68] sm:$0xff] %v2262
    %2415 = vst [vmem:[#allocation4 + $0x70] sm:$0xff] %v2373
    %2416 = vst [vmem:[#allocation4 + $0x78] sm:$0xff] %v2375
    %2417 = vst [vmem:[#allocation4 + $0x80] sm:$0xff] %v2266
    %2418 = vst [vmem:[#allocation4 + $0x88] sm:$0xff] %v2268
    %2419 = vst [vmem:[#allocation4 + $0x90] sm:$0xff] %v2379
    %2420 = vst [vmem:[#allocation4 + $0x98] sm:$0xff] %v2381
    %2421 = vst [vmem:[#allocation4 + $0xa0] sm:$0xff] %v2272
    %2422 = vst [vmem:[#allocation4 + $0xa8] sm:$0xff] %v2274
    %2423 = vst [vmem:[#allocation4 + $0xb0] sm:$0xff] %v2385
    %2424 = vst [vmem:[#allocation4 + $0xb8] sm:$0xff] %v2387
    %2425 = vst [vmem:[#allocation4 + $0xc0] sm:$0xff] %v2278
    %2426 = vst [vmem:[#allocation4 + $0xc8] sm:$0xff] %v2280
    %2427 = vst [vmem:[#allocation4 + $0xd0] sm:$0xff] %v2391
    %2428 = vst [vmem:[#allocation4 + $0xd8] sm:$0xff] %v2393
    %2429 = vst [vmem:[#allocation4 + $0xe0] sm:$0xff] %v2284
    %2430 = vst [vmem:[#allocation4 + $0xe8] sm:$0xff] %v2286
    %2431 = vst [vmem:[#allocation4 + $0xf0] sm:$0xff] %v2397
    %2432 = vst [vmem:[#allocation4 + $0xf8] sm:$0xff] %v2399
    %v2433 = vld [vmem:[#allocation4] sm:$0xff]
    %v2434 = vld [vmem:[#allocation4 + $0x8] sm:$0xff]
    %v2435 = vld [vmem:[#allocation4 + $0x10] sm:$0xff]
    %v2436 = vld [vmem:[#allocation4 + $0x18] sm:$0xff]
    %2437 = vmatprep.subr.mxu0 %v2081
    %2438 = vmatpush1.msra.mxu0 %v2080
    %2439 = vmatprep.subr.mxu0 %v2085
    %2440 = vmatpush1.msra.mxu0 %v2084
    %2441 = vmatprep.subr.mxu0 %v2089
    %2442 = vmatpush1.msra.mxu0 %v2088
    %2443 = vmatprep.subr.mxu0 %v2093
    %2444 = vmatpush1.msra.mxu0 %v2092
    %2445 = vmatprep.subr.mxu0 %v2097
    %2446 = vmatpush1.msra.mxu0 %v2096
    %2447 = vmatprep.subr.mxu0 %v2101
    %2448 = vmatpush1.msra.mxu0 %v2100
    %2449 = vmatprep.subr.mxu0 %v2105
    %2450 = vmatpush1.msra.mxu0 %v2104
    %2451 = vmatprep.subr.mxu0 %v2109
    %2452 = vmatpush1.msra.mxu0 %v2108
    %2453 = vmatprep.subr.mxu0 %v2113
    %2454 = vmatpush1.msra.mxu0 %v2112
    %2455 = vmatprep.subr.mxu0 %v2117
    %2456 = vmatpush1.msra.mxu0 %v2116
    %2457 = vmatprep.subr.mxu0 %v2121
    %2458 = vmatpush1.msra.mxu0 %v2120
    %2459 = vmatprep.subr.mxu0 %v2125
    %2460 = vmatpush1.msra.mxu0 %v2124
    %2461 = vmatprep.subr.mxu0 %v2129
    %2462 = vmatpush1.msra.mxu0 %v2128
    %2463 = vmatprep.subr.mxu0 %v2133
    %2464 = vmatpush1.msra.mxu0 %v2132
    %2465 = vmatprep.subr.mxu0 %v2137
    %2466 = vmatpush1.msra.mxu0 %v2136
    %2467 = vmatprep.subr.mxu0 %v2141
    %2468 = vmatpush1.msra.mxu0 %v2140
    %2469 = vmatprep.subr.mxu0 0.0
    %2470 = vmatpush1.msra.mxu0 0.0
    %2471 = vmatprep.subr.mxu0 0.0
    %2472 = vmatpush1.msra.mxu0 0.0
    %2473 = vmatprep.subr.mxu0 0.0
    %2474 = vmatpush1.msra.mxu0 0.0
    %2475 = vmatprep.subr.mxu0 0.0
    %2476 = vmatpush1.msra.mxu0 0.0
    %2477 = vmatprep.subr.mxu0 0.0
    %2478 = vmatpush1.msra.mxu0 0.0
    %2479 = vmatprep.subr.mxu0 0.0
    %2480 = vmatpush1.msra.mxu0 0.0
    %2481 = vmatprep.subr.mxu0 0.0
    %2482 = vmatpush1.msra.mxu0 0.0
    %2483 = vmatprep.subr.mxu0 0.0
    %2484 = vmatpush1.msra.mxu0 0.0
    %2485 = vmatprep.subr.mxu0 0.0
    %2486 = vmatpush1.msra.mxu0 0.0
    %2487 = vmatprep.subr.mxu0 0.0
    %2488 = vmatpush1.msra.mxu0 0.0
    %2489 = vmatprep.subr.mxu0 0.0
    %2490 = vmatpush1.msra.mxu0 0.0
    %2491 = vmatprep.subr.mxu0 0.0
    %2492 = vmatpush1.msra.mxu0 0.0
    %2493 = vmatprep.subr.mxu0 0.0
    %2494 = vmatpush1.msra.mxu0 0.0
    %2495 = vmatprep.subr.mxu0 0.0
    %2496 = vmatpush1.msra.mxu0 0.0
    %2497 = vmatprep.subr.mxu0 0.0
    %2498 = vmatpush1.msra.mxu0 0.0
    %2499 = vmatprep.subr.mxu0 0.0
    %2500 = vmatpush1.msra.mxu0 0.0
    %2501 = vmatprep.mubr.f32.mxu0 0.0
    %2502 = vmatmul.mubr.f32.gmra.mrb[0].mxu0 0.0
    %v2503 = vpop.f32.mrb[0].mxu0
    %v2504 = vadd.f32 %v2433, %v2503
    %v2505 = vpop.f32.mrb[0].mxu0
    %v2506 = vadd.f32 %v2434, %v2505
    %2507 = vdwg.mxu0
    %2508 = vmatprep.subr.mxu0 %v2083
    %2509 = vmatpush1.msra.mxu0 %v2082
    %2510 = vmatprep.subr.mxu0 %v2087
    %2511 = vmatpush1.msra.mxu0 %v2086
    %2512 = vmatprep.subr.mxu0 %v2091
    %2513 = vmatpush1.msra.mxu0 %v2090
    %2514 = vmatprep.subr.mxu0 %v2095
    %2515 = vmatpush1.msra.mxu0 %v2094
    %2516 = vmatprep.subr.mxu0 %v2099
    %2517 = vmatpush1.msra.mxu0 %v2098
    %2518 = vmatprep.subr.mxu0 %v2103
    %2519 = vmatpush1.msra.mxu0 %v2102
    %2520 = vmatprep.subr.mxu0 %v2107
    %2521 = vmatpush1.msra.mxu0 %v2106
    %2522 = vmatprep.subr.mxu0 %v2111
    %2523 = vmatpush1.msra.mxu0 %v2110
    %2524 = vmatprep.subr.mxu0 %v2115
    %2525 = vmatpush1.msra.mxu0 %v2114
    %2526 = vmatprep.subr.mxu0 %v2119
    %2527 = vmatpush1.msra.mxu0 %v2118
    %2528 = vmatprep.subr.mxu0 %v2123
    %2529 = vmatpush1.msra.mxu0 %v2122
    %2530 = vmatprep.subr.mxu0 %v2127
    %2531 = vmatpush1.msra.mxu0 %v2126
    %2532 = vmatprep.subr.mxu0 %v2131
    %2533 = vmatpush1.msra.mxu0 %v2130
    %2534 = vmatprep.subr.mxu0 %v2135
    %2535 = vmatpush1.msra.mxu0 %v2134
    %2536 = vmatprep.subr.mxu0 %v2139
    %2537 = vmatpush1.msra.mxu0 %v2138
    %2538 = vmatprep.subr.mxu0 %v2143
    %2539 = vmatpush1.msra.mxu0 %v2142
    %2540 = vmatprep.subr.mxu0 0.0
    %2541 = vmatpush1.msra.mxu0 0.0
    %2542 = vmatprep.subr.mxu0 0.0
    %2543 = vmatpush1.msra.mxu0 0.0
    %2544 = vmatprep.subr.mxu0 0.0
    %2545 = vmatpush1.msra.mxu0 0.0
    %2546 = vmatprep.subr.mxu0 0.0
    %2547 = vmatpush1.msra.mxu0 0.0
    %2548 = vmatprep.subr.mxu0 0.0
    %2549 = vmatpush1.msra.mxu0 0.0
    %2550 = vmatprep.subr.mxu0 0.0
    %2551 = vmatpush1.msra.mxu0 0.0
    %2552 = vmatprep.subr.mxu0 0.0
    %2553 = vmatpush1.msra.mxu0 0.0
    %2554 = vmatprep.subr.mxu0 0.0
    %2555 = vmatpush1.msra.mxu0 0.0
    %2556 = vmatprep.subr.mxu0 0.0
    %2557 = vmatpush1.msra.mxu0 0.0
    %2558 = vmatprep.subr.mxu0 0.0
    %2559 = vmatpush1.msra.mxu0 0.0
    %2560 = vmatprep.subr.mxu0 0.0
    %2561 = vmatpush1.msra.mxu0 0.0
    %2562 = vmatprep.subr.mxu0 0.0
    %2563 = vmatpush1.msra.mxu0 0.0
    %2564 = vmatprep.subr.mxu0 0.0
    %2565 = vmatpush1.msra.mxu0 0.0
    %2566 = vmatprep.subr.mxu0 0.0
    %2567 = vmatpush1.msra.mxu0 0.0
    %2568 = vmatprep.subr.mxu0 0.0
    %2569 = vmatpush1.msra.mxu0 0.0
    %2570 = vmatprep.subr.mxu0 0.0
    %2571 = vmatpush1.msra.mxu0 0.0
    %2572 = vmatprep.mubr.f32.mxu0 0.0
    %2573 = vmatmul.mubr.f32.gmra.mrb[0].mxu0 0.0
    %v2574 = vpop.f32.mrb[0].mxu0
    %v2575 = vadd.f32 %v2435, %v2574
    %v2576 = vpop.f32.mrb[0].mxu0
    %v2577 = vadd.f32 %v2436, %v2576
    %2578 = vdwg.mxu0
    %v2579 = vxor.u32 %v2504, 2147483648
    %v2580 = vmul.f32 %v2579, 1.442695
    %v2581 = vpow.pop %v2580
    %v2582 = vadd.f32 %v2581, 1.0
    %v2583 = vrcp.pop %v2582
    %v2584 = vmul.f32 1.0, %v2583
    %v2585 = vxor.u32 %v2506, 2147483648
    %v2586 = vmul.f32 %v2585, 1.442695
    %v2587 = vpow.pop %v2586
    %v2588 = vadd.f32 %v2587, 1.0
    %v2589 = vrcp.pop %v2588
    %v2590 = vmul.f32 1.0, %v2589
    %v2591 = vtanh.pop %v2575
    %v2592 = vxor.u32 %v2577, 2147483648
    %v2593 = vmul.f32 %v2592, 1.442695
    %v2594 = vpow.pop %v2593
    %v2595 = vadd.f32 %v2594, 1.0
    %v2596 = vrcp.pop %v2595
    %v2597 = vmul.f32 1.0, %v2596
    %v2598 = vmul.f32 %v2590, 0.0
    %v2599 = vmul.f32 %v2584, %v2591
    %v2600 = vadd.f32 %v2598, %v2599
    %v2601 = vtanh.pop %v2600
    %v2602 = vmul.f32 %v2597, %v2601
    %2603 = vst [vmem:[#allocation2] sm:$0xff] %v2602
    %v2604 = vld [vmem:[%s801] sm:$0xff]
    %v2605 = vld [vmem:[%s801 + $0x8] sm:$0xff]
    %v2606 = vld [vmem:[%s801 + $0x10] sm:$0xff]
    %v2607 = vld [vmem:[%s801 + $0x18] sm:$0xff]
    %2608 = vmatprep.subr.mxu0 %v2081
    %2609 = vmatpush1.msra.mxu0 %v2080
    %2610 = vmatprep.subr.mxu0 %v2085
    %2611 = vmatpush1.msra.mxu0 %v2084
    %2612 = vmatprep.subr.mxu0 %v2089
    %2613 = vmatpush1.msra.mxu0 %v2088
    %2614 = vmatprep.subr.mxu0 %v2093
    %2615 = vmatpush1.msra.mxu0 %v2092
    %2616 = vmatprep.subr.mxu0 %v2097
    %2617 = vmatpush1.msra.mxu0 %v2096
    %2618 = vmatprep.subr.mxu0 %v2101
    %2619 = vmatpush1.msra.mxu0 %v2100
    %2620 = vmatprep.subr.mxu0 %v2105
    %2621 = vmatpush1.msra.mxu0 %v2104
    %2622 = vmatprep.subr.mxu0 %v2109
    %2623 = vmatpush1.msra.mxu0 %v2108
    %2624 = vmatprep.subr.mxu0 %v2113
    %2625 = vmatpush1.msra.mxu0 %v2112
    %2626 = vmatprep.subr.mxu0 %v2117
    %2627 = vmatpush1.msra.mxu0 %v2116
    %2628 = vmatprep.subr.mxu0 %v2121
    %2629 = vmatpush1.msra.mxu0 %v2120
    %2630 = vmatprep.subr.mxu0 %v2125
    %2631 = vmatpush1.msra.mxu0 %v2124
    %2632 = vmatprep.subr.mxu0 %v2129
    %2633 = vmatpush1.msra.mxu0 %v2128
    %2634 = vmatprep.subr.mxu0 %v2133
    %2635 = vmatpush1.msra.mxu0 %v2132
    %2636 = vmatprep.subr.mxu0 %v2137
    %2637 = vmatpush1.msra.mxu0 %v2136
    %2638 = vmatprep.subr.mxu0 %v2141
    %2639 = vmatpush1.msra.mxu0 %v2140
    %2640 = vmatprep.subr.mxu0 0.0
    %2641 = vmatpush1.msra.mxu0 0.0
    %2642 = vmatprep.subr.mxu0 0.0
    %2643 = vmatpush1.msra.mxu0 0.0
    %2644 = vmatprep.subr.mxu0 0.0
    %2645 = vmatpush1.msra.mxu0 0.0
    %2646 = vmatprep.subr.mxu0 0.0
    %2647 = vmatpush1.msra.mxu0 0.0
    %2648 = vmatprep.subr.mxu0 0.0
    %2649 = vmatpush1.msra.mxu0 0.0
    %2650 = vmatprep.subr.mxu0 0.0
    %2651 = vmatpush1.msra.mxu0 0.0
    %2652 = vmatprep.subr.mxu0 0.0
    %2653 = vmatpush1.msra.mxu0 0.0
    %2654 = vmatprep.subr.mxu0 0.0
    %2655 = vmatpush1.msra.mxu0 0.0
    %2656 = vmatprep.subr.mxu0 0.0
    %2657 = vmatpush1.msra.mxu0 0.0
    %2658 = vmatprep.subr.mxu0 0.0
    %2659 = vmatpush1.msra.mxu0 0.0
    %2660 = vmatprep.subr.mxu0 0.0
    %2661 = vmatpush1.msra.mxu0 0.0
    %2662 = vmatprep.subr.mxu0 0.0
    %2663 = vmatpush1.msra.mxu0 0.0
    %2664 = vmatprep.subr.mxu0 0.0
    %2665 = vmatpush1.msra.mxu0 0.0
    %2666 = vmatprep.subr.mxu0 0.0
    %2667 = vmatpush1.msra.mxu0 0.0
    %2668 = vmatprep.subr.mxu0 0.0
    %2669 = vmatpush1.msra.mxu0 0.0
    %2670 = vmatprep.subr.mxu0 0.0
    %2671 = vmatpush1.msra.mxu0 0.0
    %2672 = vmatprep.mubr.f32.mxu0 0.0
    %2673 = vmatmul.mubr.f32.gmra.mrb[0].mxu0 %v2602
    %v2674 = vpop.f32.mrb[0].mxu0
    %v2675 = vadd.f32 %v2604, %v2674
    %v2676 = vpop.f32.mrb[0].mxu0
    %v2677 = vadd.f32 %v2605, %v2676
    %2678 = vdwg.mxu0
    %2679 = vmatprep.subr.mxu0 %v2083
    %2680 = vmatpush1.msra.mxu0 %v2082
    %2681 = vmatprep.subr.mxu0 %v2087
    %2682 = vmatpush1.msra.mxu0 %v2086
    %2683 = vmatprep.subr.mxu0 %v2091
    %2684 = vmatpush1.msra.mxu0 %v2090
    %2685 = vmatprep.subr.mxu0 %v2095
    %2686 = vmatpush1.msra.mxu0 %v2094
    %2687 = vmatprep.subr.mxu0 %v2099
    %2688 = vmatpush1.msra.mxu0 %v2098
    %2689 = vmatprep.subr.mxu0 %v2103
    %2690 = vmatpush1.msra.mxu0 %v2102
    %2691 = vmatprep.subr.mxu0 %v2107
    %2692 = vmatpush1.msra.mxu0 %v2106
    %2693 = vmatprep.subr.mxu0 %v2111
    %2694 = vmatpush1.msra.mxu0 %v2110
    %2695 = vmatprep.subr.mxu0 %v2115
    %2696 = vmatpush1.msra.mxu0 %v2114
    %2697 = vmatprep.subr.mxu0 %v2119
    %2698 = vmatpush1.msra.mxu0 %v2118
    %2699 = vmatprep.subr.mxu0 %v2123
    %2700 = vmatpush1.msra.mxu0 %v2122
    %2701 = vmatprep.subr.mxu0 %v2127
    %2702 = vmatpush1.msra.mxu0 %v2126
    %2703 = vmatprep.subr.mxu0 %v2131
    %2704 = vmatpush1.msra.mxu0 %v2130
    %2705 = vmatprep.subr.mxu0 %v2135
    %2706 = vmatpush1.msra.mxu0 %v2134
    %2707 = vmatprep.subr.mxu0 %v2139
    %2708 = vmatpush1.msra.mxu0 %v2138
    %2709 = vmatprep.subr.mxu0 %v2143
    %2710 = vmatpush1.msra.mxu0 %v2142
    %2711 = vmatprep.subr.mxu0 0.0
    %2712 = vmatpush1.msra.mxu0 0.0
    %2713 = vmatprep.subr.mxu0 0.0
    %2714 = vmatpush1.msra.mxu0 0.0
    %2715 = vmatprep.subr.mxu0 0.0
    %2716 = vmatpush1.msra.mxu0 0.0
    %2717 = vmatprep.subr.mxu0 0.0
    %2718 = vmatpush1.msra.mxu0 0.0
    %2719 = vmatprep.subr.mxu0 0.0
    %2720 = vmatpush1.msra.mxu0 0.0
    %2721 = vmatprep.subr.mxu0 0.0
    %2722 = vmatpush1.msra.mxu0 0.0
    %2723 = vmatprep.subr.mxu0 0.0
    %2724 = vmatpush1.msra.mxu0 0.0
    %2725 = vmatprep.subr.mxu0 0.0
    %2726 = vmatpush1.msra.mxu0 0.0
    %2727 = vmatprep.subr.mxu0 0.0
    %2728 = vmatpush1.msra.mxu0 0.0
    %2729 = vmatprep.subr.mxu0 0.0
    %2730 = vmatpush1.msra.mxu0 0.0
    %2731 = vmatprep.subr.mxu0 0.0
    %2732 = vmatpush1.msra.mxu0 0.0
    %2733 = vmatprep.subr.mxu0 0.0
    %2734 = vmatpush1.msra.mxu0 0.0
    %2735 = vmatprep.subr.mxu0 0.0
    %2736 = vmatpush1.msra.mxu0 0.0
    %2737 = vmatprep.subr.mxu0 0.0
    %2738 = vmatpush1.msra.mxu0 0.0
    %2739 = vmatprep.subr.mxu0 0.0
    %2740 = vmatpush1.msra.mxu0 0.0
    %2741 = vmatprep.subr.mxu0 0.0
    %2742 = vmatpush1.msra.mxu0 0.0
    %2743 = vmatprep.mubr.f32.mxu0 0.0
    %2744 = vmatmul.mubr.f32.gmra.mrb[0].mxu0 %v2602
    %v2745 = vpop.f32.mrb[0].mxu0
    %v2746 = vadd.f32 %v2606, %v2745
    %v2747 = vpop.f32.mrb[0].mxu0
    %v2748 = vadd.f32 %v2607, %v2747
    %2749 = vdwg.mxu0
    %v2750 = vxor.u32 %v2675, 2147483648
    %v2751 = vmul.f32 %v2750, 1.442695
    %v2752 = vpow.pop %v2751
    %v2753 = vadd.f32 %v2752, 1.0
    %v2754 = vrcp.pop %v2753
    %v2755 = vmul.f32 1.0, %v2754
    %v2756 = vxor.u32 %v2677, 2147483648
    %v2757 = vmul.f32 %v2756, 1.442695
    %v2758 = vpow.pop %v2757
    %v2759 = vadd.f32 %v2758, 1.0
    %v2760 = vrcp.pop %v2759
    %v2761 = vmul.f32 1.0, %v2760
    %v2762 = vtanh.pop %v2746
    %v2763 = vxor.u32 %v2748, 2147483648
    %v2764 = vmul.f32 %v2763, 1.442695
    %v2765 = vpow.pop %v2764
    %v2766 = vadd.f32 %v2765, 1.0
    %v2767 = vrcp.pop %v2766
    %v2768 = vmul.f32 1.0, %v2767
    %v2769 = vmul.f32 %v2761, %v2600
    %v2770 = vmul.f32 %v2755, %v2762
    %v2771 = vadd.f32 %v2769, %v2770
    %v2772 = vtanh.pop %v2771
    %v2773 = vmul.f32 %v2768, %v2772
    %s2774 = scalar_lea.vmem [#allocation2], 8
    %2775 = vst [vmem:[%s2774] sm:$0xff] %v2773
    %v2776 = vld [vmem:[%s974] sm:$0xff]
    %v2777 = vld [vmem:[%s974 + $0x8] sm:$0xff]
    %v2778 = vld [vmem:[%s974 + $0x10] sm:$0xff]
    %v2779 = vld [vmem:[%s974 + $0x18] sm:$0xff]
    %2780 = vmatprep.subr.mxu0 %v2081
    %2781 = vmatpush1.msra.mxu0 %v2080
    %2782 = vmatprep.subr.mxu0 %v2085
    %2783 = vmatpush1.msra.mxu0 %v2084
    %2784 = vmatprep.subr.mxu0 %v2089
    %2785 = vmatpush1.msra.mxu0 %v2088
    %2786 = vmatprep.subr.mxu0 %v2093
    %2787 = vmatpush1.msra.mxu0 %v2092
    %2788 = vmatprep.subr.mxu0 %v2097
    %2789 = vmatpush1.msra.mxu0 %v2096
    %2790 = vmatprep.subr.mxu0 %v2101
    %2791 = vmatpush1.msra.mxu0 %v2100
    %2792 = vmatprep.subr.mxu0 %v2105
    %2793 = vmatpush1.msra.mxu0 %v2104
    %2794 = vmatprep.subr.mxu0 %v2109
    %2795 = vmatpush1.msra.mxu0 %v2108
    %2796 = vmatprep.subr.mxu0 %v2113
    %2797 = vmatpush1.msra.mxu0 %v2112
    %2798 = vmatprep.subr.mxu0 %v2117
    %2799 = vmatpush1.msra.mxu0 %v2116
    %2800 = vmatprep.subr.mxu0 %v2121
    %2801 = vmatpush1.msra.mxu0 %v2120
    %2802 = vmatprep.subr.mxu0 %v2125
    %2803 = vmatpush1.msra.mxu0 %v2124
    %2804 = vmatprep.subr.mxu0 %v2129
    %2805 = vmatpush1.msra.mxu0 %v2128
    %2806 = vmatprep.subr.mxu0 %v2133
    %2807 = vmatpush1.msra.mxu0 %v2132
    %2808 = vmatprep.subr.mxu0 %v2137
    %2809 = vmatpush1.msra.mxu0 %v2136
    %2810 = vmatprep.subr.mxu0 %v2141
    %2811 = vmatpush1.msra.mxu0 %v2140
    %2812 = vmatprep.subr.mxu0 0.0
    %2813 = vmatpush1.msra.mxu0 0.0
    %2814 = vmatprep.subr.mxu0 0.0
    %2815 = vmatpush1.msra.mxu0 0.0
    %2816 = vmatprep.subr.mxu0 0.0
    %2817 = vmatpush1.msra.mxu0 0.0
    %2818 = vmatprep.subr.mxu0 0.0
    %2819 = vmatpush1.msra.mxu0 0.0
    %2820 = vmatprep.subr.mxu0 0.0
    %2821 = vmatpush1.msra.mxu0 0.0
    %2822 = vmatprep.subr.mxu0 0.0
    %2823 = vmatpush1.msra.mxu0 0.0
    %2824 = vmatprep.subr.mxu0 0.0
    %2825 = vmatpush1.msra.mxu0 0.0
    %2826 = vmatprep.subr.mxu0 0.0
    %2827 = vmatpush1.msra.mxu0 0.0
    %2828 = vmatprep.subr.mxu0 0.0
    %2829 = vmatpush1.msra.mxu0 0.0
    %2830 = vmatprep.subr.mxu0 0.0
    %2831 = vmatpush1.msra.mxu0 0.0
    %2832 = vmatprep.subr.mxu0 0.0
    %2833 = vmatpush1.msra.mxu0 0.0
    %2834 = vmatprep.subr.mxu0 0.0
    %2835 = vmatpush1.msra.mxu0 0.0
    %2836 = vmatprep.subr.mxu0 0.0
    %2837 = vmatpush1.msra.mxu0 0.0
    %2838 = vmatprep.subr.mxu0 0.0
    %2839 = vmatpush1.msra.mxu0 0.0
    %2840 = vmatprep.subr.mxu0 0.0
    %2841 = vmatpush1.msra.mxu0 0.0
    %2842 = vmatprep.subr.mxu0 0.0
    %2843 = vmatpush1.msra.mxu0 0.0
    %2844 = vmatprep.mubr.f32.mxu0 0.0
    %2845 = vmatmul.mubr.f32.gmra.mrb[0].mxu0 %v2773
    %v2846 = vpop.f32.mrb[0].mxu0
    %v2847 = vadd.f32 %v2776, %v2846
    %v2848 = vpop.f32.mrb[0].mxu0
    %v2849 = vadd.f32 %v2777, %v2848
    %2850 = vdwg.mxu0
    %2851 = vmatprep.subr.mxu0 %v2083
    %2852 = vmatpush1.msra.mxu0 %v2082
    %2853 = vmatprep.subr.mxu0 %v2087
    %2854 = vmatpush1.msra.mxu0 %v2086
    %2855 = vmatprep.subr.mxu0 %v2091
    %2856 = vmatpush1.msra.mxu0 %v2090
    %2857 = vmatprep.subr.mxu0 %v2095
    %2858 = vmatpush1.msra.mxu0 %v2094
    %2859 = vmatprep.subr.mxu0 %v2099
    %2860 = vmatpush1.msra.mxu0 %v2098
    %2861 = vmatprep.subr.mxu0 %v2103
    %2862 = vmatpush1.msra.mxu0 %v2102
    %2863 = vmatprep.subr.mxu0 %v2107
    %2864 = vmatpush1.msra.mxu0 %v2106
    %2865 = vmatprep.subr.mxu0 %v2111
    %2866 = vmatpush1.msra.mxu0 %v2110
    %2867 = vmatprep.subr.mxu0 %v2115
    %2868 = vmatpush1.msra.mxu0 %v2114
    %2869 = vmatprep.subr.mxu0 %v2119
    %2870 = vmatpush1.msra.mxu0 %v2118
    %2871 = vmatprep.subr.mxu0 %v2123
    %2872 = vmatpush1.msra.mxu0 %v2122
    %2873 = vmatprep.subr.mxu0 %v2127
    %2874 = vmatpush1.msra.mxu0 %v2126
    %2875 = vmatprep.subr.mxu0 %v2131
    %2876 = vmatpush1.msra.mxu0 %v2130
    %2877 = vmatprep.subr.mxu0 %v2135
    %2878 = vmatpush1.msra.mxu0 %v2134
    %2879 = vmatprep.subr.mxu0 %v2139
    %2880 = vmatpush1.msra.mxu0 %v2138
    %2881 = vmatprep.subr.mxu0 %v2143
    %2882 = vmatpush1.msra.mxu0 %v2142
    %2883 = vmatprep.subr.mxu0 0.0
    %2884 = vmatpush1.msra.mxu0 0.0
    %2885 = vmatprep.subr.mxu0 0.0
    %2886 = vmatpush1.msra.mxu0 0.0
    %2887 = vmatprep.subr.mxu0 0.0
    %2888 = vmatpush1.msra.mxu0 0.0
    %2889 = vmatprep.subr.mxu0 0.0
    %2890 = vmatpush1.msra.mxu0 0.0
    %2891 = vmatprep.subr.mxu0 0.0
    %2892 = vmatpush1.msra.mxu0 0.0
    %2893 = vmatprep.subr.mxu0 0.0
    %2894 = vmatpush1.msra.mxu0 0.0
    %2895 = vmatprep.subr.mxu0 0.0
    %2896 = vmatpush1.msra.mxu0 0.0
    %2897 = vmatprep.subr.mxu0 0.0
    %2898 = vmatpush1.msra.mxu0 0.0
    %2899 = vmatprep.subr.mxu0 0.0
    %2900 = vmatpush1.msra.mxu0 0.0
    %2901 = vmatprep.subr.mxu0 0.0
    %2902 = vmatpush1.msra.mxu0 0.0
    %2903 = vmatprep.subr.mxu0 0.0
    %2904 = vmatpush1.msra.mxu0 0.0
    %2905 = vmatprep.subr.mxu0 0.0
    %2906 = vmatpush1.msra.mxu0 0.0
    %2907 = vmatprep.subr.mxu0 0.0
    %2908 = vmatpush1.msra.mxu0 0.0
    %2909 = vmatprep.subr.mxu0 0.0
    %2910 = vmatpush1.msra.mxu0 0.0
    %2911 = vmatprep.subr.mxu0 0.0
    %2912 = vmatpush1.msra.mxu0 0.0
    %2913 = vmatprep.subr.mxu0 0.0
    %2914 = vmatpush1.msra.mxu0 0.0
    %2915 = vmatprep.mubr.f32.mxu0 0.0
    %2916 = vmatmul.mubr.f32.gmra.mrb[0].mxu0 %v2773
    %v2917 = vpop.f32.mrb[0].mxu0
    %v2918 = vadd.f32 %v2778, %v2917
    %v2919 = vpop.f32.mrb[0].mxu0
    %v2920 = vadd.f32 %v2779, %v2919
    %2921 = vdwg.mxu0
    %v2922 = vxor.u32 %v2847, 2147483648
    %v2923 = vmul.f32 %v2922, 1.442695
    %v2924 = vpow.pop %v2923
    %v2925 = vadd.f32 %v2924, 1.0
    %v2926 = vrcp.pop %v2925
    %v2927 = vmul.f32 1.0, %v2926
    %v2928 = vxor.u32 %v2849, 2147483648
    %v2929 = vmul.f32 %v2928, 1.442695
    %v2930 = vpow.pop %v2929
    %v2931 = vadd.f32 %v2930, 1.0
    %v2932 = vrcp.pop %v2931
    %v2933 = vmul.f32 1.0, %v2932
    %v2934 = vtanh.pop %v2918
    %v2935 = vxor.u32 %v2920, 2147483648
    %v2936 = vmul.f32 %v2935, 1.442695
    %v2937 = vpow.pop %v2936
    %v2938 = vadd.f32 %v2937, 1.0
    %v2939 = vrcp.pop %v2938
    %v2940 = vmul.f32 1.0, %v2939
    %v2941 = vmul.f32 %v2933, %v2771
    %v2942 = vmul.f32 %v2927, %v2934
    %v2943 = vadd.f32 %v2941, %v2942
    %v2944 = vtanh.pop %v2943
    %v2945 = vmul.f32 %v2940, %v2944
    %s2946 = scalar_lea.vmem [#allocation2], 16
    %2947 = vst [vmem:[%s2946] sm:$0xff] %v2945
    %v2948 = vld [vmem:[%s1147] sm:$0xff]
    %v2949 = vld [vmem:[%s1147 + $0x8] sm:$0xff]
    %v2950 = vld [vmem:[%s1147 + $0x10] sm:$0xff]
    %v2951 = vld [vmem:[%s1147 + $0x18] sm:$0xff]
    %2952 = vmatprep.subr.mxu0 %v2081
    %2953 = vmatpush1.msra.mxu0 %v2080
    %2954 = vmatprep.subr.mxu0 %v2085
    %2955 = vmatpush1.msra.mxu0 %v2084
    %2956 = vmatprep.subr.mxu0 %v2089
    %2957 = vmatpush1.msra.mxu0 %v2088
    %2958 = vmatprep.subr.mxu0 %v2093
    %2959 = vmatpush1.msra.mxu0 %v2092
    %2960 = vmatprep.subr.mxu0 %v2097
    %2961 = vmatpush1.msra.mxu0 %v2096
    %2962 = vmatprep.subr.mxu0 %v2101
    %2963 = vmatpush1.msra.mxu0 %v2100
    %2964 = vmatprep.subr.mxu0 %v2105
    %2965 = vmatpush1.msra.mxu0 %v2104
    %2966 = vmatprep.subr.mxu0 %v2109
    %2967 = vmatpush1.msra.mxu0 %v2108
    %2968 = vmatprep.subr.mxu0 %v2113
    %2969 = vmatpush1.msra.mxu0 %v2112
    %2970 = vmatprep.subr.mxu0 %v2117
    %2971 = vmatpush1.msra.mxu0 %v2116
    %2972 = vmatprep.subr.mxu0 %v2121
    %2973 = vmatpush1.msra.mxu0 %v2120
    %2974 = vmatprep.subr.mxu0 %v2125
    %2975 = vmatpush1.msra.mxu0 %v2124
    %2976 = vmatprep.subr.mxu0 %v2129
    %2977 = vmatpush1.msra.mxu0 %v2128
    %2978 = vmatprep.subr.mxu0 %v2133
    %2979 = vmatpush1.msra.mxu0 %v2132
    %2980 = vmatprep.subr.mxu0 %v2137
    %2981 = vmatpush1.msra.mxu0 %v2136
    %2982 = vmatprep.subr.mxu0 %v2141
    %2983 = vmatpush1.msra.mxu0 %v2140
    %2984 = vmatprep.subr.mxu0 0.0
    %2985 = vmatpush1.msra.mxu0 0.0
    %2986 = vmatprep.subr.mxu0 0.0
    %2987 = vmatpush1.msra.mxu0 0.0
    %2988 = vmatprep.subr.mxu0 0.0
    %2989 = vmatpush1.msra.mxu0 0.0
    %2990 = vmatprep.subr.mxu0 0.0
    %2991 = vmatpush1.msra.mxu0 0.0
    %2992 = vmatprep.subr.mxu0 0.0
    %2993 = vmatpush1.msra.mxu0 0.0
    %2994 = vmatprep.subr.mxu0 0.0
    %2995 = vmatpush1.msra.mxu0 0.0
    %2996 = vmatprep.subr.mxu0 0.0
    %2997 = vmatpush1.msra.mxu0 0.0
    %2998 = vmatprep.subr.mxu0 0.0
    %2999 = vmatpush1.msra.mxu0 0.0
    %3000 = vmatprep.subr.mxu0 0.0
    %3001 = vmatpush1.msra.mxu0 0.0
    %3002 = vmatprep.subr.mxu0 0.0
    %3003 = vmatpush1.msra.mxu0 0.0
    %3004 = vmatprep.subr.mxu0 0.0
    %3005 = vmatpush1.msra.mxu0 0.0
    %3006 = vmatprep.subr.mxu0 0.0
    %3007 = vmatpush1.msra.mxu0 0.0
    %3008 = vmatprep.subr.mxu0 0.0
    %3009 = vmatpush1.msra.mxu0 0.0
    %3010 = vmatprep.subr.mxu0 0.0
    %3011 = vmatpush1.msra.mxu0 0.0
    %3012 = vmatprep.subr.mxu0 0.0
    %3013 = vmatpush1.msra.mxu0 0.0
    %3014 = vmatprep.subr.mxu0 0.0
    %3015 = vmatpush1.msra.mxu0 0.0
    %3016 = vmatprep.mubr.f32.mxu0 0.0
    %3017 = vmatmul.mubr.f32.gmra.mrb[0].mxu0 %v2945
    %v3018 = vpop.f32.mrb[0].mxu0
    %v3019 = vadd.f32 %v2948, %v3018
    %v3020 = vpop.f32.mrb[0].mxu0
    %v3021 = vadd.f32 %v2949, %v3020
    %3022 = vdwg.mxu0
    %3023 = vmatprep.subr.mxu0 %v2083
    %3024 = vmatpush1.msra.mxu0 %v2082
    %3025 = vmatprep.subr.mxu0 %v2087
    %3026 = vmatpush1.msra.mxu0 %v2086
    %3027 = vmatprep.subr.mxu0 %v2091
    %3028 = vmatpush1.msra.mxu0 %v2090
    %3029 = vmatprep.subr.mxu0 %v2095
    %3030 = vmatpush1.msra.mxu0 %v2094
    %3031 = vmatprep.subr.mxu0 %v2099
    %3032 = vmatpush1.msra.mxu0 %v2098
    %3033 = vmatprep.subr.mxu0 %v2103
    %3034 = vmatpush1.msra.mxu0 %v2102
    %3035 = vmatprep.subr.mxu0 %v2107
    %3036 = vmatpush1.msra.mxu0 %v2106
    %3037 = vmatprep.subr.mxu0 %v2111
    %3038 = vmatpush1.msra.mxu0 %v2110
    %3039 = vmatprep.subr.mxu0 %v2115
    %3040 = vmatpush1.msra.mxu0 %v2114
    %3041 = vmatprep.subr.mxu0 %v2119
    %3042 = vmatpush1.msra.mxu0 %v2118
    %3043 = vmatprep.subr.mxu0 %v2123
    %3044 = vmatpush1.msra.mxu0 %v2122
    %3045 = vmatprep.subr.mxu0 %v2127
    %3046 = vmatpush1.msra.mxu0 %v2126
    %3047 = vmatprep.subr.mxu0 %v2131
    %3048 = vmatpush1.msra.mxu0 %v2130
    %3049 = vmatprep.subr.mxu0 %v2135
    %3050 = vmatpush1.msra.mxu0 %v2134
    %3051 = vmatprep.subr.mxu0 %v2139
    %3052 = vmatpush1.msra.mxu0 %v2138
    %3053 = vmatprep.subr.mxu0 %v2143
    %3054 = vmatpush1.msra.mxu0 %v2142
    %3055 = vmatprep.subr.mxu0 0.0
    %3056 = vmatpush1.msra.mxu0 0.0
    %3057 = vmatprep.subr.mxu0 0.0
    %3058 = vmatpush1.msra.mxu0 0.0
    %3059 = vmatprep.subr.mxu0 0.0
    %3060 = vmatpush1.msra.mxu0 0.0
    %3061 = vmatprep.subr.mxu0 0.0
    %3062 = vmatpush1.msra.mxu0 0.0
    %3063 = vmatprep.subr.mxu0 0.0
    %3064 = vmatpush1.msra.mxu0 0.0
    %3065 = vmatprep.subr.mxu0 0.0
    %3066 = vmatpush1.msra.mxu0 0.0
    %3067 = vmatprep.subr.mxu0 0.0
    %3068 = vmatpush1.msra.mxu0 0.0
    %3069 = vmatprep.subr.mxu0 0.0
    %3070 = vmatpush1.msra.mxu0 0.0
    %3071 = vmatprep.subr.mxu0 0.0
    %3072 = vmatpush1.msra.mxu0 0.0
    %3073 = vmatprep.subr.mxu0 0.0
    %3074 = vmatpush1.msra.mxu0 0.0
    %3075 = vmatprep.subr.mxu0 0.0
    %3076 = vmatpush1.msra.mxu0 0.0
    %3077 = vmatprep.subr.mxu0 0.0
    %3078 = vmatpush1.msra.mxu0 0.0
    %3079 = vmatprep.subr.mxu0 0.0
    %3080 = vmatpush1.msra.mxu0 0.0
    %3081 = vmatprep.subr.mxu0 0.0
    %3082 = vmatpush1.msra.mxu0 0.0
    %3083 = vmatprep.subr.mxu0 0.0
    %3084 = vmatpush1.msra.mxu0 0.0
    %3085 = vmatprep.subr.mxu0 0.0
    %3086 = vmatpush1.msra.mxu0 0.0
    %3087 = vmatprep.mubr.f32.mxu0 0.0
    %3088 = vmatmul.mubr.f32.gmra.mrb[0].mxu0 %v2945
    %v3089 = vpop.f32.mrb[0].mxu0
    %v3090 = vadd.f32 %v2950, %v3089
    %v3091 = vpop.f32.mrb[0].mxu0
    %v3092 = vadd.f32 %v2951, %v3091
    %3093 = vdwg.mxu0
    %v3094 = vxor.u32 %v3019, 2147483648
    %v3095 = vmul.f32 %v3094, 1.442695
    %v3096 = vpow.pop %v3095
    %v3097 = vadd.f32 %v3096, 1.0
    %v3098 = vrcp.pop %v3097
    %v3099 = vmul.f32 1.0, %v3098
    %v3100 = vxor.u32 %v3021, 2147483648
    %v3101 = vmul.f32 %v3100, 1.442695
    %v3102 = vpow.pop %v3101
    %v3103 = vadd.f32 %v3102, 1.0
    %v3104 = vrcp.pop %v3103
    %v3105 = vmul.f32 1.0, %v3104
    %v3106 = vtanh.pop %v3090
    %v3107 = vxor.u32 %v3092, 2147483648
    %v3108 = vmul.f32 %v3107, 1.442695
    %v3109 = vpow.pop %v3108
    %v3110 = vadd.f32 %v3109, 1.0
    %v3111 = vrcp.pop %v3110
    %v3112 = vmul.f32 1.0, %v3111
    %v3113 = vmul.f32 %v3105, %v2943
    %v3114 = vmul.f32 %v3099, %v3106
    %v3115 = vadd.f32 %v3113, %v3114
    %v3116 = vtanh.pop %v3115
    %v3117 = vmul.f32 %v3112, %v3116
    %s3118 = scalar_lea.vmem [#allocation2], 24
    %3119 = vst [vmem:[%s3118] sm:$0xff] %v3117
    %v3120 = vld [vmem:[%s1320] sm:$0xff]
    %v3121 = vld [vmem:[%s1320 + $0x8] sm:$0xff]
    %v3122 = vld [vmem:[%s1320 + $0x10] sm:$0xff]
    %v3123 = vld [vmem:[%s1320 + $0x18] sm:$0xff]
    %3124 = vmatprep.subr.mxu0 %v2081
    %3125 = vmatpush1.msra.mxu0 %v2080
    %3126 = vmatprep.subr.mxu0 %v2085
    %3127 = vmatpush1.msra.mxu0 %v2084
    %3128 = vmatprep.subr.mxu0 %v2089
    %3129 = vmatpush1.msra.mxu0 %v2088
    %3130 = vmatprep.subr.mxu0 %v2093
    %3131 = vmatpush1.msra.mxu0 %v2092
    %3132 = vmatprep.subr.mxu0 %v2097
    %3133 = vmatpush1.msra.mxu0 %v2096
    %3134 = vmatprep.subr.mxu0 %v2101
    %3135 = vmatpush1.msra.mxu0 %v2100
    %3136 = vmatprep.subr.mxu0 %v2105
    %3137 = vmatpush1.msra.mxu0 %v2104
    %3138 = vmatprep.subr.mxu0 %v2109
    %3139 = vmatpush1.msra.mxu0 %v2108
    %3140 = vmatprep.subr.mxu0 %v2113
    %3141 = vmatpush1.msra.mxu0 %v2112
    %3142 = vmatprep.subr.mxu0 %v2117
    %3143 = vmatpush1.msra.mxu0 %v2116
    %3144 = vmatprep.subr.mxu0 %v2121
    %3145 = vmatpush1.msra.mxu0 %v2120
    %3146 = vmatprep.subr.mxu0 %v2125
    %3147 = vmatpush1.msra.mxu0 %v2124
    %3148 = vmatprep.subr.mxu0 %v2129
    %3149 = vmatpush1.msra.mxu0 %v2128
    %3150 = vmatprep.subr.mxu0 %v2133
    %3151 = vmatpush1.msra.mxu0 %v2132
    %3152 = vmatprep.subr.mxu0 %v2137
    %3153 = vmatpush1.msra.mxu0 %v2136
    %3154 = vmatprep.subr.mxu0 %v2141
    %3155 = vmatpush1.msra.mxu0 %v2140
    %3156 = vmatprep.subr.mxu0 0.0
    %3157 = vmatpush1.msra.mxu0 0.0
    %3158 = vmatprep.subr.mxu0 0.0
    %3159 = vmatpush1.msra.mxu0 0.0
    %3160 = vmatprep.subr.mxu0 0.0
    %3161 = vmatpush1.msra.mxu0 0.0
    %3162 = vmatprep.subr.mxu0 0.0
    %3163 = vmatpush1.msra.mxu0 0.0
    %3164 = vmatprep.subr.mxu0 0.0
    %3165 = vmatpush1.msra.mxu0 0.0
    %3166 = vmatprep.subr.mxu0 0.0
    %3167 = vmatpush1.msra.mxu0 0.0
    %3168 = vmatprep.subr.mxu0 0.0
    %3169 = vmatpush1.msra.mxu0 0.0
    %3170 = vmatprep.subr.mxu0 0.0
    %3171 = vmatpush1.msra.mxu0 0.0
    %3172 = vmatprep.subr.mxu0 0.0
    %3173 = vmatpush1.msra.mxu0 0.0
    %3174 = vmatprep.subr.mxu0 0.0
    %3175 = vmatpush1.msra.mxu0 0.0
    %3176 = vmatprep.subr.mxu0 0.0
    %3177 = vmatpush1.msra.mxu0 0.0
    %3178 = vmatprep.subr.mxu0 0.0
    %3179 = vmatpush1.msra.mxu0 0.0
    %3180 = vmatprep.subr.mxu0 0.0
    %3181 = vmatpush1.msra.mxu0 0.0
    %3182 = vmatprep.subr.mxu0 0.0
    %3183 = vmatpush1.msra.mxu0 0.0
    %3184 = vmatprep.subr.mxu0 0.0
    %3185 = vmatpush1.msra.mxu0 0.0
    %3186 = vmatprep.subr.mxu0 0.0
    %3187 = vmatpush1.msra.mxu0 0.0
    %3188 = vmatprep.mubr.f32.mxu0 0.0
    %3189 = vmatmul.mubr.f32.gmra.mrb[0].mxu0 %v3117
    %v3190 = vpop.f32.mrb[0].mxu0
    %v3191 = vadd.f32 %v3120, %v3190
    %v3192 = vpop.f32.mrb[0].mxu0
    %v3193 = vadd.f32 %v3121, %v3192
    %3194 = vdwg.mxu0
    %3195 = vmatprep.subr.mxu0 %v2083
    %3196 = vmatpush1.msra.mxu0 %v2082
    %3197 = vmatprep.subr.mxu0 %v2087
    %3198 = vmatpush1.msra.mxu0 %v2086
    %3199 = vmatprep.subr.mxu0 %v2091
    %3200 = vmatpush1.msra.mxu0 %v2090
    %3201 = vmatprep.subr.mxu0 %v2095
    %3202 = vmatpush1.msra.mxu0 %v2094
    %3203 = vmatprep.subr.mxu0 %v2099
    %3204 = vmatpush1.msra.mxu0 %v2098
    %3205 = vmatprep.subr.mxu0 %v2103
    %3206 = vmatpush1.msra.mxu0 %v2102
    %3207 = vmatprep.subr.mxu0 %v2107
    %3208 = vmatpush1.msra.mxu0 %v2106
    %3209 = vmatprep.subr.mxu0 %v2111
    %3210 = vmatpush1.msra.mxu0 %v2110
    %3211 = vmatprep.subr.mxu0 %v2115
    %3212 = vmatpush1.msra.mxu0 %v2114
    %3213 = vmatprep.subr.mxu0 %v2119
    %3214 = vmatpush1.msra.mxu0 %v2118
    %3215 = vmatprep.subr.mxu0 %v2123
    %3216 = vmatpush1.msra.mxu0 %v2122
    %3217 = vmatprep.subr.mxu0 %v2127
    %3218 = vmatpush1.msra.mxu0 %v2126
    %3219 = vmatprep.subr.mxu0 %v2131
    %3220 = vmatpush1.msra.mxu0 %v2130
    %3221 = vmatprep.subr.mxu0 %v2135
    %3222 = vmatpush1.msra.mxu0 %v2134
    %3223 = vmatprep.subr.mxu0 %v2139
    %3224 = vmatpush1.msra.mxu0 %v2138
    %3225 = vmatprep.subr.mxu0 %v2143
    %3226 = vmatpush1.msra.mxu0 %v2142
    %3227 = vmatprep.subr.mxu0 0.0
    %3228 = vmatpush1.msra.mxu0 0.0
    %3229 = vmatprep.subr.mxu0 0.0
    %3230 = vmatpush1.msra.mxu0 0.0
    %3231 = vmatprep.subr.mxu0 0.0
    %3232 = vmatpush1.msra.mxu0 0.0
    %3233 = vmatprep.subr.mxu0 0.0
    %3234 = vmatpush1.msra.mxu0 0.0
    %3235 = vmatprep.subr.mxu0 0.0
    %3236 = vmatpush1.msra.mxu0 0.0
    %3237 = vmatprep.subr.mxu0 0.0
    %3238 = vmatpush1.msra.mxu0 0.0
    %3239 = vmatprep.subr.mxu0 0.0
    %3240 = vmatpush1.msra.mxu0 0.0
    %3241 = vmatprep.subr.mxu0 0.0
    %3242 = vmatpush1.msra.mxu0 0.0
    %3243 = vmatprep.subr.mxu0 0.0
    %3244 = vmatpush1.msra.mxu0 0.0
    %3245 = vmatprep.subr.mxu0 0.0
    %3246 = vmatpush1.msra.mxu0 0.0
    %3247 = vmatprep.subr.mxu0 0.0
    %3248 = vmatpush1.msra.mxu0 0.0
    %3249 = vmatprep.subr.mxu0 0.0
    %3250 = vmatpush1.msra.mxu0 0.0
    %3251 = vmatprep.subr.mxu0 0.0
    %3252 = vmatpush1.msra.mxu0 0.0
    %3253 = vmatprep.subr.mxu0 0.0
    %3254 = vmatpush1.msra.mxu0 0.0
    %3255 = vmatprep.subr.mxu0 0.0
    %3256 = vmatpush1.msra.mxu0 0.0
    %3257 = vmatprep.subr.mxu0 0.0
    %3258 = vmatpush1.msra.mxu0 0.0
    %3259 = vmatprep.mubr.f32.mxu0 0.0
    %3260 = vmatmul.mubr.f32.gmra.mrb[0].mxu0 %v3117
    %v3261 = vpop.f32.mrb[0].mxu0
    %v3262 = vadd.f32 %v3122, %v3261
    %v3263 = vpop.f32.mrb[0].mxu0
    %v3264 = vadd.f32 %v3123, %v3263
    %3265 = vdwg.mxu0
    %v3266 = vxor.u32 %v3191, 2147483648
    %v3267 = vmul.f32 %v3266, 1.442695
    %v3268 = vpow.pop %v3267
    %v3269 = vadd.f32 %v3268, 1.0
    %v3270 = vrcp.pop %v3269
    %v3271 = vmul.f32 1.0, %v3270
    %v3272 = vxor.u32 %v3193, 2147483648
    %v3273 = vmul.f32 %v3272, 1.442695
    %v3274 = vpow.pop %v3273
    %v3275 = vadd.f32 %v3274, 1.0
    %v3276 = vrcp.pop %v3275
    %v3277 = vmul.f32 1.0, %v3276
    %v3278 = vtanh.pop %v3262
    %v3279 = vxor.u32 %v3264, 2147483648
    %v3280 = vmul.f32 %v3279, 1.442695
    %v3281 = vpow.pop %v3280
    %v3282 = vadd.f32 %v3281, 1.0
    %v3283 = vrcp.pop %v3282
    %v3284 = vmul.f32 1.0, %v3283
    %v3285 = vmul.f32 %v3277, %v3115
    %v3286 = vmul.f32 %v3271, %v3278
    %v3287 = vadd.f32 %v3285, %v3286
    %v3288 = vtanh.pop %v3287
    %v3289 = vmul.f32 %v3284, %v3288
    %s3290 = scalar_lea.vmem [#allocation2], 32
    %3291 = vst [vmem:[%s3290] sm:$0xff] %v3289
    %v3292 = vld [vmem:[%s1493] sm:$0xff]
    %v3293 = vld [vmem:[%s1493 + $0x8] sm:$0xff]
    %v3294 = vld [vmem:[%s1493 + $0x10] sm:$0xff]
    %v3295 = vld [vmem:[%s1493 + $0x18] sm:$0xff]
    %3296 = vmatprep.subr.mxu0 %v2081
    %3297 = vmatpush1.msra.mxu0 %v2080
    %3298 = vmatprep.subr.mxu0 %v2085
    %3299 = vmatpush1.msra.mxu0 %v2084
    %3300 = vmatprep.subr.mxu0 %v2089
    %3301 = vmatpush1.msra.mxu0 %v2088
    %3302 = vmatprep.subr.mxu0 %v2093
    %3303 = vmatpush1.msra.mxu0 %v2092
    %3304 = vmatprep.subr.mxu0 %v2097
    %3305 = vmatpush1.msra.mxu0 %v2096
    %3306 = vmatprep.subr.mxu0 %v2101
    %3307 = vmatpush1.msra.mxu0 %v2100
    %3308 = vmatprep.subr.mxu0 %v2105
    %3309 = vmatpush1.msra.mxu0 %v2104
    %3310 = vmatprep.subr.mxu0 %v2109
    %3311 = vmatpush1.msra.mxu0 %v2108
    %3312 = vmatprep.subr.mxu0 %v2113
    %3313 = vmatpush1.msra.mxu0 %v2112
    %3314 = vmatprep.subr.mxu0 %v2117
    %3315 = vmatpush1.msra.mxu0 %v2116
    %3316 = vmatprep.subr.mxu0 %v2121
    %3317 = vmatpush1.msra.mxu0 %v2120
    %3318 = vmatprep.subr.mxu0 %v2125
    %3319 = vmatpush1.msra.mxu0 %v2124
    %3320 = vmatprep.subr.mxu0 %v2129
    %3321 = vmatpush1.msra.mxu0 %v2128
    %3322 = vmatprep.subr.mxu0 %v2133
    %3323 = vmatpush1.msra.mxu0 %v2132
    %3324 = vmatprep.subr.mxu0 %v2137
    %3325 = vmatpush1.msra.mxu0 %v2136
    %3326 = vmatprep.subr.mxu0 %v2141
    %3327 = vmatpush1.msra.mxu0 %v2140
    %3328 = vmatprep.subr.mxu0 0.0
    %3329 = vmatpush1.msra.mxu0 0.0
    %3330 = vmatprep.subr.mxu0 0.0
    %3331 = vmatpush1.msra.mxu0 0.0
    %3332 = vmatprep.subr.mxu0 0.0
    %3333 = vmatpush1.msra.mxu0 0.0
    %3334 = vmatprep.subr.mxu0 0.0
    %3335 = vmatpush1.msra.mxu0 0.0
    %3336 = vmatprep.subr.mxu0 0.0
    %3337 = vmatpush1.msra.mxu0 0.0
    %3338 = vmatprep.subr.mxu0 0.0
    %3339 = vmatpush1.msra.mxu0 0.0
    %3340 = vmatprep.subr.mxu0 0.0
    %3341 = vmatpush1.msra.mxu0 0.0
    %3342 = vmatprep.subr.mxu0 0.0
    %3343 = vmatpush1.msra.mxu0 0.0
    %3344 = vmatprep.subr.mxu0 0.0
    %3345 = vmatpush1.msra.mxu0 0.0
    %3346 = vmatprep.subr.mxu0 0.0
    %3347 = vmatpush1.msra.mxu0 0.0
    %3348 = vmatprep.subr.mxu0 0.0
    %3349 = vmatpush1.msra.mxu0 0.0
    %3350 = vmatprep.subr.mxu0 0.0
    %3351 = vmatpush1.msra.mxu0 0.0
    %3352 = vmatprep.subr.mxu0 0.0
    %3353 = vmatpush1.msra.mxu0 0.0
    %3354 = vmatprep.subr.mxu0 0.0
    %3355 = vmatpush1.msra.mxu0 0.0
    %3356 = vmatprep.subr.mxu0 0.0
    %3357 = vmatpush1.msra.mxu0 0.0
    %3358 = vmatprep.subr.mxu0 0.0
    %3359 = vmatpush1.msra.mxu0 0.0
    %3360 = vmatprep.mubr.f32.mxu0 0.0
    %3361 = vmatmul.mubr.f32.gmra.mrb[0].mxu0 %v3289
    %v3362 = vpop.f32.mrb[0].mxu0
    %v3363 = vadd.f32 %v3292, %v3362
    %v3364 = vpop.f32.mrb[0].mxu0
    %v3365 = vadd.f32 %v3293, %v3364
    %3366 = vdwg.mxu0
    %3367 = vmatprep.subr.mxu0 %v2083
    %3368 = vmatpush1.msra.mxu0 %v2082
    %3369 = vmatprep.subr.mxu0 %v2087
    %3370 = vmatpush1.msra.mxu0 %v2086
    %3371 = vmatprep.subr.mxu0 %v2091
    %3372 = vmatpush1.msra.mxu0 %v2090
    %3373 = vmatprep.subr.mxu0 %v2095
    %3374 = vmatpush1.msra.mxu0 %v2094
    %3375 = vmatprep.subr.mxu0 %v2099
    %3376 = vmatpush1.msra.mxu0 %v2098
    %3377 = vmatprep.subr.mxu0 %v2103
    %3378 = vmatpush1.msra.mxu0 %v2102
    %3379 = vmatprep.subr.mxu0 %v2107
    %3380 = vmatpush1.msra.mxu0 %v2106
    %3381 = vmatprep.subr.mxu0 %v2111
    %3382 = vmatpush1.msra.mxu0 %v2110
    %3383 = vmatprep.subr.mxu0 %v2115
    %3384 = vmatpush1.msra.mxu0 %v2114
    %3385 = vmatprep.subr.mxu0 %v2119
    %3386 = vmatpush1.msra.mxu0 %v2118
    %3387 = vmatprep.subr.mxu0 %v2123
    %3388 = vmatpush1.msra.mxu0 %v2122
    %3389 = vmatprep.subr.mxu0 %v2127
    %3390 = vmatpush1.msra.mxu0 %v2126
    %3391 = vmatprep.subr.mxu0 %v2131
    %3392 = vmatpush1.msra.mxu0 %v2130
    %3393 = vmatprep.subr.mxu0 %v2135
    %3394 = vmatpush1.msra.mxu0 %v2134
    %3395 = vmatprep.subr.mxu0 %v2139
    %3396 = vmatpush1.msra.mxu0 %v2138
    %3397 = vmatprep.subr.mxu0 %v2143
    %3398 = vmatpush1.msra.mxu0 %v2142
    %3399 = vmatprep.subr.mxu0 0.0
    %3400 = vmatpush1.msra.mxu0 0.0
    %3401 = vmatprep.subr.mxu0 0.0
    %3402 = vmatpush1.msra.mxu0 0.0
    %3403 = vmatprep.subr.mxu0 0.0
    %3404 = vmatpush1.msra.mxu0 0.0
    %3405 = vmatprep.subr.mxu0 0.0
    %3406 = vmatpush1.msra.mxu0 0.0
    %3407 = vmatprep.subr.mxu0 0.0
    %3408 = vmatpush1.msra.mxu0 0.0
    %3409 = vmatprep.subr.mxu0 0.0
    %3410 = vmatpush1.msra.mxu0 0.0
    %3411 = vmatprep.subr.mxu0 0.0
    %3412 = vmatpush1.msra.mxu0 0.0
    %3413 = vmatprep.subr.mxu0 0.0
    %3414 = vmatpush1.msra.mxu0 0.0
    %3415 = vmatprep.subr.mxu0 0.0
    %3416 = vmatpush1.msra.mxu0 0.0
    %3417 = vmatprep.subr.mxu0 0.0
    %3418 = vmatpush1.msra.mxu0 0.0
    %3419 = vmatprep.subr.mxu0 0.0
    %3420 = vmatpush1.msra.mxu0 0.0
    %3421 = vmatprep.subr.mxu0 0.0
    %3422 = vmatpush1.msra.mxu0 0.0
    %3423 = vmatprep.subr.mxu0 0.0
    %3424 = vmatpush1.msra.mxu0 0.0
    %3425 = vmatprep.subr.mxu0 0.0
    %3426 = vmatpush1.msra.mxu0 0.0
    %3427 = vmatprep.subr.mxu0 0.0
    %3428 = vmatpush1.msra.mxu0 0.0
    %3429 = vmatprep.subr.mxu0 0.0
    %3430 = vmatpush1.msra.mxu0 0.0
    %3431 = vmatprep.mubr.f32.mxu0 0.0
    %3432 = vmatmul.mubr.f32.gmra.mrb[0].mxu0 %v3289
    %v3433 = vpop.f32.mrb[0].mxu0
    %v3434 = vadd.f32 %v3294, %v3433
    %v3435 = vpop.f32.mrb[0].mxu0
    %v3436 = vadd.f32 %v3295, %v3435
    %3437 = vdwg.mxu0
    %v3438 = vxor.u32 %v3363, 2147483648
    %v3439 = vmul.f32 %v3438, 1.442695
    %v3440 = vpow.pop %v3439
    %v3441 = vadd.f32 %v3440, 1.0
    %v3442 = vrcp.pop %v3441
    %v3443 = vmul.f32 1.0, %v3442
    %v3444 = vxor.u32 %v3365, 2147483648
    %v3445 = vmul.f32 %v3444, 1.442695
    %v3446 = vpow.pop %v3445
    %v3447 = vadd.f32 %v3446, 1.0
    %v3448 = vrcp.pop %v3447
    %v3449 = vmul.f32 1.0, %v3448
    %v3450 = vtanh.pop %v3434
    %v3451 = vxor.u32 %v3436, 2147483648
    %v3452 = vmul.f32 %v3451, 1.442695
    %v3453 = vpow.pop %v3452
    %v3454 = vadd.f32 %v3453, 1.0
    %v3455 = vrcp.pop %v3454
    %v3456 = vmul.f32 1.0, %v3455
    %v3457 = vmul.f32 %v3449, %v3287
    %v3458 = vmul.f32 %v3443, %v3450
    %v3459 = vadd.f32 %v3457, %v3458
    %v3460 = vtanh.pop %v3459
    %v3461 = vmul.f32 %v3456, %v3460
    %s3462 = scalar_lea.vmem [#allocation2], 40
    %3463 = vst [vmem:[%s3462] sm:$0xff] %v3461
    %v3464 = vld [vmem:[%s1666] sm:$0xff]
    %v3465 = vld [vmem:[%s1666 + $0x8] sm:$0xff]
    %v3466 = vld [vmem:[%s1666 + $0x10] sm:$0xff]
    %v3467 = vld [vmem:[%s1666 + $0x18] sm:$0xff]
    %3468 = vmatprep.subr.mxu0 %v2081
    %3469 = vmatpush1.msra.mxu0 %v2080
    %3470 = vmatprep.subr.mxu0 %v2085
    %3471 = vmatpush1.msra.mxu0 %v2084
    %3472 = vmatprep.subr.mxu0 %v2089
    %3473 = vmatpush1.msra.mxu0 %v2088
    %3474 = vmatprep.subr.mxu0 %v2093
    %3475 = vmatpush1.msra.mxu0 %v2092
    %3476 = vmatprep.subr.mxu0 %v2097
    %3477 = vmatpush1.msra.mxu0 %v2096
    %3478 = vmatprep.subr.mxu0 %v2101
    %3479 = vmatpush1.msra.mxu0 %v2100
    %3480 = vmatprep.subr.mxu0 %v2105
    %3481 = vmatpush1.msra.mxu0 %v2104
    %3482 = vmatprep.subr.mxu0 %v2109
    %3483 = vmatpush1.msra.mxu0 %v2108
    %3484 = vmatprep.subr.mxu0 %v2113
    %3485 = vmatpush1.msra.mxu0 %v2112
    %3486 = vmatprep.subr.mxu0 %v2117
    %3487 = vmatpush1.msra.mxu0 %v2116
    %3488 = vmatprep.subr.mxu0 %v2121
    %3489 = vmatpush1.msra.mxu0 %v2120
    %3490 = vmatprep.subr.mxu0 %v2125
    %3491 = vmatpush1.msra.mxu0 %v2124
    %3492 = vmatprep.subr.mxu0 %v2129
    %3493 = vmatpush1.msra.mxu0 %v2128
    %3494 = vmatprep.subr.mxu0 %v2133
    %3495 = vmatpush1.msra.mxu0 %v2132
    %3496 = vmatprep.subr.mxu0 %v2137
    %3497 = vmatpush1.msra.mxu0 %v2136
    %3498 = vmatprep.subr.mxu0 %v2141
    %3499 = vmatpush1.msra.mxu0 %v2140
    %3500 = vmatprep.subr.mxu0 0.0
    %3501 = vmatpush1.msra.mxu0 0.0
    %3502 = vmatprep.subr.mxu0 0.0
    %3503 = vmatpush1.msra.mxu0 0.0
    %3504 = vmatprep.subr.mxu0 0.0
    %3505 = vmatpush1.msra.mxu0 0.0
    %3506 = vmatprep.subr.mxu0 0.0
    %3507 = vmatpush1.msra.mxu0 0.0
    %3508 = vmatprep.subr.mxu0 0.0
    %3509 = vmatpush1.msra.mxu0 0.0
    %3510 = vmatprep.subr.mxu0 0.0
    %3511 = vmatpush1.msra.mxu0 0.0
    %3512 = vmatprep.subr.mxu0 0.0
    %3513 = vmatpush1.msra.mxu0 0.0
    %3514 = vmatprep.subr.mxu0 0.0
    %3515 = vmatpush1.msra.mxu0 0.0
    %3516 = vmatprep.subr.mxu0 0.0
    %3517 = vmatpush1.msra.mxu0 0.0
    %3518 = vmatprep.subr.mxu0 0.0
    %3519 = vmatpush1.msra.mxu0 0.0
    %3520 = vmatprep.subr.mxu0 0.0
    %3521 = vmatpush1.msra.mxu0 0.0
    %3522 = vmatprep.subr.mxu0 0.0
    %3523 = vmatpush1.msra.mxu0 0.0
    %3524 = vmatprep.subr.mxu0 0.0
    %3525 = vmatpush1.msra.mxu0 0.0
    %3526 = vmatprep.subr.mxu0 0.0
    %3527 = vmatpush1.msra.mxu0 0.0
    %3528 = vmatprep.subr.mxu0 0.0
    %3529 = vmatpush1.msra.mxu0 0.0
    %3530 = vmatprep.subr.mxu0 0.0
    %3531 = vmatpush1.msra.mxu0 0.0
    %3532 = vmatprep.mubr.f32.mxu0 0.0
    %3533 = vmatmul.mubr.f32.gmra.mrb[0].mxu0 %v3461
    %v3534 = vpop.f32.mrb[0].mxu0
    %v3535 = vadd.f32 %v3464, %v3534
    %v3536 = vpop.f32.mrb[0].mxu0
    %v3537 = vadd.f32 %v3465, %v3536
    %3538 = vdwg.mxu0
    %3539 = vmatprep.subr.mxu0 %v2083
    %3540 = vmatpush1.msra.mxu0 %v2082
    %3541 = vmatprep.subr.mxu0 %v2087
    %3542 = vmatpush1.msra.mxu0 %v2086
    %3543 = vmatprep.subr.mxu0 %v2091
    %3544 = vmatpush1.msra.mxu0 %v2090
    %3545 = vmatprep.subr.mxu0 %v2095
    %3546 = vmatpush1.msra.mxu0 %v2094
    %3547 = vmatprep.subr.mxu0 %v2099
    %3548 = vmatpush1.msra.mxu0 %v2098
    %3549 = vmatprep.subr.mxu0 %v2103
    %3550 = vmatpush1.msra.mxu0 %v2102
    %3551 = vmatprep.subr.mxu0 %v2107
    %3552 = vmatpush1.msra.mxu0 %v2106
    %3553 = vmatprep.subr.mxu0 %v2111
    %3554 = vmatpush1.msra.mxu0 %v2110
    %3555 = vmatprep.subr.mxu0 %v2115
    %3556 = vmatpush1.msra.mxu0 %v2114
    %3557 = vmatprep.subr.mxu0 %v2119
    %3558 = vmatpush1.msra.mxu0 %v2118
    %3559 = vmatprep.subr.mxu0 %v2123
    %3560 = vmatpush1.msra.mxu0 %v2122
    %3561 = vmatprep.subr.mxu0 %v2127
    %3562 = vmatpush1.msra.mxu0 %v2126
    %3563 = vmatprep.subr.mxu0 %v2131
    %3564 = vmatpush1.msra.mxu0 %v2130
    %3565 = vmatprep.subr.mxu0 %v2135
    %3566 = vmatpush1.msra.mxu0 %v2134
    %3567 = vmatprep.subr.mxu0 %v2139
    %3568 = vmatpush1.msra.mxu0 %v2138
    %3569 = vmatprep.subr.mxu0 %v2143
    %3570 = vmatpush1.msra.mxu0 %v2142
    %3571 = vmatprep.subr.mxu0 0.0
    %3572 = vmatpush1.msra.mxu0 0.0
    %3573 = vmatprep.subr.mxu0 0.0
    %3574 = vmatpush1.msra.mxu0 0.0
    %3575 = vmatprep.subr.mxu0 0.0
    %3576 = vmatpush1.msra.mxu0 0.0
    %3577 = vmatprep.subr.mxu0 0.0
    %3578 = vmatpush1.msra.mxu0 0.0
    %3579 = vmatprep.subr.mxu0 0.0
    %3580 = vmatpush1.msra.mxu0 0.0
    %3581 = vmatprep.subr.mxu0 0.0
    %3582 = vmatpush1.msra.mxu0 0.0
    %3583 = vmatprep.subr.mxu0 0.0
    %3584 = vmatpush1.msra.mxu0 0.0
    %3585 = vmatprep.subr.mxu0 0.0
    %3586 = vmatpush1.msra.mxu0 0.0
    %3587 = vmatprep.subr.mxu0 0.0
    %3588 = vmatpush1.msra.mxu0 0.0
    %3589 = vmatprep.subr.mxu0 0.0
    %3590 = vmatpush1.msra.mxu0 0.0
    %3591 = vmatprep.subr.mxu0 0.0
    %3592 = vmatpush1.msra.mxu0 0.0
    %3593 = vmatprep.subr.mxu0 0.0
    %3594 = vmatpush1.msra.mxu0 0.0
    %3595 = vmatprep.subr.mxu0 0.0
    %3596 = vmatpush1.msra.mxu0 0.0
    %3597 = vmatprep.subr.mxu0 0.0
    %3598 = vmatpush1.msra.mxu0 0.0
    %3599 = vmatprep.subr.mxu0 0.0
    %3600 = vmatpush1.msra.mxu0 0.0
    %3601 = vmatprep.subr.mxu0 0.0
    %3602 = vmatpush1.msra.mxu0 0.0
    %3603 = vmatprep.mubr.f32.mxu0 0.0
    %3604 = vmatmul.mubr.f32.gmra.mrb[0].mxu0 %v3461
    %v3605 = vpop.f32.mrb[0].mxu0
    %v3606 = vadd.f32 %v3466, %v3605
    %v3607 = vpop.f32.mrb[0].mxu0
    %v3608 = vadd.f32 %v3467, %v3607
    %3609 = vdwg.mxu0
    %v3610 = vxor.u32 %v3535, 2147483648
    %v3611 = vmul.f32 %v3610, 1.442695
    %v3612 = vpow.pop %v3611
    %v3613 = vadd.f32 %v3612, 1.0
    %v3614 = vrcp.pop %v3613
    %v3615 = vmul.f32 1.0, %v3614
    %v3616 = vxor.u32 %v3537, 2147483648
    %v3617 = vmul.f32 %v3616, 1.442695
    %v3618 = vpow.pop %v3617
    %v3619 = vadd.f32 %v3618, 1.0
    %v3620 = vrcp.pop %v3619
    %v3621 = vmul.f32 1.0, %v3620
    %v3622 = vtanh.pop %v3606
    %v3623 = vxor.u32 %v3608, 2147483648
    %v3624 = vmul.f32 %v3623, 1.442695
    %v3625 = vpow.pop %v3624
    %v3626 = vadd.f32 %v3625, 1.0
    %v3627 = vrcp.pop %v3626
    %v3628 = vmul.f32 1.0, %v3627
    %v3629 = vmul.f32 %v3621, %v3459
    %v3630 = vmul.f32 %v3615, %v3622
    %v3631 = vadd.f32 %v3629, %v3630
    %v3632 = vtanh.pop %v3631
    %v3633 = vmul.f32 %v3628, %v3632
    %s3634 = scalar_lea.vmem [#allocation2], 48
    %3635 = vst [vmem:[%s3634] sm:$0xff] %v3633
    %v3636 = vld [vmem:[%s1839] sm:$0xff]
    %v3637 = vld [vmem:[%s1839 + $0x8] sm:$0xff]
    %v3638 = vld [vmem:[%s1839 + $0x10] sm:$0xff]
    %v3639 = vld [vmem:[%s1839 + $0x18] sm:$0xff]
    %3640 = vmatprep.subr.mxu0 %v2081
    %3641 = vmatpush1.msra.mxu0 %v2080
    %3642 = vmatprep.subr.mxu0 %v2085
    %3643 = vmatpush1.msra.mxu0 %v2084
    %3644 = vmatprep.subr.mxu0 %v2089
    %3645 = vmatpush1.msra.mxu0 %v2088
    %3646 = vmatprep.subr.mxu0 %v2093
    %3647 = vmatpush1.msra.mxu0 %v2092
    %3648 = vmatprep.subr.mxu0 %v2097
    %3649 = vmatpush1.msra.mxu0 %v2096
    %3650 = vmatprep.subr.mxu0 %v2101
    %3651 = vmatpush1.msra.mxu0 %v2100
    %3652 = vmatprep.subr.mxu0 %v2105
    %3653 = vmatpush1.msra.mxu0 %v2104
    %3654 = vmatprep.subr.mxu0 %v2109
    %3655 = vmatpush1.msra.mxu0 %v2108
    %3656 = vmatprep.subr.mxu0 %v2113
    %3657 = vmatpush1.msra.mxu0 %v2112
    %3658 = vmatprep.subr.mxu0 %v2117
    %3659 = vmatpush1.msra.mxu0 %v2116
    %3660 = vmatprep.subr.mxu0 %v2121
    %3661 = vmatpush1.msra.mxu0 %v2120
    %3662 = vmatprep.subr.mxu0 %v2125
    %3663 = vmatpush1.msra.mxu0 %v2124
    %3664 = vmatprep.subr.mxu0 %v2129
    %3665 = vmatpush1.msra.mxu0 %v2128
    %3666 = vmatprep.subr.mxu0 %v2133
    %3667 = vmatpush1.msra.mxu0 %v2132
    %3668 = vmatprep.subr.mxu0 %v2137
    %3669 = vmatpush1.msra.mxu0 %v2136
    %3670 = vmatprep.subr.mxu0 %v2141
    %3671 = vmatpush1.msra.mxu0 %v2140
    %3672 = vmatprep.subr.mxu0 0.0
    %3673 = vmatpush1.msra.mxu0 0.0
    %3674 = vmatprep.subr.mxu0 0.0
    %3675 = vmatpush1.msra.mxu0 0.0
    %3676 = vmatprep.subr.mxu0 0.0
    %3677 = vmatpush1.msra.mxu0 0.0
    %3678 = vmatprep.subr.mxu0 0.0
    %3679 = vmatpush1.msra.mxu0 0.0
    %3680 = vmatprep.subr.mxu0 0.0
    %3681 = vmatpush1.msra.mxu0 0.0
    %3682 = vmatprep.subr.mxu0 0.0
    %3683 = vmatpush1.msra.mxu0 0.0
    %3684 = vmatprep.subr.mxu0 0.0
    %3685 = vmatpush1.msra.mxu0 0.0
    %3686 = vmatprep.subr.mxu0 0.0
    %3687 = vmatpush1.msra.mxu0 0.0
    %3688 = vmatprep.subr.mxu0 0.0
    %3689 = vmatpush1.msra.mxu0 0.0
    %3690 = vmatprep.subr.mxu0 0.0
    %3691 = vmatpush1.msra.mxu0 0.0
    %3692 = vmatprep.subr.mxu0 0.0
    %3693 = vmatpush1.msra.mxu0 0.0
    %3694 = vmatprep.subr.mxu0 0.0
    %3695 = vmatpush1.msra.mxu0 0.0
    %3696 = vmatprep.subr.mxu0 0.0
    %3697 = vmatpush1.msra.mxu0 0.0
    %3698 = vmatprep.subr.mxu0 0.0
    %3699 = vmatpush1.msra.mxu0 0.0
    %3700 = vmatprep.subr.mxu0 0.0
    %3701 = vmatpush1.msra.mxu0 0.0
    %3702 = vmatprep.subr.mxu0 0.0
    %3703 = vmatpush1.msra.mxu0 0.0
    %3704 = vmatprep.mubr.f32.mxu0 0.0
    %3705 = vmatmul.mubr.f32.gmra.mrb[0].mxu0 %v3633
    %v3706 = vpop.f32.mrb[0].mxu0
    %v3707 = vadd.f32 %v3636, %v3706
    %v3708 = vpop.f32.mrb[0].mxu0
    %v3709 = vadd.f32 %v3637, %v3708
    %3710 = vdwg.mxu0
    %3711 = vmatprep.subr.mxu0 %v2083
    %3712 = vmatpush1.msra.mxu0 %v2082
    %3713 = vmatprep.subr.mxu0 %v2087
    %3714 = vmatpush1.msra.mxu0 %v2086
    %3715 = vmatprep.subr.mxu0 %v2091
    %3716 = vmatpush1.msra.mxu0 %v2090
    %3717 = vmatprep.subr.mxu0 %v2095
    %3718 = vmatpush1.msra.mxu0 %v2094
    %3719 = vmatprep.subr.mxu0 %v2099
    %3720 = vmatpush1.msra.mxu0 %v2098
    %3721 = vmatprep.subr.mxu0 %v2103
    %3722 = vmatpush1.msra.mxu0 %v2102
    %3723 = vmatprep.subr.mxu0 %v2107
    %3724 = vmatpush1.msra.mxu0 %v2106
    %3725 = vmatprep.subr.mxu0 %v2111
    %3726 = vmatpush1.msra.mxu0 %v2110
    %3727 = vmatprep.subr.mxu0 %v2115
    %3728 = vmatpush1.msra.mxu0 %v2114
    %3729 = vmatprep.subr.mxu0 %v2119
    %3730 = vmatpush1.msra.mxu0 %v2118
    %3731 = vmatprep.subr.mxu0 %v2123
    %3732 = vmatpush1.msra.mxu0 %v2122
    %3733 = vmatprep.subr.mxu0 %v2127
    %3734 = vmatpush1.msra.mxu0 %v2126
    %3735 = vmatprep.subr.mxu0 %v2131
    %3736 = vmatpush1.msra.mxu0 %v2130
    %3737 = vmatprep.subr.mxu0 %v2135
    %3738 = vmatpush1.msra.mxu0 %v2134
    %3739 = vmatprep.subr.mxu0 %v2139
    %3740 = vmatpush1.msra.mxu0 %v2138
    %3741 = vmatprep.subr.mxu0 %v2143
    %3742 = vmatpush1.msra.mxu0 %v2142
    %3743 = vmatprep.subr.mxu0 0.0
    %3744 = vmatpush1.msra.mxu0 0.0
    %3745 = vmatprep.subr.mxu0 0.0
    %3746 = vmatpush1.msra.mxu0 0.0
    %3747 = vmatprep.subr.mxu0 0.0
    %3748 = vmatpush1.msra.mxu0 0.0
    %3749 = vmatprep.subr.mxu0 0.0
    %3750 = vmatpush1.msra.mxu0 0.0
    %3751 = vmatprep.subr.mxu0 0.0
    %3752 = vmatpush1.msra.mxu0 0.0
    %3753 = vmatprep.subr.mxu0 0.0
    %3754 = vmatpush1.msra.mxu0 0.0
    %3755 = vmatprep.subr.mxu0 0.0
    %3756 = vmatpush1.msra.mxu0 0.0
    %3757 = vmatprep.subr.mxu0 0.0
    %3758 = vmatpush1.msra.mxu0 0.0
    %3759 = vmatprep.subr.mxu0 0.0
    %3760 = vmatpush1.msra.mxu0 0.0
    %3761 = vmatprep.subr.mxu0 0.0
    %3762 = vmatpush1.msra.mxu0 0.0
    %3763 = vmatprep.subr.mxu0 0.0
    %3764 = vmatpush1.msra.mxu0 0.0
    %3765 = vmatprep.subr.mxu0 0.0
    %3766 = vmatpush1.msra.mxu0 0.0
    %3767 = vmatprep.subr.mxu0 0.0
    %3768 = vmatpush1.msra.mxu0 0.0
    %3769 = vmatprep.subr.mxu0 0.0
    %3770 = vmatpush1.msra.mxu0 0.0
    %3771 = vmatprep.subr.mxu0 0.0
    %3772 = vmatpush1.msra.mxu0 0.0
    %3773 = vmatprep.subr.mxu0 0.0
    %3774 = vmatpush1.msra.mxu0 0.0
    %3775 = vmatprep.mubr.f32.mxu0 0.0
    %3776 = vmatmul.mubr.f32.gmra.mrb[0].mxu0 %v3633
    %v3777 = vpop.f32.mrb[0].mxu0
    %v3778 = vadd.f32 %v3638, %v3777
    %v3779 = vpop.f32.mrb[0].mxu0
    %v3780 = vadd.f32 %v3639, %v3779
    %3781 = vdwg.mxu0
    %v3782 = vxor.u32 %v3707, 2147483648
    %v3783 = vmul.f32 %v3782, 1.442695
    %v3784 = vpow.pop %v3783
    %v3785 = vadd.f32 %v3784, 1.0
    %v3786 = vrcp.pop %v3785
    %v3787 = vmul.f32 1.0, %v3786
    %v3788 = vxor.u32 %v3709, 2147483648
    %v3789 = vmul.f32 %v3788, 1.442695
    %v3790 = vpow.pop %v3789
    %v3791 = vadd.f32 %v3790, 1.0
    %v3792 = vrcp.pop %v3791
    %v3793 = vmul.f32 1.0, %v3792
    %v3794 = vtanh.pop %v3778
    %v3795 = vxor.u32 %v3780, 2147483648
    %v3796 = vmul.f32 %v3795, 1.442695
    %v3797 = vpow.pop %v3796
    %v3798 = vadd.f32 %v3797, 1.0
    %v3799 = vrcp.pop %v3798
    %v3800 = vmul.f32 1.0, %v3799
    %v3801 = vmul.f32 %v3793, %v3631
    %v3802 = vmul.f32 %v3787, %v3794
    %v3803 = vadd.f32 %v3801, %v3802
    %v3804 = vtanh.pop %v3803
    %v3805 = vmul.f32 %v3800, %v3804
    %s3806 = scalar_lea.vmem [#allocation2], 56
    %3807 = vst [vmem:[%s3806] sm:$0xff] %v3805
    %s3808 = scalar_lea.vmem [#allocation16], 8
    %3809 = vst [vmem:[%s3808] sm:$0xff] %v3805
    %s3810 = scalar_lea.vmem [#allocation18], 8
    %3811 = vst [vmem:[%s3810] sm:$0xff] %v3803
    %v3812 = vld [vmem:[#allocation2] sm:$0xff]
    %v3813 = vld [vmem:[#allocation2 + $0x8] sm:$0xff]
    %v3814 = vld [vmem:[#allocation2 + $0x10] sm:$0xff]
    %v3815 = vld [vmem:[#allocation2 + $0x18] sm:$0xff]
    %v3816 = vld [vmem:[#allocation2 + $0x20] sm:$0xff]
    %v3817 = vld [vmem:[#allocation2 + $0x28] sm:$0xff]
    %v3818 = vld [vmem:[#allocation2 + $0x30] sm:$0xff]
    %v3819 = vld [vmem:[#allocation2 + $0x38] sm:$0xff]
    %v3820 = vld [vmem:[#allocation13] sm:$0xff]
    %v3821 = vld [vmem:[#allocation13 + $0x8] sm:$0xff]
    %v3822 = vld [vmem:[#allocation13 + $0x10] sm:$0xff]
    %v3823 = vld [vmem:[#allocation13 + $0x18] sm:$0xff]
    %v3824 = vld [vmem:[#allocation13 + $0x20] sm:$0xff]
    %v3825 = vld [vmem:[#allocation13 + $0x28] sm:$0xff]
    %v3826 = vld [vmem:[#allocation13 + $0x30] sm:$0xff]
    %v3827 = vld [vmem:[#allocation13 + $0x38] sm:$0xff]
    %v3828 = vld [vmem:[#allocation13 + $0x40] sm:$0xff]
    %v3829 = vld [vmem:[#allocation13 + $0x48] sm:$0xff]
    %v3830 = vld [vmem:[#allocation13 + $0x50] sm:$0xff]
    %v3831 = vld [vmem:[#allocation13 + $0x58] sm:$0xff]
    %v3832 = vld [vmem:[#allocation13 + $0x60] sm:$0xff]
    %v3833 = vld [vmem:[#allocation13 + $0x68] sm:$0xff]
    %v3834 = vld [vmem:[#allocation13 + $0x70] sm:$0xff]
    %v3835 = vld [vmem:[#allocation13 + $0x78] sm:$0xff]
    %v3836 = vld [vmem:[%s6] sm:$0x1]
    %v3838 = vlaneseq
    %v3839 = vshrl.u32 %v3838, 7
    %v3840 = vsub.s32 0, %v3839
    %v3841 = vrot.slane %v3836, %v3840
    %3843 = vmatprep.subr.mxu0 0.0
    %3844 = vmatpush1.msra.mxu0 %v3820
    %3845 = vmatprep.subr.mxu0 0.0
    %3846 = vmatpush1.msra.mxu0 %v3821
    %3847 = vmatprep.subr.mxu0 0.0
    %3848 = vmatpush1.msra.mxu0 %v3822
    %3849 = vmatprep.subr.mxu0 0.0
    %3850 = vmatpush1.msra.mxu0 %v3823
    %3851 = vmatprep.subr.mxu0 0.0
    %3852 = vmatpush1.msra.mxu0 %v3824
    %3853 = vmatprep.subr.mxu0 0.0
    %3854 = vmatpush1.msra.mxu0 %v3825
    %3855 = vmatprep.subr.mxu0 0.0
    %3856 = vmatpush1.msra.mxu0 %v3826
    %3857 = vmatprep.subr.mxu0 0.0
    %3858 = vmatpush1.msra.mxu0 %v3827
    %3859 = vmatprep.subr.mxu0 0.0
    %3860 = vmatpush1.msra.mxu0 %v3828
    %3861 = vmatprep.subr.mxu0 0.0
    %3862 = vmatpush1.msra.mxu0 %v3829
    %3863 = vmatprep.subr.mxu0 0.0
    %3864 = vmatpush1.msra.mxu0 %v3830
    %3865 = vmatprep.subr.mxu0 0.0
    %3866 = vmatpush1.msra.mxu0 %v3831
    %3867 = vmatprep.subr.mxu0 0.0
    %3868 = vmatpush1.msra.mxu0 %v3832
    %3869 = vmatprep.subr.mxu0 0.0
    %3870 = vmatpush1.msra.mxu0 %v3833
    %3871 = vmatprep.subr.mxu0 0.0
    %3872 = vmatpush1.msra.mxu0 %v3834
    %3873 = vmatprep.subr.mxu0 0.0
    %3874 = vmatpush1.msra.mxu0 %v3835
    %3875 = vmatprep.subr.mxu0 0.0
    %3876 = vmatpush1.msra.mxu0 0.0
    %3877 = vmatprep.subr.mxu0 0.0
    %3878 = vmatpush1.msra.mxu0 0.0
    %3879 = vmatprep.subr.mxu0 0.0
    %3880 = vmatpush1.msra.mxu0 0.0
    %3881 = vmatprep.subr.mxu0 0.0
    %3882 = vmatpush1.msra.mxu0 0.0
    %3883 = vmatprep.subr.mxu0 0.0
    %3884 = vmatpush1.msra.mxu0 0.0
    %3885 = vmatprep.subr.mxu0 0.0
    %3886 = vmatpush1.msra.mxu0 0.0
    %3887 = vmatprep.subr.mxu0 0.0
    %3888 = vmatpush1.msra.mxu0 0.0
    %3889 = vmatprep.subr.mxu0 0.0
    %3890 = vmatpush1.msra.mxu0 0.0
    %3891 = vmatprep.subr.mxu0 0.0
    %3892 = vmatpush1.msra.mxu0 0.0
    %3893 = vmatprep.subr.mxu0 0.0
    %3894 = vmatpush1.msra.mxu0 0.0
    %3895 = vmatprep.subr.mxu0 0.0
    %3896 = vmatpush1.msra.mxu0 0.0
    %3897 = vmatprep.subr.mxu0 0.0
    %3898 = vmatpush1.msra.mxu0 0.0
    %3899 = vmatprep.subr.mxu0 0.0
    %3900 = vmatpush1.msra.mxu0 0.0
    %3901 = vmatprep.subr.mxu0 0.0
    %3902 = vmatpush1.msra.mxu0 0.0
    %3903 = vmatprep.subr.mxu0 0.0
    %3904 = vmatpush1.msra.mxu0 0.0
    %3905 = vmatprep.subr.mxu0 0.0
    %3906 = vmatpush1.msra.mxu0 0.0
    %3907 = vmatprep.mubr.f32.mxu0 0.0
    %3908 = vmatmul.mubr.f32.gmra.mrb[0].mxu0 %v3812
    %v3909 = vpop.f32.mrb[0].mxu0
    %v3910 = vadd.f32 %v3841, %v3909
    %v3911 = vpop.f32.mrb[0].mxu0
    %3912 = vmatprep.mubr.f32.mxu0 0.0
    %3913 = vmatmul.mubr.f32.gmra.mrb[0].mxu0 %v3813
    %v3914 = vpop.f32.mrb[0].mxu0
    %v3915 = vadd.f32 %v3841, %v3914
    %v3916 = vpop.f32.mrb[0].mxu0
    %3917 = vmatprep.mubr.f32.mxu0 0.0
    %3918 = vmatmul.mubr.f32.gmra.mrb[0].mxu0 %v3814
    %v3919 = vpop.f32.mrb[0].mxu0
    %v3920 = vadd.f32 %v3841, %v3919
    %v3921 = vpop.f32.mrb[0].mxu0
    %3922 = vmatprep.mubr.f32.mxu0 0.0
    %3923 = vmatmul.mubr.f32.gmra.mrb[0].mxu0 %v3815
    %v3924 = vpop.f32.mrb[0].mxu0
    %v3925 = vadd.f32 %v3841, %v3924
    %v3926 = vpop.f32.mrb[0].mxu0
    %3927 = vmatprep.mubr.f32.mxu0 0.0
    %3928 = vmatmul.mubr.f32.gmra.mrb[0].mxu0 %v3816
    %v3929 = vpop.f32.mrb[0].mxu0
    %v3930 = vadd.f32 %v3841, %v3929
    %v3931 = vpop.f32.mrb[0].mxu0
    %3932 = vmatprep.mubr.f32.mxu0 0.0
    %3933 = vmatmul.mubr.f32.gmra.mrb[0].mxu0 %v3817
    %v3934 = vpop.f32.mrb[0].mxu0
    %v3935 = vadd.f32 %v3841, %v3934
    %v3936 = vpop.f32.mrb[0].mxu0
    %3937 = vmatprep.mubr.f32.mxu0 0.0
    %3938 = vmatmul.mubr.f32.gmra.mrb[0].mxu0 %v3818
    %v3939 = vpop.f32.mrb[0].mxu0
    %v3940 = vadd.f32 %v3841, %v3939
    %v3941 = vpop.f32.mrb[0].mxu0
    %3942 = vmatprep.mubr.f32.mxu0 0.0
    %3943 = vmatmul.mubr.f32.gmra.mrb[0].mxu0 %v3819
    %v3944 = vpop.f32.mrb[0].mxu0
    %v3945 = vadd.f32 %v3841, %v3944
    %v3946 = vpop.f32.mrb[0].mxu0
    %3947 = vdwg.mxu0
    %3948 = vst [vmem:[#allocation15] sm:$0xff] %v3910
    %3949 = vst [vmem:[#allocation15 + $0x8] sm:$0xff] %v3915
    %3950 = vst [vmem:[#allocation15 + $0x10] sm:$0xff] %v3920
    %3951 = vst [vmem:[#allocation15 + $0x18] sm:$0xff] %v3925
    %3952 = vst [vmem:[#allocation15 + $0x20] sm:$0xff] %v3930
    %3953 = vst [vmem:[#allocation15 + $0x28] sm:$0xff] %v3935
    %3954 = vst [vmem:[#allocation15 + $0x30] sm:$0xff] %v3940
    %3955 = vst [vmem:[#allocation15 + $0x38] sm:$0xff] %v3945
    // Predicated region
    $region50: #{tpu_custom_call.1} parent=1 // pred_check
      _
    $region51: #{tpu_custom_call.1} parent=1 // pred_check_branch
      %3957 = sbr.rel (0) target = $region53
    $region52: #{tpu_custom_call.1} parent=1 // pred_region
      %s3959 = ssub.s32 1024, 1024
      %3960 = vsyncadd [#allocation7], %s3959
      %s3961 = sshll.u32 [#allocation15], 4
      %s3962 = int_to_ptr.vmem [resolvable:$true] %s3961
      %3967 = dma.vmem_to_hbm [thread:$0]  %s3962, 1024, %s7, [#allocation7], 128, 128, 8
    $region53: #{tpu_custom_call.1} parent=1 // pred_fallthru
      _
    // Predicated region
    $region54: #{tpu_custom_call.1} parent=1 // pred_check
      _
    $region55: #{tpu_custom_call.1} parent=1 // pred_check_branch
      %3969 = sbr.rel (0) target = $region57
    $region56: #{tpu_custom_call.1} parent=1 // pred_region
      %s3971 = ssub.s32 256, 256
      %3972 = vsyncadd [#allocation17], %s3971
      %s3973 = sshll.u32 [#allocation16], 4
      %s3974 = int_to_ptr.vmem [resolvable:$true] %s3973
      %3979 = dma.vmem_to_hbm [thread:$0]  %s3974, 256, %s8, [#allocation17], 128, 128, 8
    $region57: #{tpu_custom_call.1} parent=1 // pred_fallthru
      _
    // Predicated region
    $region58: #{tpu_custom_call.1} parent=1 // pred_check
      _
    $region59: #{tpu_custom_call.1} parent=1 // pred_check_branch
      %3981 = sbr.rel (0) target = $region61
    $region60: #{tpu_custom_call.1} parent=1 // pred_region
      %s3983 = ssub.s32 256, 256
      %3984 = vsyncadd [#allocation17], %s3983
      %s3985 = sshll.u32 [#allocation18], 4
      %s3986 = int_to_ptr.vmem [resolvable:$true] %s3985
      %3991 = dma.vmem_to_hbm [thread:$0]  %s3986, 256, %s9, [#allocation17], 128, 128, 8
    $region61: #{tpu_custom_call.1} parent=1 // pred_fallthru
      _
    // Predicated region
    $region62: #{tpu_custom_call.1} parent=1 // pred_check
      _
    $region63: #{tpu_custom_call.1} parent=1 // pred_check_branch
      %3993 = sbr.rel (0) target = $region65
    $region64: #{tpu_custom_call.1} parent=1 // pred_region
      %3994 = dma.done [#allocation7], 1024
    $region65: #{tpu_custom_call.1} parent=1 // pred_fallthru
      _
    // Predicated region
    $region66: #{tpu_custom_call.1} parent=1 // pred_check
      _
    $region67: #{tpu_custom_call.1} parent=1 // pred_check_branch
      %3996 = sbr.rel (0) target = $region69
    $region68: #{tpu_custom_call.1} parent=1 // pred_region
      %3997 = dma.done [#allocation17], 256
    $region69: #{tpu_custom_call.1} parent=1 // pred_fallthru
      _
    // Predicated region
    $region70: #{tpu_custom_call.1} parent=1 // pred_check
      _
    $region71: #{tpu_custom_call.1} parent=1 // pred_check_branch
      %3999 = sbr.rel (0) target = $region73
    $region72: #{tpu_custom_call.1} parent=1 // pred_region
      %4000 = dma.done [#allocation17], 256
    $region73: #{tpu_custom_call.1} parent=1 // pred_fallthru
      _
    %4001 = vsyncpa [#allocation6], 1
    %4002 = vsyncpa [#allocation11], 1
    %4003 = vsyncpa [#allocation14], 1
    %4004 = vsyncpa [#allocation7], 1
    %4005 = vsyncpa [#allocation17], 1
    %4006 = vsyncpa [#allocation8], 1

</llo_original>
